<compile_context>
chip_gen: v7x
topology: tpu7x:2x2x1
jax: 0.10.0
libtpu: 0.0.40
codegen_flags: <defaults>
</compile_context>

<pallas_src>
import functools

import jax
import jax.numpy as jnp
from jax.experimental import pallas as pl
from jax.experimental.pallas import tpu as pltpu


# ----------------------------------------------------------------------------
# Fused kernel: main path + channel attention + spatial attention + residual.
# ----------------------------------------------------------------------------
def fused_block_kernel(x_ref, w1s_ref, b1s_ref, w2_ref, b2_ref,
                       wc1_ref, wc2_ref, wsa_ref, o_ref, *, W, has_proj):
    # x_ref: (1, Cin, HW); w1s_ref: (R, Cin) with R = 2C (proj) or C (identity);
    # b1s_ref: (R, 1); w2_ref: (C, C); b2_ref: (C, 1); wc1: (Ch, C); wc2: (C, Ch);
    # wsa_ref: SMEM (98,) = [49 avg taps | 49 max taps]; o_ref: (1, C, HW).
    C = w2_ref.shape[0]
    HW = x_ref.shape[2]

    x = x_ref[0].astype(jnp.float32)                                   # (Cin, HW)

    # conv1(+BN1 folded) and projection-shortcut(+BN folded) as one stacked
    # MXU matmul (128 rows when a projection is present).
    z = (jnp.dot(w1s_ref[...], x, preferred_element_type=jnp.float32)
         + b1s_ref[...])                                               # (R, HW)
    t = jax.nn.sigmoid(z[:C, :])                                       # (C, HW)
    sc = z[C:, :] if has_proj else x                                   # (C, HW)

    # conv2 + BN2 (folded)
    o2 = (jnp.dot(w2_ref[...], t, preferred_element_type=jnp.float32)
          + b2_ref[...])                                               # (C, HW)

    # ---- channel attention: global avg/max pool -> shared MLP -> sigmoid ----
    avg = jnp.sum(o2, axis=1, keepdims=True) * (1.0 / HW)              # (C, 1)
    mx = jnp.max(o2, axis=1, keepdims=True)                            # (C, 1)
    pooled = jnp.concatenate([avg, mx], axis=1)                        # (C, 2)
    h = jnp.maximum(
        jnp.dot(wc1_ref[...], pooled, preferred_element_type=jnp.float32),
        0.0)                                                           # (Ch, 2)
    q = jnp.dot(wc2_ref[...], h, preferred_element_type=jnp.float32)   # (C, 2)
    ca = jax.nn.sigmoid(q[:, 0:1] + q[:, 1:2])                         # (C, 1)
    o3 = o2 * ca                                                       # (C, HW)

    # ---- spatial attention: 7x7 conv (pad 3) evaluated in flat (1, HW) ------
    avg_f = jnp.sum(o3, axis=0, keepdims=True) * (1.0 / C)             # (1, HW)
    max_f = jnp.max(o3, axis=0, keepdims=True)                         # (1, HW)

    col = jax.lax.broadcasted_iota(jnp.int32, (1, HW), 1) % W          # x coord / lane
    z3 = jnp.zeros((1, 3), jnp.float32)
    pa = jnp.concatenate([z3, avg_f, z3], axis=1)                      # (1, HW+6)
    pm = jnp.concatenate([z3, max_f, z3], axis=1)

    # 7 masked lane (dx) shifts per map, computed once and reused across dy.
    g_a, g_m = [], []
    for dx in range(7):
        valid = jnp.logical_and(col + dx >= 3, col + dx < W + 3)       # 0<=x+dx-3<W
        g_a.append(jnp.where(valid, pa[:, dx:dx + HW], 0.0))
        g_m.append(jnp.where(valid, pm[:, dx:dx + HW], 0.0))

    z3w = jnp.zeros((1, 3 * W), jnp.float32)
    s = jnp.zeros((1, HW), jnp.float32)
    for dy in range(7):
        r = jnp.zeros((1, HW), jnp.float32)
        for dx in range(7):                                            # pure VPU FMAs
            r = r + wsa_ref[dy * 7 + dx] * g_a[dx]
            r = r + wsa_ref[49 + dy * 7 + dx] * g_m[dx]
        pr = jnp.concatenate([z3w, r, z3w], axis=1)                    # (1, HW+6W)
        s = s + pr[:, dy * W:dy * W + HW]                              # row shift dy-3
    sa = jax.nn.sigmoid(s)                                             # (1, HW)

    # ---- apply spatial attention, residual add, final sigmoid ---------------
    o_ref[0] = jax.nn.sigmoid(sa * o3 + sc).astype(o_ref.dtype)


# ----------------------------------------------------------------------------
# Wrapper
# ----------------------------------------------------------------------------
def basic_block1_forward(x, p, *, eps=1e-5):
    """x: (N, Cin, H, W) NCHW. p: dict of PyTorch-layout parameters (eval-mode BN)."""
    N, Cin, H, W = x.shape
    C = p['conv1_w'].shape[0]          # planes (pinned to 64 by ChannelAttention(64))
    Ch = p['ca_w1'].shape[0]           # planes // ratio
    HW = H * W
    f32 = jnp.float32

    def fold_bn(g, b, m, v):           # eval-mode BatchNorm -> per-channel scale/shift
        s = (g / jnp.sqrt(v + eps)).astype(f32)
        return s, (b - m * s).astype(f32)

    s1, b1 = fold_bn(*p['bn1'])
    s2, b2 = fold_bn(*p['bn2'])
    # BN scales folded directly into the 1x1-conv weights.
    w1 = p['conv1_w'][:, :, 0, 0].astype(f32) * s1[:, None]     # (C, Cin)
    w2 = p['conv2_w'][:, :, 0, 0].astype(f32) * s2[:, None]     # (C, C)

    has_proj = p.get('sc_w') is not None
    if has_proj:                                   # projection shortcut (1x1 conv + BN)
        ssc, bsc = fold_bn(*p['bn_sc'])
        wsc = p['sc_w'][:, :, 0, 0].astype(f32) * ssc[:, None]
        w1s = jnp.concatenate([w1, wsc], axis=0)                # (2C, Cin) stacked
        b1s = jnp.concatenate([b1, bsc], axis=0)[:, None]       # (2C, 1)
    else:                                          # identity shortcut
        assert Cin == C, "identity shortcut requires in_planes == planes"
        w1s = w1                                                # (C, Cin)
        b1s = b1[:, None]                                       # (C, 1)
    R = w1s.shape[0]

    wc1 = p['ca_w1'][:, :, 0, 0].astype(f32)                    # (Ch, C)
    wc2 = p['ca_w2'][:, :, 0, 0].astype(f32)                    # (C, Ch)
    wsa = p['sa_w'].astype(f32).reshape(-1)                     # (98,) avg|max taps

    x3 = x.reshape(N, Cin, HW)                                  # lane-dense, free reshape

    full = lambda n: (0, 0)                                     # weights resident in VMEM
    out_flat = pl.pallas_call(
        functools.partial(fused_block_kernel, W=W, has_proj=has_proj),
        out_shape=jax.ShapeDtypeStruct((N, C, HW), x.dtype),
        grid_spec=pltpu.PrefetchScalarGridSpec(
            num_scalar_prefetch=0,
            grid=(N,),
            in_specs=[
                pl.BlockSpec((1, Cin, HW), lambda n: (n, 0, 0)),   # x
                pl.BlockSpec((R, Cin), full),                      # stacked conv1|sc w
                pl.BlockSpec((R, 1), full),                        # stacked biases
                pl.BlockSpec((C, C), full),                        # conv2 w (BN folded)
                pl.BlockSpec((C, 1), full),                        # conv2 bias
                pl.BlockSpec((Ch, C), full),                       # CA mlp w1
                pl.BlockSpec((C, Ch), full),                       # CA mlp w2
                pl.BlockSpec(memory_space=pltpu.MemorySpace.SMEM), # SA 7x7 taps (scalars)
            ],
            out_specs=pl.BlockSpec((1, C, HW), lambda n: (n, 0, 0)),
        ),
        compiler_params=pltpu.CompilerParams(
            dimension_semantics=("parallel",)),
    )(x3, w1s, b1s, w2, b2[:, None], wc1, wc2, wsa)

    return out_flat.reshape(N, C, H, W)


# ----------------------------------------------------------------------------
# Pure-JAX reference mirroring the PyTorch module (eval-mode BN).
# ----------------------------------------------------------------------------
def reference(x, p, eps=1e-5):
    hp = jax.lax.Precision.HIGHEST

    def bn(y, g, b, m, v):
        s = g / jnp.sqrt(v + eps)
        return y * s[None, :, None, None] + (b - m * s)[None, :, None, None]

    def conv1x1(y, w):
        return jnp.einsum('nihw,oi->nohw', y, w[:, :, 0, 0], precision=hp)

    out = jax.nn.sigmoid(bn(conv1x1(x, p['conv1_w']), *p['bn1']))
    out = bn(conv1x1(out, p['conv2_w']), *p['bn2'])

    # channel attention
    avg = jnp.mean(out, axis=(2, 3))
    mx = jnp.max(out, axis=(2, 3))
    w1 = p['ca_w1'][:, :, 0, 0]
    w2 = p['ca_w2'][:, :, 0, 0]

    def mlp(q):
        h = jnp.maximum(jnp.dot(q, w1.T, precision=hp), 0.0)
        return jnp.dot(h, w2.T, precision=hp)

    ca = jax.nn.sigmoid(mlp(avg) + mlp(mx))[:, :, None, None]
    out = ca * out

    # spatial attention
    avg_c = jnp.mean(out, axis=1, keepdims=True)
    max_c = jnp.max(out, axis=1, keepdims=True)
    sm = jax.lax.conv_general_dilated(
        jnp.concatenate([avg_c, max_c], axis=1), p['sa_w'],
        window_strides=(1, 1), padding=[(3, 3), (3, 3)],
        dimension_numbers=('NCHW', 'OIHW', 'NCHW'), precision=hp)
    out = jax.nn.sigmoid(sm) * out

    # shortcut
    if p.get('sc_w') is not None:
        sc = bn(conv1x1(x, p['sc_w']), *p['bn_sc'])
    else:
        sc = x
    return jax.nn.sigmoid(out + sc)


if __name__ == "__main__":
    key = jax.random.PRNGKey(0)
    ks = list(jax.random.split(key, 24))

    # planes is pinned to 64 by ChannelAttention(64) inside BasicBlock1; stride
    # must be 1 (conv2 also strides, so any other stride breaks the residual add).
    N, C, H, W = 2, 64, 16, 16
    ratio = 16
    Ch = C // ratio
    f32 = jnp.float32

    def nrm(k, shape, scale=0.1):
        return scale * jax.random.normal(k, shape, dtype=f32)

    def bn_params(kg, kb, km, kv, c):
        return (1.0 + 0.1 * jax.random.normal(kg, (c,), f32),    # gamma
                0.1 * jax.random.normal(kb, (c,), f32),          # beta
                0.1 * jax.random.normal(km, (c,), f32),          # running_mean
                0.5 + jax.random.uniform(kv, (c,), dtype=f32))   # running_var

    # ---- case 1: projection shortcut (in_planes=32 != planes=64) -------------
    Cin = 32
    params = {
        'conv1_w': nrm(ks[0], (C, Cin, 1, 1)),
        'bn1': bn_params(ks[1], ks[2], ks[3], ks[4], C),
        'conv2_w': nrm(ks[5], (C, C, 1, 1)),
        'bn2': bn_params(ks[6], ks[7], ks[8], ks[9], C),
        'ca_w1': nrm(ks[10], (Ch, C, 1, 1)),
        'ca_w2': nrm(ks[11], (C, Ch, 1, 1)),
        'sa_w': nrm(ks[12], (1, 2, 7, 7)),
        'sc_w': nrm(ks[13], (C, Cin, 1, 1)),
        'bn_sc': bn_params(ks[14], ks[15], ks[16], ks[17], C),
    }
    x = jax.random.normal(ks[18], (N, Cin, H, W), dtype=f32)

    out = jax.block_until_ready(basic_block1_forward(x, params))
    ref = reference(x, params)
    assert out.shape == (N, C, H, W)
    err = float(jnp.max(jnp.abs(out - ref)))
    assert jnp.allclose(out, ref, atol=3e-3, rtol=3e-3), \
        f"projection-shortcut mismatch vs reference (max abs err {err})"

    # ---- case 2: identity shortcut (in_planes == planes) ----------------------
    params_id = {
        'conv1_w': nrm(ks[19], (C, C, 1, 1)),
        'bn1': params['bn1'],
        'conv2_w': nrm(ks[20], (C, C, 1, 1)),
        'bn2': params['bn2'],
        'ca_w1': params['ca_w1'],
        'ca_w2': params['ca_w2'],
        'sa_w': params['sa_w'],
        'sc_w': None,
    }
    x2 = jax.random.normal(ks[21], (N, C, H, W), dtype=f32)

    out2 = jax.block_until_ready(basic_block1_forward(x2, params_id))
    ref2 = reference(x2, params_id)
    err2 = float(jnp.max(jnp.abs(out2 - ref2)))
    assert jnp.allclose(out2, ref2, atol=3e-3, rtol=3e-3), \
        f"identity-shortcut mismatch vs reference (max abs err {err2})"

    print("KERNEL_OK")
</pallas_src>

<mosaic_0001>
module attributes {stable_mosaic.version = 11 : i64} {
  func.func @fused_block_kernel(%arg0: i32, %arg1: memref<1x32x256xf32, #tpu.memory_space<vmem>>, %arg2: memref<128x32xf32, #tpu.memory_space<vmem>>, %arg3: memref<128x1xf32, #tpu.memory_space<vmem>>, %arg4: memref<64x64xf32, #tpu.memory_space<vmem>>, %arg5: memref<64x1xf32, #tpu.memory_space<vmem>>, %arg6: memref<4x64xf32, #tpu.memory_space<vmem>>, %arg7: memref<64x4xf32, #tpu.memory_space<vmem>>, %arg8: memref<98xf32, #tpu.memory_space<smem>>, %arg9: memref<1x64x256xf32, #tpu.memory_space<vmem>>) attributes {dimension_semantics = [#tpu.dimension_semantics<parallel>], iteration_bounds = array<i64: 2>, scalar_prefetch = 0 : i64, scratch_operands = 0 : i64, tpu.core_type = #tpu.core_type<tc>, window_params = [{transform_indices = @transform_0, window_bounds = array<i64: 1, 32, 256>}, {pipeline_mode = #tpu.pipeline_mode<synchronous>, transform_indices = @transform_1, window_bounds = array<i64: 128, 32>}, {pipeline_mode = #tpu.pipeline_mode<synchronous>, transform_indices = @transform_2, window_bounds = array<i64: 128, 1>}, {pipeline_mode = #tpu.pipeline_mode<synchronous>, transform_indices = @transform_3, window_bounds = array<i64: 64, 64>}, {pipeline_mode = #tpu.pipeline_mode<synchronous>, transform_indices = @transform_4, window_bounds = array<i64: 64, 1>}, {pipeline_mode = #tpu.pipeline_mode<synchronous>, transform_indices = @transform_5, window_bounds = array<i64: 4, 64>}, {pipeline_mode = #tpu.pipeline_mode<synchronous>, transform_indices = @transform_6, window_bounds = array<i64: 64, 4>}, {transform_indices = @transform_7, window_bounds = array<i64: 98>}, {transform_indices = @transform_8, window_bounds = array<i64: 1, 64, 256>}]} {
    %c0 = arith.constant 0 : index
    %c0_0 = arith.constant 0 : index
    %c0_1 = arith.constant 0 : index
    %0 = vector.load %arg1[%c0, %c0_0, %c0_1] : memref<1x32x256xf32, #tpu.memory_space<vmem>>, vector<1x32x256xf32>
    %1 = vector.shape_cast %0 : vector<1x32x256xf32> to vector<32x256xf32>
    %c0_2 = arith.constant 0 : index
    %c0_3 = arith.constant 0 : index
    %2 = vector.load %arg2[%c0_2, %c0_3] : memref<128x32xf32, #tpu.memory_space<vmem>>, vector<128x32xf32>
    %cst = arith.constant dense<0.000000e+00> : vector<128x256xf32>
    %3 = tpu.matmul %2, %1, %cst {dimension_numbers = #tpu.dot_dimension_numbers<[1], [0], [0], [1], [0, 0, 1, 1], [], []>} : vector<128x32xf32>, vector<32x256xf32>, vector<128x256xf32> -> vector<128x256xf32>
    %c0_4 = arith.constant 0 : index
    %c0_5 = arith.constant 0 : index
    %4 = vector.load %arg3[%c0_4, %c0_5] : memref<128x1xf32, #tpu.memory_space<vmem>>, vector<128x1xf32>
    %5 = vector.broadcast %4 : vector<128x1xf32> to vector<128x256xf32>
    %6 = arith.addf %3, %5 : vector<128x256xf32>
    %7 = vector.extract_strided_slice %6 {offsets = [0, 0], sizes = [64, 256], strides = [1, 1]} : vector<128x256xf32> to vector<64x256xf32>
    %8 = arith.negf %7 : vector<64x256xf32>
    %9 = math.exp %8 : vector<64x256xf32>
    %cst_6 = arith.constant 1.000000e+00 : f32
    %10 = vector.broadcast %cst_6 : f32 to vector<64x256xf32>
    %11 = arith.addf %10, %9 : vector<64x256xf32>
    %12 = arith.divf %10, %11 : vector<64x256xf32>
    %13 = vector.extract_strided_slice %6 {offsets = [64, 0], sizes = [64, 256], strides = [1, 1]} : vector<128x256xf32> to vector<64x256xf32>
    %c0_7 = arith.constant 0 : index
    %c0_8 = arith.constant 0 : index
    %14 = vector.load %arg4[%c0_7, %c0_8] : memref<64x64xf32, #tpu.memory_space<vmem>>, vector<64x64xf32>
    %cst_9 = arith.constant dense<0.000000e+00> : vector<64x256xf32>
    %15 = tpu.matmul %14, %12, %cst_9 {dimension_numbers = #tpu.dot_dimension_numbers<[1], [0], [0], [1], [0, 0, 1, 1], [], []>} : vector<64x64xf32>, vector<64x256xf32>, vector<64x256xf32> -> vector<64x256xf32>
    %c0_10 = arith.constant 0 : index
    %c0_11 = arith.constant 0 : index
    %16 = vector.load %arg5[%c0_10, %c0_11] : memref<64x1xf32, #tpu.memory_space<vmem>>, vector<64x1xf32>
    %17 = vector.broadcast %16 : vector<64x1xf32> to vector<64x256xf32>
    %18 = arith.addf %15, %17 : vector<64x256xf32>
    %cst_12 = arith.constant dense<0.000000e+00> : vector<64xf32>
    %19 = vector.multi_reduction <add>, %18, %cst_12 [1] : vector<64x256xf32> to vector<64xf32>
    %20 = vector.shape_cast %19 : vector<64xf32> to vector<64x1xf32>
    %cst_13 = arith.constant 3.906250e-03 : f32
    %21 = vector.broadcast %cst_13 : f32 to vector<64x1xf32>
    %22 = arith.mulf %20, %21 : vector<64x1xf32>
    %cst_14 = arith.constant dense<0xFF800000> : vector<64xf32>
    %23 = vector.multi_reduction <maximumf>, %18, %cst_14 [1] : vector<64x256xf32> to vector<64xf32>
    %24 = vector.shape_cast %23 : vector<64xf32> to vector<64x1xf32>
    %25 = tpu.concatenate %22, %24 in 1 : vector<64x1xf32>, vector<64x1xf32> -> vector<64x2xf32>
    %c0_15 = arith.constant 0 : index
    %c0_16 = arith.constant 0 : index
    %26 = vector.load %arg6[%c0_15, %c0_16] : memref<4x64xf32, #tpu.memory_space<vmem>>, vector<4x64xf32>
    %cst_17 = arith.constant dense<0.000000e+00> : vector<4x2xf32>
    %27 = tpu.matmul %26, %25, %cst_17 {dimension_numbers = #tpu.dot_dimension_numbers<[1], [0], [0], [1], [0, 0, 1, 1], [], []>} : vector<4x64xf32>, vector<64x2xf32>, vector<4x2xf32> -> vector<4x2xf32>
    %cst_18 = arith.constant 0.000000e+00 : f32
    %28 = vector.broadcast %cst_18 : f32 to vector<4x2xf32>
    %29 = arith.maximumf %27, %28 : vector<4x2xf32>
    %c0_19 = arith.constant 0 : index
    %c0_20 = arith.constant 0 : index
    %30 = vector.load %arg7[%c0_19, %c0_20] : memref<64x4xf32, #tpu.memory_space<vmem>>, vector<64x4xf32>
    %cst_21 = arith.constant dense<0.000000e+00> : vector<64x2xf32>
    %31 = tpu.matmul %30, %29, %cst_21 {dimension_numbers = #tpu.dot_dimension_numbers<[1], [0], [0], [1], [0, 0, 1, 1], [], []>} : vector<64x4xf32>, vector<4x2xf32>, vector<64x2xf32> -> vector<64x2xf32>
    %32 = vector.extract_strided_slice %31 {offsets = [0, 0], sizes = [64, 1], strides = [1, 1]} : vector<64x2xf32> to vector<64x1xf32>
    %33 = vector.extract_strided_slice %31 {offsets = [0, 1], sizes = [64, 1], strides = [1, 1]} : vector<64x2xf32> to vector<64x1xf32>
    %34 = arith.addf %32, %33 : vector<64x1xf32>
    %35 = arith.negf %34 : vector<64x1xf32>
    %36 = math.exp %35 : vector<64x1xf32>
    %cst_22 = arith.constant 1.000000e+00 : f32
    %37 = vector.broadcast %cst_22 : f32 to vector<64x1xf32>
    %38 = arith.addf %37, %36 : vector<64x1xf32>
    %39 = arith.divf %37, %38 : vector<64x1xf32>
    %40 = vector.broadcast %39 : vector<64x1xf32> to vector<64x256xf32>
    %41 = arith.mulf %18, %40 : vector<64x256xf32>
    %cst_23 = arith.constant dense<0.000000e+00> : vector<256xf32>
    %42 = vector.multi_reduction <add>, %41, %cst_23 [0] : vector<64x256xf32> to vector<256xf32>
    %43 = vector.shape_cast %42 : vector<256xf32> to vector<1x256xf32>
    %cst_24 = arith.constant 1.562500e-02 : f32
    %44 = vector.broadcast %cst_24 : f32 to vector<1x256xf32>
    %45 = arith.mulf %43, %44 : vector<1x256xf32>
    %cst_25 = arith.constant dense<0xFF800000> : vector<256xf32>
    %46 = vector.multi_reduction <maximumf>, %41, %cst_25 [0] : vector<64x256xf32> to vector<256xf32>
    %47 = vector.shape_cast %46 : vector<256xf32> to vector<1x256xf32>
    %48 = tpu.iota {dimensions = array<i32: 1>} : vector<1x256xi32>
    %c16_i32 = arith.constant 16 : i32
    %c0_i32 = arith.constant 0 : i32
    %49 = arith.cmpi eq, %c16_i32, %c0_i32 : i32
    %c1_i32 = arith.constant 1 : i32
    %50 = arith.select %49, %c1_i32, %c16_i32 : i32
    %51 = vector.broadcast %50 : i32 to vector<1x256xi32>
    %52 = arith.remsi %48, %51 : vector<1x256xi32>
    %c0_i32_26 = arith.constant 0 : i32
    %53 = vector.broadcast %c0_i32_26 : i32 to vector<1x256xi32>
    %54 = arith.cmpi ne, %52, %53 : vector<1x256xi32>
    %c0_i32_27 = arith.constant 0 : i32
    %55 = vector.broadcast %c0_i32_27 : i32 to vector<1x256xi32>
    %56 = arith.cmpi slt, %52, %55 : vector<1x256xi32>
    %c0_i32_28 = arith.constant 0 : i32
    %57 = arith.cmpi slt, %50, %c0_i32_28 : i32
    %58 = vector.broadcast %57 : i1 to vector<1x256xi1>
    %59 = vector.broadcast %58 : vector<1x256xi1> to vector<1x256xi1>
    %60 = arith.xori %56, %59 : vector<1x256xi1>
    %61 = arith.andi %60, %54 : vector<1x256xi1>
    %62 = vector.broadcast %50 : i32 to vector<1x256xi32>
    %63 = arith.addi %52, %62 : vector<1x256xi32>
    %64 = arith.select %61, %63, %52 : vector<1x256xi1>, vector<1x256xi32>
    %cst_29 = arith.constant 0.000000e+00 : f32
    %65 = vector.broadcast %cst_29 : f32 to vector<1x3xf32>
    %66 = tpu.concatenate %65, %45, %65 in 1 : vector<1x3xf32>, vector<1x256xf32>, vector<1x3xf32> -> vector<1x262xf32>
    %67 = tpu.concatenate %65, %47, %65 in 1 : vector<1x3xf32>, vector<1x256xf32>, vector<1x3xf32> -> vector<1x262xf32>
    %c0_i32_30 = arith.constant 0 : i32
    %68 = vector.broadcast %c0_i32_30 : i32 to vector<1x256xi32>
    %69 = arith.addi %64, %68 : vector<1x256xi32>
    %c3_i32 = arith.constant 3 : i32
    %70 = vector.broadcast %c3_i32 : i32 to vector<1x256xi32>
    %71 = arith.cmpi sge, %69, %70 : vector<1x256xi32>
    %c0_i32_31 = arith.constant 0 : i32
    %72 = vector.broadcast %c0_i32_31 : i32 to vector<1x256xi32>
    %73 = arith.addi %64, %72 : vector<1x256xi32>
    %c19_i32 = arith.constant 19 : i32
    %74 = vector.broadcast %c19_i32 : i32 to vector<1x256xi32>
    %75 = arith.cmpi slt, %73, %74 : vector<1x256xi32>
    %76 = arith.andi %71, %75 : vector<1x256xi1>
    %77 = vector.extract_strided_slice %66 {offsets = [0, 0], sizes = [1, 256], strides = [1, 1]} : vector<1x262xf32> to vector<1x256xf32>
    %cst_32 = arith.constant 0.000000e+00 : f32
    %78 = vector.broadcast %cst_32 : f32 to vector<1x256xf32>
    %79 = arith.select %76, %77, %78 : vector<1x256xi1>, vector<1x256xf32>
    %80 = vector.extract_strided_slice %67 {offsets = [0, 0], sizes = [1, 256], strides = [1, 1]} : vector<1x262xf32> to vector<1x256xf32>
    %cst_33 = arith.constant 0.000000e+00 : f32
    %81 = vector.broadcast %cst_33 : f32 to vector<1x256xf32>
    %82 = arith.select %76, %80, %81 : vector<1x256xi1>, vector<1x256xf32>
    %c1_i32_34 = arith.constant 1 : i32
    %83 = vector.broadcast %c1_i32_34 : i32 to vector<1x256xi32>
    %84 = arith.addi %64, %83 : vector<1x256xi32>
    %c3_i32_35 = arith.constant 3 : i32
    %85 = vector.broadcast %c3_i32_35 : i32 to vector<1x256xi32>
    %86 = arith.cmpi sge, %84, %85 : vector<1x256xi32>
    %c1_i32_36 = arith.constant 1 : i32
    %87 = vector.broadcast %c1_i32_36 : i32 to vector<1x256xi32>
    %88 = arith.addi %64, %87 : vector<1x256xi32>
    %c19_i32_37 = arith.constant 19 : i32
    %89 = vector.broadcast %c19_i32_37 : i32 to vector<1x256xi32>
    %90 = arith.cmpi slt, %88, %89 : vector<1x256xi32>
    %91 = arith.andi %86, %90 : vector<1x256xi1>
    %92 = vector.extract_strided_slice %66 {offsets = [0, 1], sizes = [1, 256], strides = [1, 1]} : vector<1x262xf32> to vector<1x256xf32>
    %cst_38 = arith.constant 0.000000e+00 : f32
    %93 = vector.broadcast %cst_38 : f32 to vector<1x256xf32>
    %94 = arith.select %91, %92, %93 : vector<1x256xi1>, vector<1x256xf32>
    %95 = vector.extract_strided_slice %67 {offsets = [0, 1], sizes = [1, 256], strides = [1, 1]} : vector<1x262xf32> to vector<1x256xf32>
    %cst_39 = arith.constant 0.000000e+00 : f32
    %96 = vector.broadcast %cst_39 : f32 to vector<1x256xf32>
    %97 = arith.select %91, %95, %96 : vector<1x256xi1>, vector<1x256xf32>
    %c2_i32 = arith.constant 2 : i32
    %98 = vector.broadcast %c2_i32 : i32 to vector<1x256xi32>
    %99 = arith.addi %64, %98 : vector<1x256xi32>
    %c3_i32_40 = arith.constant 3 : i32
    %100 = vector.broadcast %c3_i32_40 : i32 to vector<1x256xi32>
    %101 = arith.cmpi sge, %99, %100 : vector<1x256xi32>
    %c2_i32_41 = arith.constant 2 : i32
    %102 = vector.broadcast %c2_i32_41 : i32 to vector<1x256xi32>
    %103 = arith.addi %64, %102 : vector<1x256xi32>
    %c19_i32_42 = arith.constant 19 : i32
    %104 = vector.broadcast %c19_i32_42 : i32 to vector<1x256xi32>
    %105 = arith.cmpi slt, %103, %104 : vector<1x256xi32>
    %106 = arith.andi %101, %105 : vector<1x256xi1>
    %107 = vector.extract_strided_slice %66 {offsets = [0, 2], sizes = [1, 256], strides = [1, 1]} : vector<1x262xf32> to vector<1x256xf32>
    %cst_43 = arith.constant 0.000000e+00 : f32
    %108 = vector.broadcast %cst_43 : f32 to vector<1x256xf32>
    %109 = arith.select %106, %107, %108 : vector<1x256xi1>, vector<1x256xf32>
    %110 = vector.extract_strided_slice %67 {offsets = [0, 2], sizes = [1, 256], strides = [1, 1]} : vector<1x262xf32> to vector<1x256xf32>
    %cst_44 = arith.constant 0.000000e+00 : f32
    %111 = vector.broadcast %cst_44 : f32 to vector<1x256xf32>
    %112 = arith.select %106, %110, %111 : vector<1x256xi1>, vector<1x256xf32>
    %c3_i32_45 = arith.constant 3 : i32
    %113 = vector.broadcast %c3_i32_45 : i32 to vector<1x256xi32>
    %114 = arith.addi %64, %113 : vector<1x256xi32>
    %c3_i32_46 = arith.constant 3 : i32
    %115 = vector.broadcast %c3_i32_46 : i32 to vector<1x256xi32>
    %116 = arith.cmpi sge, %114, %115 : vector<1x256xi32>
    %c3_i32_47 = arith.constant 3 : i32
    %117 = vector.broadcast %c3_i32_47 : i32 to vector<1x256xi32>
    %118 = arith.addi %64, %117 : vector<1x256xi32>
    %c19_i32_48 = arith.constant 19 : i32
    %119 = vector.broadcast %c19_i32_48 : i32 to vector<1x256xi32>
    %120 = arith.cmpi slt, %118, %119 : vector<1x256xi32>
    %121 = arith.andi %116, %120 : vector<1x256xi1>
    %122 = vector.extract_strided_slice %66 {offsets = [0, 3], sizes = [1, 256], strides = [1, 1]} : vector<1x262xf32> to vector<1x256xf32>
    %cst_49 = arith.constant 0.000000e+00 : f32
    %123 = vector.broadcast %cst_49 : f32 to vector<1x256xf32>
    %124 = arith.select %121, %122, %123 : vector<1x256xi1>, vector<1x256xf32>
    %125 = vector.extract_strided_slice %67 {offsets = [0, 3], sizes = [1, 256], strides = [1, 1]} : vector<1x262xf32> to vector<1x256xf32>
    %cst_50 = arith.constant 0.000000e+00 : f32
    %126 = vector.broadcast %cst_50 : f32 to vector<1x256xf32>
    %127 = arith.select %121, %125, %126 : vector<1x256xi1>, vector<1x256xf32>
    %c4_i32 = arith.constant 4 : i32
    %128 = vector.broadcast %c4_i32 : i32 to vector<1x256xi32>
    %129 = arith.addi %64, %128 : vector<1x256xi32>
    %c3_i32_51 = arith.constant 3 : i32
    %130 = vector.broadcast %c3_i32_51 : i32 to vector<1x256xi32>
    %131 = arith.cmpi sge, %129, %130 : vector<1x256xi32>
    %c4_i32_52 = arith.constant 4 : i32
    %132 = vector.broadcast %c4_i32_52 : i32 to vector<1x256xi32>
    %133 = arith.addi %64, %132 : vector<1x256xi32>
    %c19_i32_53 = arith.constant 19 : i32
    %134 = vector.broadcast %c19_i32_53 : i32 to vector<1x256xi32>
    %135 = arith.cmpi slt, %133, %134 : vector<1x256xi32>
    %136 = arith.andi %131, %135 : vector<1x256xi1>
    %137 = vector.extract_strided_slice %66 {offsets = [0, 4], sizes = [1, 256], strides = [1, 1]} : vector<1x262xf32> to vector<1x256xf32>
    %cst_54 = arith.constant 0.000000e+00 : f32
    %138 = vector.broadcast %cst_54 : f32 to vector<1x256xf32>
    %139 = arith.select %136, %137, %138 : vector<1x256xi1>, vector<1x256xf32>
    %140 = vector.extract_strided_slice %67 {offsets = [0, 4], sizes = [1, 256], strides = [1, 1]} : vector<1x262xf32> to vector<1x256xf32>
    %cst_55 = arith.constant 0.000000e+00 : f32
    %141 = vector.broadcast %cst_55 : f32 to vector<1x256xf32>
    %142 = arith.select %136, %140, %141 : vector<1x256xi1>, vector<1x256xf32>
    %c5_i32 = arith.constant 5 : i32
    %143 = vector.broadcast %c5_i32 : i32 to vector<1x256xi32>
    %144 = arith.addi %64, %143 : vector<1x256xi32>
    %c3_i32_56 = arith.constant 3 : i32
    %145 = vector.broadcast %c3_i32_56 : i32 to vector<1x256xi32>
    %146 = arith.cmpi sge, %144, %145 : vector<1x256xi32>
    %c5_i32_57 = arith.constant 5 : i32
    %147 = vector.broadcast %c5_i32_57 : i32 to vector<1x256xi32>
    %148 = arith.addi %64, %147 : vector<1x256xi32>
    %c19_i32_58 = arith.constant 19 : i32
    %149 = vector.broadcast %c19_i32_58 : i32 to vector<1x256xi32>
    %150 = arith.cmpi slt, %148, %149 : vector<1x256xi32>
    %151 = arith.andi %146, %150 : vector<1x256xi1>
    %152 = vector.extract_strided_slice %66 {offsets = [0, 5], sizes = [1, 256], strides = [1, 1]} : vector<1x262xf32> to vector<1x256xf32>
    %cst_59 = arith.constant 0.000000e+00 : f32
    %153 = vector.broadcast %cst_59 : f32 to vector<1x256xf32>
    %154 = arith.select %151, %152, %153 : vector<1x256xi1>, vector<1x256xf32>
    %155 = vector.extract_strided_slice %67 {offsets = [0, 5], sizes = [1, 256], strides = [1, 1]} : vector<1x262xf32> to vector<1x256xf32>
    %cst_60 = arith.constant 0.000000e+00 : f32
    %156 = vector.broadcast %cst_60 : f32 to vector<1x256xf32>
    %157 = arith.select %151, %155, %156 : vector<1x256xi1>, vector<1x256xf32>
    %c6_i32 = arith.constant 6 : i32
    %158 = vector.broadcast %c6_i32 : i32 to vector<1x256xi32>
    %159 = arith.addi %64, %158 : vector<1x256xi32>
    %c3_i32_61 = arith.constant 3 : i32
    %160 = vector.broadcast %c3_i32_61 : i32 to vector<1x256xi32>
    %161 = arith.cmpi sge, %159, %160 : vector<1x256xi32>
    %c6_i32_62 = arith.constant 6 : i32
    %162 = vector.broadcast %c6_i32_62 : i32 to vector<1x256xi32>
    %163 = arith.addi %64, %162 : vector<1x256xi32>
    %c19_i32_63 = arith.constant 19 : i32
    %164 = vector.broadcast %c19_i32_63 : i32 to vector<1x256xi32>
    %165 = arith.cmpi slt, %163, %164 : vector<1x256xi32>
    %166 = arith.andi %161, %165 : vector<1x256xi1>
    %167 = vector.extract_strided_slice %66 {offsets = [0, 6], sizes = [1, 256], strides = [1, 1]} : vector<1x262xf32> to vector<1x256xf32>
    %cst_64 = arith.constant 0.000000e+00 : f32
    %168 = vector.broadcast %cst_64 : f32 to vector<1x256xf32>
    %169 = arith.select %166, %167, %168 : vector<1x256xi1>, vector<1x256xf32>
    %170 = vector.extract_strided_slice %67 {offsets = [0, 6], sizes = [1, 256], strides = [1, 1]} : vector<1x262xf32> to vector<1x256xf32>
    %cst_65 = arith.constant 0.000000e+00 : f32
    %171 = vector.broadcast %cst_65 : f32 to vector<1x256xf32>
    %172 = arith.select %166, %170, %171 : vector<1x256xi1>, vector<1x256xf32>
    %cst_66 = arith.constant 0.000000e+00 : f32
    %173 = vector.broadcast %cst_66 : f32 to vector<1x48xf32>
    %cst_67 = arith.constant 0.000000e+00 : f32
    %174 = vector.broadcast %cst_67 : f32 to vector<1x256xf32>
    %cst_68 = arith.constant 0.000000e+00 : f32
    %175 = vector.broadcast %cst_68 : f32 to vector<1x256xf32>
    %c0_69 = arith.constant 0 : index
    %176 = memref.load %arg8[%c0_69] : memref<98xf32, #tpu.memory_space<smem>>
    %177 = vector.broadcast %176 : f32 to vector<1x256xf32>
    %178 = arith.mulf %177, %79 : vector<1x256xf32>
    %179 = arith.addf %175, %178 : vector<1x256xf32>
    %c49 = arith.constant 49 : index
    %180 = memref.load %arg8[%c49] : memref<98xf32, #tpu.memory_space<smem>>
    %181 = vector.broadcast %180 : f32 to vector<1x256xf32>
    %182 = arith.mulf %181, %82 : vector<1x256xf32>
    %183 = arith.addf %179, %182 : vector<1x256xf32>
    %c1 = arith.constant 1 : index
    %184 = memref.load %arg8[%c1] : memref<98xf32, #tpu.memory_space<smem>>
    %185 = vector.broadcast %184 : f32 to vector<1x256xf32>
    %186 = arith.mulf %185, %94 : vector<1x256xf32>
    %187 = arith.addf %183, %186 : vector<1x256xf32>
    %c50 = arith.constant 50 : index
    %188 = memref.load %arg8[%c50] : memref<98xf32, #tpu.memory_space<smem>>
    %189 = vector.broadcast %188 : f32 to vector<1x256xf32>
    %190 = arith.mulf %189, %97 : vector<1x256xf32>
    %191 = arith.addf %187, %190 : vector<1x256xf32>
    %c2 = arith.constant 2 : index
    %192 = memref.load %arg8[%c2] : memref<98xf32, #tpu.memory_space<smem>>
    %193 = vector.broadcast %192 : f32 to vector<1x256xf32>
    %194 = arith.mulf %193, %109 : vector<1x256xf32>
    %195 = arith.addf %191, %194 : vector<1x256xf32>
    %c51 = arith.constant 51 : index
    %196 = memref.load %arg8[%c51] : memref<98xf32, #tpu.memory_space<smem>>
    %197 = vector.broadcast %196 : f32 to vector<1x256xf32>
    %198 = arith.mulf %197, %112 : vector<1x256xf32>
    %199 = arith.addf %195, %198 : vector<1x256xf32>
    %c3 = arith.constant 3 : index
    %200 = memref.load %arg8[%c3] : memref<98xf32, #tpu.memory_space<smem>>
    %201 = vector.broadcast %200 : f32 to vector<1x256xf32>
    %202 = arith.mulf %201, %124 : vector<1x256xf32>
    %203 = arith.addf %199, %202 : vector<1x256xf32>
    %c52 = arith.constant 52 : index
    %204 = memref.load %arg8[%c52] : memref<98xf32, #tpu.memory_space<smem>>
    %205 = vector.broadcast %204 : f32 to vector<1x256xf32>
    %206 = arith.mulf %205, %127 : vector<1x256xf32>
    %207 = arith.addf %203, %206 : vector<1x256xf32>
    %c4 = arith.constant 4 : index
    %208 = memref.load %arg8[%c4] : memref<98xf32, #tpu.memory_space<smem>>
    %209 = vector.broadcast %208 : f32 to vector<1x256xf32>
    %210 = arith.mulf %209, %139 : vector<1x256xf32>
    %211 = arith.addf %207, %210 : vector<1x256xf32>
    %c53 = arith.constant 53 : index
    %212 = memref.load %arg8[%c53] : memref<98xf32, #tpu.memory_space<smem>>
    %213 = vector.broadcast %212 : f32 to vector<1x256xf32>
    %214 = arith.mulf %213, %142 : vector<1x256xf32>
    %215 = arith.addf %211, %214 : vector<1x256xf32>
    %c5 = arith.constant 5 : index
    %216 = memref.load %arg8[%c5] : memref<98xf32, #tpu.memory_space<smem>>
    %217 = vector.broadcast %216 : f32 to vector<1x256xf32>
    %218 = arith.mulf %217, %154 : vector<1x256xf32>
    %219 = arith.addf %215, %218 : vector<1x256xf32>
    %c54 = arith.constant 54 : index
    %220 = memref.load %arg8[%c54] : memref<98xf32, #tpu.memory_space<smem>>
    %221 = vector.broadcast %220 : f32 to vector<1x256xf32>
    %222 = arith.mulf %221, %157 : vector<1x256xf32>
    %223 = arith.addf %219, %222 : vector<1x256xf32>
    %c6 = arith.constant 6 : index
    %224 = memref.load %arg8[%c6] : memref<98xf32, #tpu.memory_space<smem>>
    %225 = vector.broadcast %224 : f32 to vector<1x256xf32>
    %226 = arith.mulf %225, %169 : vector<1x256xf32>
    %227 = arith.addf %223, %226 : vector<1x256xf32>
    %c55 = arith.constant 55 : index
    %228 = memref.load %arg8[%c55] : memref<98xf32, #tpu.memory_space<smem>>
    %229 = vector.broadcast %228 : f32 to vector<1x256xf32>
    %230 = arith.mulf %229, %172 : vector<1x256xf32>
    %231 = arith.addf %227, %230 : vector<1x256xf32>
    %232 = tpu.concatenate %173, %231, %173 in 1 : vector<1x48xf32>, vector<1x256xf32>, vector<1x48xf32> -> vector<1x352xf32>
    %233 = vector.extract_strided_slice %232 {offsets = [0, 0], sizes = [1, 256], strides = [1, 1]} : vector<1x352xf32> to vector<1x256xf32>
    %234 = arith.addf %174, %233 : vector<1x256xf32>
    %cst_70 = arith.constant 0.000000e+00 : f32
    %235 = vector.broadcast %cst_70 : f32 to vector<1x256xf32>
    %c7 = arith.constant 7 : index
    %236 = memref.load %arg8[%c7] : memref<98xf32, #tpu.memory_space<smem>>
    %237 = vector.broadcast %236 : f32 to vector<1x256xf32>
    %238 = arith.mulf %237, %79 : vector<1x256xf32>
    %239 = arith.addf %235, %238 : vector<1x256xf32>
    %c56 = arith.constant 56 : index
    %240 = memref.load %arg8[%c56] : memref<98xf32, #tpu.memory_space<smem>>
    %241 = vector.broadcast %240 : f32 to vector<1x256xf32>
    %242 = arith.mulf %241, %82 : vector<1x256xf32>
    %243 = arith.addf %239, %242 : vector<1x256xf32>
    %c8 = arith.constant 8 : index
    %244 = memref.load %arg8[%c8] : memref<98xf32, #tpu.memory_space<smem>>
    %245 = vector.broadcast %244 : f32 to vector<1x256xf32>
    %246 = arith.mulf %245, %94 : vector<1x256xf32>
    %247 = arith.addf %243, %246 : vector<1x256xf32>
    %c57 = arith.constant 57 : index
    %248 = memref.load %arg8[%c57] : memref<98xf32, #tpu.memory_space<smem>>
    %249 = vector.broadcast %248 : f32 to vector<1x256xf32>
    %250 = arith.mulf %249, %97 : vector<1x256xf32>
    %251 = arith.addf %247, %250 : vector<1x256xf32>
    %c9 = arith.constant 9 : index
    %252 = memref.load %arg8[%c9] : memref<98xf32, #tpu.memory_space<smem>>
    %253 = vector.broadcast %252 : f32 to vector<1x256xf32>
    %254 = arith.mulf %253, %109 : vector<1x256xf32>
    %255 = arith.addf %251, %254 : vector<1x256xf32>
    %c58 = arith.constant 58 : index
    %256 = memref.load %arg8[%c58] : memref<98xf32, #tpu.memory_space<smem>>
    %257 = vector.broadcast %256 : f32 to vector<1x256xf32>
    %258 = arith.mulf %257, %112 : vector<1x256xf32>
    %259 = arith.addf %255, %258 : vector<1x256xf32>
    %c10 = arith.constant 10 : index
    %260 = memref.load %arg8[%c10] : memref<98xf32, #tpu.memory_space<smem>>
    %261 = vector.broadcast %260 : f32 to vector<1x256xf32>
    %262 = arith.mulf %261, %124 : vector<1x256xf32>
    %263 = arith.addf %259, %262 : vector<1x256xf32>
    %c59 = arith.constant 59 : index
    %264 = memref.load %arg8[%c59] : memref<98xf32, #tpu.memory_space<smem>>
    %265 = vector.broadcast %264 : f32 to vector<1x256xf32>
    %266 = arith.mulf %265, %127 : vector<1x256xf32>
    %267 = arith.addf %263, %266 : vector<1x256xf32>
    %c11 = arith.constant 11 : index
    %268 = memref.load %arg8[%c11] : memref<98xf32, #tpu.memory_space<smem>>
    %269 = vector.broadcast %268 : f32 to vector<1x256xf32>
    %270 = arith.mulf %269, %139 : vector<1x256xf32>
    %271 = arith.addf %267, %270 : vector<1x256xf32>
    %c60 = arith.constant 60 : index
    %272 = memref.load %arg8[%c60] : memref<98xf32, #tpu.memory_space<smem>>
    %273 = vector.broadcast %272 : f32 to vector<1x256xf32>
    %274 = arith.mulf %273, %142 : vector<1x256xf32>
    %275 = arith.addf %271, %274 : vector<1x256xf32>
    %c12 = arith.constant 12 : index
    %276 = memref.load %arg8[%c12] : memref<98xf32, #tpu.memory_space<smem>>
    %277 = vector.broadcast %276 : f32 to vector<1x256xf32>
    %278 = arith.mulf %277, %154 : vector<1x256xf32>
    %279 = arith.addf %275, %278 : vector<1x256xf32>
    %c61 = arith.constant 61 : index
    %280 = memref.load %arg8[%c61] : memref<98xf32, #tpu.memory_space<smem>>
    %281 = vector.broadcast %280 : f32 to vector<1x256xf32>
    %282 = arith.mulf %281, %157 : vector<1x256xf32>
    %283 = arith.addf %279, %282 : vector<1x256xf32>
    %c13 = arith.constant 13 : index
    %284 = memref.load %arg8[%c13] : memref<98xf32, #tpu.memory_space<smem>>
    %285 = vector.broadcast %284 : f32 to vector<1x256xf32>
    %286 = arith.mulf %285, %169 : vector<1x256xf32>
    %287 = arith.addf %283, %286 : vector<1x256xf32>
    %c62 = arith.constant 62 : index
    %288 = memref.load %arg8[%c62] : memref<98xf32, #tpu.memory_space<smem>>
    %289 = vector.broadcast %288 : f32 to vector<1x256xf32>
    %290 = arith.mulf %289, %172 : vector<1x256xf32>
    %291 = arith.addf %287, %290 : vector<1x256xf32>
    %292 = tpu.concatenate %173, %291, %173 in 1 : vector<1x48xf32>, vector<1x256xf32>, vector<1x48xf32> -> vector<1x352xf32>
    %293 = vector.extract_strided_slice %292 {offsets = [0, 16], sizes = [1, 256], strides = [1, 1]} : vector<1x352xf32> to vector<1x256xf32>
    %294 = arith.addf %234, %293 : vector<1x256xf32>
    %cst_71 = arith.constant 0.000000e+00 : f32
    %295 = vector.broadcast %cst_71 : f32 to vector<1x256xf32>
    %c14 = arith.constant 14 : index
    %296 = memref.load %arg8[%c14] : memref<98xf32, #tpu.memory_space<smem>>
    %297 = vector.broadcast %296 : f32 to vector<1x256xf32>
    %298 = arith.mulf %297, %79 : vector<1x256xf32>
    %299 = arith.addf %295, %298 : vector<1x256xf32>
    %c63 = arith.constant 63 : index
    %300 = memref.load %arg8[%c63] : memref<98xf32, #tpu.memory_space<smem>>
    %301 = vector.broadcast %300 : f32 to vector<1x256xf32>
    %302 = arith.mulf %301, %82 : vector<1x256xf32>
    %303 = arith.addf %299, %302 : vector<1x256xf32>
    %c15 = arith.constant 15 : index
    %304 = memref.load %arg8[%c15] : memref<98xf32, #tpu.memory_space<smem>>
    %305 = vector.broadcast %304 : f32 to vector<1x256xf32>
    %306 = arith.mulf %305, %94 : vector<1x256xf32>
    %307 = arith.addf %303, %306 : vector<1x256xf32>
    %c64 = arith.constant 64 : index
    %308 = memref.load %arg8[%c64] : memref<98xf32, #tpu.memory_space<smem>>
    %309 = vector.broadcast %308 : f32 to vector<1x256xf32>
    %310 = arith.mulf %309, %97 : vector<1x256xf32>
    %311 = arith.addf %307, %310 : vector<1x256xf32>
    %c16 = arith.constant 16 : index
    %312 = memref.load %arg8[%c16] : memref<98xf32, #tpu.memory_space<smem>>
    %313 = vector.broadcast %312 : f32 to vector<1x256xf32>
    %314 = arith.mulf %313, %109 : vector<1x256xf32>
    %315 = arith.addf %311, %314 : vector<1x256xf32>
    %c65 = arith.constant 65 : index
    %316 = memref.load %arg8[%c65] : memref<98xf32, #tpu.memory_space<smem>>
    %317 = vector.broadcast %316 : f32 to vector<1x256xf32>
    %318 = arith.mulf %317, %112 : vector<1x256xf32>
    %319 = arith.addf %315, %318 : vector<1x256xf32>
    %c17 = arith.constant 17 : index
    %320 = memref.load %arg8[%c17] : memref<98xf32, #tpu.memory_space<smem>>
    %321 = vector.broadcast %320 : f32 to vector<1x256xf32>
    %322 = arith.mulf %321, %124 : vector<1x256xf32>
    %323 = arith.addf %319, %322 : vector<1x256xf32>
    %c66 = arith.constant 66 : index
    %324 = memref.load %arg8[%c66] : memref<98xf32, #tpu.memory_space<smem>>
    %325 = vector.broadcast %324 : f32 to vector<1x256xf32>
    %326 = arith.mulf %325, %127 : vector<1x256xf32>
    %327 = arith.addf %323, %326 : vector<1x256xf32>
    %c18 = arith.constant 18 : index
    %328 = memref.load %arg8[%c18] : memref<98xf32, #tpu.memory_space<smem>>
    %329 = vector.broadcast %328 : f32 to vector<1x256xf32>
    %330 = arith.mulf %329, %139 : vector<1x256xf32>
    %331 = arith.addf %327, %330 : vector<1x256xf32>
    %c67 = arith.constant 67 : index
    %332 = memref.load %arg8[%c67] : memref<98xf32, #tpu.memory_space<smem>>
    %333 = vector.broadcast %332 : f32 to vector<1x256xf32>
    %334 = arith.mulf %333, %142 : vector<1x256xf32>
    %335 = arith.addf %331, %334 : vector<1x256xf32>
    %c19 = arith.constant 19 : index
    %336 = memref.load %arg8[%c19] : memref<98xf32, #tpu.memory_space<smem>>
    %337 = vector.broadcast %336 : f32 to vector<1x256xf32>
    %338 = arith.mulf %337, %154 : vector<1x256xf32>
    %339 = arith.addf %335, %338 : vector<1x256xf32>
    %c68 = arith.constant 68 : index
    %340 = memref.load %arg8[%c68] : memref<98xf32, #tpu.memory_space<smem>>
    %341 = vector.broadcast %340 : f32 to vector<1x256xf32>
    %342 = arith.mulf %341, %157 : vector<1x256xf32>
    %343 = arith.addf %339, %342 : vector<1x256xf32>
    %c20 = arith.constant 20 : index
    %344 = memref.load %arg8[%c20] : memref<98xf32, #tpu.memory_space<smem>>
    %345 = vector.broadcast %344 : f32 to vector<1x256xf32>
    %346 = arith.mulf %345, %169 : vector<1x256xf32>
    %347 = arith.addf %343, %346 : vector<1x256xf32>
    %c69 = arith.constant 69 : index
    %348 = memref.load %arg8[%c69] : memref<98xf32, #tpu.memory_space<smem>>
    %349 = vector.broadcast %348 : f32 to vector<1x256xf32>
    %350 = arith.mulf %349, %172 : vector<1x256xf32>
    %351 = arith.addf %347, %350 : vector<1x256xf32>
    %352 = tpu.concatenate %173, %351, %173 in 1 : vector<1x48xf32>, vector<1x256xf32>, vector<1x48xf32> -> vector<1x352xf32>
    %353 = vector.extract_strided_slice %352 {offsets = [0, 32], sizes = [1, 256], strides = [1, 1]} : vector<1x352xf32> to vector<1x256xf32>
    %354 = arith.addf %294, %353 : vector<1x256xf32>
    %cst_72 = arith.constant 0.000000e+00 : f32
    %355 = vector.broadcast %cst_72 : f32 to vector<1x256xf32>
    %c21 = arith.constant 21 : index
    %356 = memref.load %arg8[%c21] : memref<98xf32, #tpu.memory_space<smem>>
    %357 = vector.broadcast %356 : f32 to vector<1x256xf32>
    %358 = arith.mulf %357, %79 : vector<1x256xf32>
    %359 = arith.addf %355, %358 : vector<1x256xf32>
    %c70 = arith.constant 70 : index
    %360 = memref.load %arg8[%c70] : memref<98xf32, #tpu.memory_space<smem>>
    %361 = vector.broadcast %360 : f32 to vector<1x256xf32>
    %362 = arith.mulf %361, %82 : vector<1x256xf32>
    %363 = arith.addf %359, %362 : vector<1x256xf32>
    %c22 = arith.constant 22 : index
    %364 = memref.load %arg8[%c22] : memref<98xf32, #tpu.memory_space<smem>>
    %365 = vector.broadcast %364 : f32 to vector<1x256xf32>
    %366 = arith.mulf %365, %94 : vector<1x256xf32>
    %367 = arith.addf %363, %366 : vector<1x256xf32>
    %c71 = arith.constant 71 : index
    %368 = memref.load %arg8[%c71] : memref<98xf32, #tpu.memory_space<smem>>
    %369 = vector.broadcast %368 : f32 to vector<1x256xf32>
    %370 = arith.mulf %369, %97 : vector<1x256xf32>
    %371 = arith.addf %367, %370 : vector<1x256xf32>
    %c23 = arith.constant 23 : index
    %372 = memref.load %arg8[%c23] : memref<98xf32, #tpu.memory_space<smem>>
    %373 = vector.broadcast %372 : f32 to vector<1x256xf32>
    %374 = arith.mulf %373, %109 : vector<1x256xf32>
    %375 = arith.addf %371, %374 : vector<1x256xf32>
    %c72 = arith.constant 72 : index
    %376 = memref.load %arg8[%c72] : memref<98xf32, #tpu.memory_space<smem>>
    %377 = vector.broadcast %376 : f32 to vector<1x256xf32>
    %378 = arith.mulf %377, %112 : vector<1x256xf32>
    %379 = arith.addf %375, %378 : vector<1x256xf32>
    %c24 = arith.constant 24 : index
    %380 = memref.load %arg8[%c24] : memref<98xf32, #tpu.memory_space<smem>>
    %381 = vector.broadcast %380 : f32 to vector<1x256xf32>
    %382 = arith.mulf %381, %124 : vector<1x256xf32>
    %383 = arith.addf %379, %382 : vector<1x256xf32>
    %c73 = arith.constant 73 : index
    %384 = memref.load %arg8[%c73] : memref<98xf32, #tpu.memory_space<smem>>
    %385 = vector.broadcast %384 : f32 to vector<1x256xf32>
    %386 = arith.mulf %385, %127 : vector<1x256xf32>
    %387 = arith.addf %383, %386 : vector<1x256xf32>
    %c25 = arith.constant 25 : index
    %388 = memref.load %arg8[%c25] : memref<98xf32, #tpu.memory_space<smem>>
    %389 = vector.broadcast %388 : f32 to vector<1x256xf32>
    %390 = arith.mulf %389, %139 : vector<1x256xf32>
    %391 = arith.addf %387, %390 : vector<1x256xf32>
    %c74 = arith.constant 74 : index
    %392 = memref.load %arg8[%c74] : memref<98xf32, #tpu.memory_space<smem>>
    %393 = vector.broadcast %392 : f32 to vector<1x256xf32>
    %394 = arith.mulf %393, %142 : vector<1x256xf32>
    %395 = arith.addf %391, %394 : vector<1x256xf32>
    %c26 = arith.constant 26 : index
    %396 = memref.load %arg8[%c26] : memref<98xf32, #tpu.memory_space<smem>>
    %397 = vector.broadcast %396 : f32 to vector<1x256xf32>
    %398 = arith.mulf %397, %154 : vector<1x256xf32>
    %399 = arith.addf %395, %398 : vector<1x256xf32>
    %c75 = arith.constant 75 : index
    %400 = memref.load %arg8[%c75] : memref<98xf32, #tpu.memory_space<smem>>
    %401 = vector.broadcast %400 : f32 to vector<1x256xf32>
    %402 = arith.mulf %401, %157 : vector<1x256xf32>
    %403 = arith.addf %399, %402 : vector<1x256xf32>
    %c27 = arith.constant 27 : index
    %404 = memref.load %arg8[%c27] : memref<98xf32, #tpu.memory_space<smem>>
    %405 = vector.broadcast %404 : f32 to vector<1x256xf32>
    %406 = arith.mulf %405, %169 : vector<1x256xf32>
    %407 = arith.addf %403, %406 : vector<1x256xf32>
    %c76 = arith.constant 76 : index
    %408 = memref.load %arg8[%c76] : memref<98xf32, #tpu.memory_space<smem>>
    %409 = vector.broadcast %408 : f32 to vector<1x256xf32>
    %410 = arith.mulf %409, %172 : vector<1x256xf32>
    %411 = arith.addf %407, %410 : vector<1x256xf32>
    %412 = tpu.concatenate %173, %411, %173 in 1 : vector<1x48xf32>, vector<1x256xf32>, vector<1x48xf32> -> vector<1x352xf32>
    %413 = vector.extract_strided_slice %412 {offsets = [0, 48], sizes = [1, 256], strides = [1, 1]} : vector<1x352xf32> to vector<1x256xf32>
    %414 = arith.addf %354, %413 : vector<1x256xf32>
    %cst_73 = arith.constant 0.000000e+00 : f32
    %415 = vector.broadcast %cst_73 : f32 to vector<1x256xf32>
    %c28 = arith.constant 28 : index
    %416 = memref.load %arg8[%c28] : memref<98xf32, #tpu.memory_space<smem>>
    %417 = vector.broadcast %416 : f32 to vector<1x256xf32>
    %418 = arith.mulf %417, %79 : vector<1x256xf32>
    %419 = arith.addf %415, %418 : vector<1x256xf32>
    %c77 = arith.constant 77 : index
    %420 = memref.load %arg8[%c77] : memref<98xf32, #tpu.memory_space<smem>>
    %421 = vector.broadcast %420 : f32 to vector<1x256xf32>
    %422 = arith.mulf %421, %82 : vector<1x256xf32>
    %423 = arith.addf %419, %422 : vector<1x256xf32>
    %c29 = arith.constant 29 : index
    %424 = memref.load %arg8[%c29] : memref<98xf32, #tpu.memory_space<smem>>
    %425 = vector.broadcast %424 : f32 to vector<1x256xf32>
    %426 = arith.mulf %425, %94 : vector<1x256xf32>
    %427 = arith.addf %423, %426 : vector<1x256xf32>
    %c78 = arith.constant 78 : index
    %428 = memref.load %arg8[%c78] : memref<98xf32, #tpu.memory_space<smem>>
    %429 = vector.broadcast %428 : f32 to vector<1x256xf32>
    %430 = arith.mulf %429, %97 : vector<1x256xf32>
    %431 = arith.addf %427, %430 : vector<1x256xf32>
    %c30 = arith.constant 30 : index
    %432 = memref.load %arg8[%c30] : memref<98xf32, #tpu.memory_space<smem>>
    %433 = vector.broadcast %432 : f32 to vector<1x256xf32>
    %434 = arith.mulf %433, %109 : vector<1x256xf32>
    %435 = arith.addf %431, %434 : vector<1x256xf32>
    %c79 = arith.constant 79 : index
    %436 = memref.load %arg8[%c79] : memref<98xf32, #tpu.memory_space<smem>>
    %437 = vector.broadcast %436 : f32 to vector<1x256xf32>
    %438 = arith.mulf %437, %112 : vector<1x256xf32>
    %439 = arith.addf %435, %438 : vector<1x256xf32>
    %c31 = arith.constant 31 : index
    %440 = memref.load %arg8[%c31] : memref<98xf32, #tpu.memory_space<smem>>
    %441 = vector.broadcast %440 : f32 to vector<1x256xf32>
    %442 = arith.mulf %441, %124 : vector<1x256xf32>
    %443 = arith.addf %439, %442 : vector<1x256xf32>
    %c80 = arith.constant 80 : index
    %444 = memref.load %arg8[%c80] : memref<98xf32, #tpu.memory_space<smem>>
    %445 = vector.broadcast %444 : f32 to vector<1x256xf32>
    %446 = arith.mulf %445, %127 : vector<1x256xf32>
    %447 = arith.addf %443, %446 : vector<1x256xf32>
    %c32 = arith.constant 32 : index
    %448 = memref.load %arg8[%c32] : memref<98xf32, #tpu.memory_space<smem>>
    %449 = vector.broadcast %448 : f32 to vector<1x256xf32>
    %450 = arith.mulf %449, %139 : vector<1x256xf32>
    %451 = arith.addf %447, %450 : vector<1x256xf32>
    %c81 = arith.constant 81 : index
    %452 = memref.load %arg8[%c81] : memref<98xf32, #tpu.memory_space<smem>>
    %453 = vector.broadcast %452 : f32 to vector<1x256xf32>
    %454 = arith.mulf %453, %142 : vector<1x256xf32>
    %455 = arith.addf %451, %454 : vector<1x256xf32>
    %c33 = arith.constant 33 : index
    %456 = memref.load %arg8[%c33] : memref<98xf32, #tpu.memory_space<smem>>
    %457 = vector.broadcast %456 : f32 to vector<1x256xf32>
    %458 = arith.mulf %457, %154 : vector<1x256xf32>
    %459 = arith.addf %455, %458 : vector<1x256xf32>
    %c82 = arith.constant 82 : index
    %460 = memref.load %arg8[%c82] : memref<98xf32, #tpu.memory_space<smem>>
    %461 = vector.broadcast %460 : f32 to vector<1x256xf32>
    %462 = arith.mulf %461, %157 : vector<1x256xf32>
    %463 = arith.addf %459, %462 : vector<1x256xf32>
    %c34 = arith.constant 34 : index
    %464 = memref.load %arg8[%c34] : memref<98xf32, #tpu.memory_space<smem>>
    %465 = vector.broadcast %464 : f32 to vector<1x256xf32>
    %466 = arith.mulf %465, %169 : vector<1x256xf32>
    %467 = arith.addf %463, %466 : vector<1x256xf32>
    %c83 = arith.constant 83 : index
    %468 = memref.load %arg8[%c83] : memref<98xf32, #tpu.memory_space<smem>>
    %469 = vector.broadcast %468 : f32 to vector<1x256xf32>
    %470 = arith.mulf %469, %172 : vector<1x256xf32>
    %471 = arith.addf %467, %470 : vector<1x256xf32>
    %472 = tpu.concatenate %173, %471, %173 in 1 : vector<1x48xf32>, vector<1x256xf32>, vector<1x48xf32> -> vector<1x352xf32>
    %473 = vector.extract_strided_slice %472 {offsets = [0, 64], sizes = [1, 256], strides = [1, 1]} : vector<1x352xf32> to vector<1x256xf32>
    %474 = arith.addf %414, %473 : vector<1x256xf32>
    %cst_74 = arith.constant 0.000000e+00 : f32
    %475 = vector.broadcast %cst_74 : f32 to vector<1x256xf32>
    %c35 = arith.constant 35 : index
    %476 = memref.load %arg8[%c35] : memref<98xf32, #tpu.memory_space<smem>>
    %477 = vector.broadcast %476 : f32 to vector<1x256xf32>
    %478 = arith.mulf %477, %79 : vector<1x256xf32>
    %479 = arith.addf %475, %478 : vector<1x256xf32>
    %c84 = arith.constant 84 : index
    %480 = memref.load %arg8[%c84] : memref<98xf32, #tpu.memory_space<smem>>
    %481 = vector.broadcast %480 : f32 to vector<1x256xf32>
    %482 = arith.mulf %481, %82 : vector<1x256xf32>
    %483 = arith.addf %479, %482 : vector<1x256xf32>
    %c36 = arith.constant 36 : index
    %484 = memref.load %arg8[%c36] : memref<98xf32, #tpu.memory_space<smem>>
    %485 = vector.broadcast %484 : f32 to vector<1x256xf32>
    %486 = arith.mulf %485, %94 : vector<1x256xf32>
    %487 = arith.addf %483, %486 : vector<1x256xf32>
    %c85 = arith.constant 85 : index
    %488 = memref.load %arg8[%c85] : memref<98xf32, #tpu.memory_space<smem>>
    %489 = vector.broadcast %488 : f32 to vector<1x256xf32>
    %490 = arith.mulf %489, %97 : vector<1x256xf32>
    %491 = arith.addf %487, %490 : vector<1x256xf32>
    %c37 = arith.constant 37 : index
    %492 = memref.load %arg8[%c37] : memref<98xf32, #tpu.memory_space<smem>>
    %493 = vector.broadcast %492 : f32 to vector<1x256xf32>
    %494 = arith.mulf %493, %109 : vector<1x256xf32>
    %495 = arith.addf %491, %494 : vector<1x256xf32>
    %c86 = arith.constant 86 : index
    %496 = memref.load %arg8[%c86] : memref<98xf32, #tpu.memory_space<smem>>
    %497 = vector.broadcast %496 : f32 to vector<1x256xf32>
    %498 = arith.mulf %497, %112 : vector<1x256xf32>
    %499 = arith.addf %495, %498 : vector<1x256xf32>
    %c38 = arith.constant 38 : index
    %500 = memref.load %arg8[%c38] : memref<98xf32, #tpu.memory_space<smem>>
    %501 = vector.broadcast %500 : f32 to vector<1x256xf32>
    %502 = arith.mulf %501, %124 : vector<1x256xf32>
    %503 = arith.addf %499, %502 : vector<1x256xf32>
    %c87 = arith.constant 87 : index
    %504 = memref.load %arg8[%c87] : memref<98xf32, #tpu.memory_space<smem>>
    %505 = vector.broadcast %504 : f32 to vector<1x256xf32>
    %506 = arith.mulf %505, %127 : vector<1x256xf32>
    %507 = arith.addf %503, %506 : vector<1x256xf32>
    %c39 = arith.constant 39 : index
    %508 = memref.load %arg8[%c39] : memref<98xf32, #tpu.memory_space<smem>>
    %509 = vector.broadcast %508 : f32 to vector<1x256xf32>
    %510 = arith.mulf %509, %139 : vector<1x256xf32>
    %511 = arith.addf %507, %510 : vector<1x256xf32>
    %c88 = arith.constant 88 : index
    %512 = memref.load %arg8[%c88] : memref<98xf32, #tpu.memory_space<smem>>
    %513 = vector.broadcast %512 : f32 to vector<1x256xf32>
    %514 = arith.mulf %513, %142 : vector<1x256xf32>
    %515 = arith.addf %511, %514 : vector<1x256xf32>
    %c40 = arith.constant 40 : index
    %516 = memref.load %arg8[%c40] : memref<98xf32, #tpu.memory_space<smem>>
    %517 = vector.broadcast %516 : f32 to vector<1x256xf32>
    %518 = arith.mulf %517, %154 : vector<1x256xf32>
    %519 = arith.addf %515, %518 : vector<1x256xf32>
    %c89 = arith.constant 89 : index
    %520 = memref.load %arg8[%c89] : memref<98xf32, #tpu.memory_space<smem>>
    %521 = vector.broadcast %520 : f32 to vector<1x256xf32>
    %522 = arith.mulf %521, %157 : vector<1x256xf32>
    %523 = arith.addf %519, %522 : vector<1x256xf32>
    %c41 = arith.constant 41 : index
    %524 = memref.load %arg8[%c41] : memref<98xf32, #tpu.memory_space<smem>>
    %525 = vector.broadcast %524 : f32 to vector<1x256xf32>
    %526 = arith.mulf %525, %169 : vector<1x256xf32>
    %527 = arith.addf %523, %526 : vector<1x256xf32>
    %c90 = arith.constant 90 : index
    %528 = memref.load %arg8[%c90] : memref<98xf32, #tpu.memory_space<smem>>
    %529 = vector.broadcast %528 : f32 to vector<1x256xf32>
    %530 = arith.mulf %529, %172 : vector<1x256xf32>
    %531 = arith.addf %527, %530 : vector<1x256xf32>
    %532 = tpu.concatenate %173, %531, %173 in 1 : vector<1x48xf32>, vector<1x256xf32>, vector<1x48xf32> -> vector<1x352xf32>
    %533 = vector.extract_strided_slice %532 {offsets = [0, 80], sizes = [1, 256], strides = [1, 1]} : vector<1x352xf32> to vector<1x256xf32>
    %534 = arith.addf %474, %533 : vector<1x256xf32>
    %cst_75 = arith.constant 0.000000e+00 : f32
    %535 = vector.broadcast %cst_75 : f32 to vector<1x256xf32>
    %c42 = arith.constant 42 : index
    %536 = memref.load %arg8[%c42] : memref<98xf32, #tpu.memory_space<smem>>
    %537 = vector.broadcast %536 : f32 to vector<1x256xf32>
    %538 = arith.mulf %537, %79 : vector<1x256xf32>
    %539 = arith.addf %535, %538 : vector<1x256xf32>
    %c91 = arith.constant 91 : index
    %540 = memref.load %arg8[%c91] : memref<98xf32, #tpu.memory_space<smem>>
    %541 = vector.broadcast %540 : f32 to vector<1x256xf32>
    %542 = arith.mulf %541, %82 : vector<1x256xf32>
    %543 = arith.addf %539, %542 : vector<1x256xf32>
    %c43 = arith.constant 43 : index
    %544 = memref.load %arg8[%c43] : memref<98xf32, #tpu.memory_space<smem>>
    %545 = vector.broadcast %544 : f32 to vector<1x256xf32>
    %546 = arith.mulf %545, %94 : vector<1x256xf32>
    %547 = arith.addf %543, %546 : vector<1x256xf32>
    %c92 = arith.constant 92 : index
    %548 = memref.load %arg8[%c92] : memref<98xf32, #tpu.memory_space<smem>>
    %549 = vector.broadcast %548 : f32 to vector<1x256xf32>
    %550 = arith.mulf %549, %97 : vector<1x256xf32>
    %551 = arith.addf %547, %550 : vector<1x256xf32>
    %c44 = arith.constant 44 : index
    %552 = memref.load %arg8[%c44] : memref<98xf32, #tpu.memory_space<smem>>
    %553 = vector.broadcast %552 : f32 to vector<1x256xf32>
    %554 = arith.mulf %553, %109 : vector<1x256xf32>
    %555 = arith.addf %551, %554 : vector<1x256xf32>
    %c93 = arith.constant 93 : index
    %556 = memref.load %arg8[%c93] : memref<98xf32, #tpu.memory_space<smem>>
    %557 = vector.broadcast %556 : f32 to vector<1x256xf32>
    %558 = arith.mulf %557, %112 : vector<1x256xf32>
    %559 = arith.addf %555, %558 : vector<1x256xf32>
    %c45 = arith.constant 45 : index
    %560 = memref.load %arg8[%c45] : memref<98xf32, #tpu.memory_space<smem>>
    %561 = vector.broadcast %560 : f32 to vector<1x256xf32>
    %562 = arith.mulf %561, %124 : vector<1x256xf32>
    %563 = arith.addf %559, %562 : vector<1x256xf32>
    %c94 = arith.constant 94 : index
    %564 = memref.load %arg8[%c94] : memref<98xf32, #tpu.memory_space<smem>>
    %565 = vector.broadcast %564 : f32 to vector<1x256xf32>
    %566 = arith.mulf %565, %127 : vector<1x256xf32>
    %567 = arith.addf %563, %566 : vector<1x256xf32>
    %c46 = arith.constant 46 : index
    %568 = memref.load %arg8[%c46] : memref<98xf32, #tpu.memory_space<smem>>
    %569 = vector.broadcast %568 : f32 to vector<1x256xf32>
    %570 = arith.mulf %569, %139 : vector<1x256xf32>
    %571 = arith.addf %567, %570 : vector<1x256xf32>
    %c95 = arith.constant 95 : index
    %572 = memref.load %arg8[%c95] : memref<98xf32, #tpu.memory_space<smem>>
    %573 = vector.broadcast %572 : f32 to vector<1x256xf32>
    %574 = arith.mulf %573, %142 : vector<1x256xf32>
    %575 = arith.addf %571, %574 : vector<1x256xf32>
    %c47 = arith.constant 47 : index
    %576 = memref.load %arg8[%c47] : memref<98xf32, #tpu.memory_space<smem>>
    %577 = vector.broadcast %576 : f32 to vector<1x256xf32>
    %578 = arith.mulf %577, %154 : vector<1x256xf32>
    %579 = arith.addf %575, %578 : vector<1x256xf32>
    %c96 = arith.constant 96 : index
    %580 = memref.load %arg8[%c96] : memref<98xf32, #tpu.memory_space<smem>>
    %581 = vector.broadcast %580 : f32 to vector<1x256xf32>
    %582 = arith.mulf %581, %157 : vector<1x256xf32>
    %583 = arith.addf %579, %582 : vector<1x256xf32>
    %c48 = arith.constant 48 : index
    %584 = memref.load %arg8[%c48] : memref<98xf32, #tpu.memory_space<smem>>
    %585 = vector.broadcast %584 : f32 to vector<1x256xf32>
    %586 = arith.mulf %585, %169 : vector<1x256xf32>
    %587 = arith.addf %583, %586 : vector<1x256xf32>
    %c97 = arith.constant 97 : index
    %588 = memref.load %arg8[%c97] : memref<98xf32, #tpu.memory_space<smem>>
    %589 = vector.broadcast %588 : f32 to vector<1x256xf32>
    %590 = arith.mulf %589, %172 : vector<1x256xf32>
    %591 = arith.addf %587, %590 : vector<1x256xf32>
    %592 = tpu.concatenate %173, %591, %173 in 1 : vector<1x48xf32>, vector<1x256xf32>, vector<1x48xf32> -> vector<1x352xf32>
    %593 = vector.extract_strided_slice %592 {offsets = [0, 96], sizes = [1, 256], strides = [1, 1]} : vector<1x352xf32> to vector<1x256xf32>
    %594 = arith.addf %534, %593 : vector<1x256xf32>
    %595 = arith.negf %594 : vector<1x256xf32>
    %596 = math.exp %595 : vector<1x256xf32>
    %cst_76 = arith.constant 1.000000e+00 : f32
    %597 = vector.broadcast %cst_76 : f32 to vector<1x256xf32>
    %598 = arith.addf %597, %596 : vector<1x256xf32>
    %599 = arith.divf %597, %598 : vector<1x256xf32>
    %600 = vector.broadcast %599 : vector<1x256xf32> to vector<64x256xf32>
    %601 = arith.mulf %600, %41 : vector<64x256xf32>
    %602 = arith.addf %601, %13 : vector<64x256xf32>
    %603 = arith.negf %602 : vector<64x256xf32>
    %604 = math.exp %603 : vector<64x256xf32>
    %cst_77 = arith.constant 1.000000e+00 : f32
    %605 = vector.broadcast %cst_77 : f32 to vector<64x256xf32>
    %606 = arith.addf %605, %604 : vector<64x256xf32>
    %607 = arith.divf %605, %606 : vector<64x256xf32>
    %c0_78 = arith.constant 0 : index
    %c0_79 = arith.constant 0 : index
    %c0_80 = arith.constant 0 : index
    %608 = vector.load %arg9[%c0_78, %c0_79, %c0_80] : memref<1x64x256xf32, #tpu.memory_space<vmem>>, vector<1x64x256xf32>
    %609 = vector.shape_cast %608 : vector<1x64x256xf32> to vector<64x256xf32>
    %610 = vector.shape_cast %607 : vector<64x256xf32> to vector<1x64x256xf32>
    tpu.vector_store %arg9[%c0_78, %c0_79, %c0_80], %610 {strides = array<i32>} : memref<1x64x256xf32, #tpu.memory_space<vmem>>, vector<1x64x256xf32>,
    return
  }
  func.func @transform_0(%arg0: i32) -> (i32, i32, i32) {
    %c0_i32 = arith.constant 0 : i32
    %c0_i32_0 = arith.constant 0 : i32
    %c0_i32_1 = arith.constant 0 : i32
    return %arg0, %c0_i32, %c0_i32_0 : i32, i32, i32
  }
  func.func @transform_1(%arg0: i32) -> (i32, i32) {
    %c0_i32 = arith.constant 0 : i32
    %c0_i32_0 = arith.constant 0 : i32
    %c0_i32_1 = arith.constant 0 : i32
    return %c0_i32, %c0_i32_0 : i32, i32
  }
  func.func @transform_2(%arg0: i32) -> (i32, i32) {
    %c0_i32 = arith.constant 0 : i32
    %c0_i32_0 = arith.constant 0 : i32
    %c0_i32_1 = arith.constant 0 : i32
    return %c0_i32, %c0_i32_0 : i32, i32
  }
  func.func @transform_3(%arg0: i32) -> (i32, i32) {
    %c0_i32 = arith.constant 0 : i32
    %c0_i32_0 = arith.constant 0 : i32
    %c0_i32_1 = arith.constant 0 : i32
    return %c0_i32, %c0_i32_0 : i32, i32
  }
  func.func @transform_4(%arg0: i32) -> (i32, i32) {
    %c0_i32 = arith.constant 0 : i32
    %c0_i32_0 = arith.constant 0 : i32
    %c0_i32_1 = arith.constant 0 : i32
    return %c0_i32, %c0_i32_0 : i32, i32
  }
  func.func @transform_5(%arg0: i32) -> (i32, i32) {
    %c0_i32 = arith.constant 0 : i32
    %c0_i32_0 = arith.constant 0 : i32
    %c0_i32_1 = arith.constant 0 : i32
    return %c0_i32, %c0_i32_0 : i32, i32
  }
  func.func @transform_6(%arg0: i32) -> (i32, i32) {
    %c0_i32 = arith.constant 0 : i32
    %c0_i32_0 = arith.constant 0 : i32
    %c0_i32_1 = arith.constant 0 : i32
    return %c0_i32, %c0_i32_0 : i32, i32
  }
  func.func @transform_7(%arg0: i32) -> i32 {
    %c0_i32 = arith.constant 0 : i32
    %c0_i32_0 = arith.constant 0 : i32
    return %c0_i32 : i32
  }
  func.func @transform_8(%arg0: i32) -> (i32, i32, i32) {
    %c0_i32 = arith.constant 0 : i32
    %c0_i32_0 = arith.constant 0 : i32
    %c0_i32_1 = arith.constant 0 : i32
    return %arg0, %c0_i32, %c0_i32_0 : i32, i32, i32
  }
}

</mosaic_0001>

<llo_original>
// kernel: tpu_custom_call.1
$region0: #{tpu_custom_call.1}
  #allocation0 [shape = 'u32[]', space=smem, size = 0x4, offset = 0x4, fixed_abs, tag = 'smem constant byte address 0x4 - core index']
  #allocation1 [shape = 'u32[144,128]{1,0:T(1,128)}', space=vmem, size = 0x12000, scoped, tag = 'internal scratch']
  %s0 = inlined_call_operand.vmem [shape: f32[2,32,256], index: 0, kind: input, shape index: {}]
  %s1 = inlined_call_operand.vmem [shape: f32[128,32], index: 1, kind: input, shape index: {}]
  %s2 = inlined_call_operand.vmem [shape: f32[128,1], index: 2, kind: input, shape index: {}]
  %s3 = inlined_call_operand.vmem [shape: f32[64,64], index: 3, kind: input, shape index: {}]
  %s4 = inlined_call_operand.vmem [shape: f32[64,1], index: 4, kind: input, shape index: {}]
  %s5 = inlined_call_operand.vmem [shape: f32[4,64], index: 5, kind: input, shape index: {}]
  %s6 = inlined_call_operand.vmem [shape: f32[64,4], index: 6, kind: input, shape index: {}]
  %s7 = inlined_call_operand.vmem [shape: f32[98], index: 7, kind: input, shape index: {}]
  %s8 = inlined_call_operand.hbm [shape: f32[2,64,256], index: 8, kind: output, shape index: {}]
  %s9 = sld [smem:[#allocation0]]
  $region69: #{tpu_custom_call.1} parent=0
    _
  %s11 = ssub.s32 1, %s9
  %s12 = scalar_select 0, %s11, %s9
  $region1: #{tpu_custom_call.1} parent=0
    #allocation2 [shape = 'u8[512]{0}', space=smem, size = 0x200, scoped, tag = 'input window, operand 7, single buffered']
    #allocation3 [shape = 's32[2]{0}', space=sflag, size = 0x8, scoped, tag = 'scoped memory for tpu_custom_call.1']
    #allocation4 [shape = 's32[2]{0}', space=sflag, size = 0x8, scoped, tag = 'scoped memory for tpu_custom_call.1']
    #allocation5 [shape = 'u8[131072]{0}', space=vmem, size = 0x20000, scoped, tag = 'output window, operand 0']
    %13 = vsyncpa [#allocation4], 0
    %14 = vsyncpa [#allocation3], 0
    %s15 = scalar_lea.sflag [#allocation3], 1
    %16 = vsyncpa %s15, 0
    loop: start=0, step=1, limit=4
    $region2: #{tpu_custom_call.1} parent=1 // loop_pre_header
      _
    $region3: #{tpu_custom_call.1} parent=1 // loop_header
      %s18 = sphi 0, %s22
      %p19 = scmp.ge.s32.totalorder %s18, 4
      %s28 = sphi 0, %s30
      %s31 = sphi 0, %s28
      %s32 = sphi 0, %s31
      %s48 = sphi 0, %s32
      %s52 = sphi 0, %s52
      %s54 = sphi 0, %s52
      %s55 = sphi 0, %s54
      %s69 = sphi 0, %s55
      %s73 = sphi 0, %s73
      %s75 = sphi 0, %s73
      %s76 = sphi 0, %s75
      %s90 = sphi 0, %s76
      %s94 = sphi 0, %s94
      %s96 = sphi 0, %s94
      %s97 = sphi 0, %s96
      %s111 = sphi 0, %s97
      %s115 = sphi 0, %s115
      %s117 = sphi 0, %s115
      %s118 = sphi 0, %s117
      %s132 = sphi 0, %s118
      %s136 = sphi 0, %s136
      %s138 = sphi 0, %s136
      %s139 = sphi 0, %s138
      %s153 = sphi 0, %s139
      %s157 = sphi 0, %s157
      %s159 = sphi 0, %s157
      %s160 = sphi 0, %s159
      %s174 = sphi 0, %s160
      %s178 = sphi 0, %s178
      %s180 = sphi 0, %s178
      %s181 = sphi 0, %s180
      %s195 = sphi 0, %s181
      %s201 = sphi 0, %s203
      %s204 = sphi 0, %s201
      %s205 = sphi 0, %s204
      %s221 = sphi 0, %s205
    $region4: #{tpu_custom_call.1} parent=1 // loop_header_branch
      %21 = sbr.rel (%p19) target = $region8
    $region5: #{tpu_custom_call.1} parent=1 // loop_body
      %s23 = ssub.s32 %s18, 1
      %s24 = ssub.s32 %s18, 2
      %s25 = sadd.s32 %s18, 1
      %s26 = ssub.s32 %s18, %s25
      %p27 = scmp.eq.s32.totalorder %s26, 0
      %s29 = sadd.s32 %s28, 1
      %s30 = scalar_select %p27, %s28, %s29
      %p33 = pneg %p27
      %p34 = scmp.eq.s32.totalorder %s18, 1
      %p35 = por %p33, %p34
      %p36 = scmp.ne.s32.totalorder %s28, %s31
      %p37 = scmp.eq.s32.totalorder %s18, 0
      %p38 = por %p36, %p37
      %p39 = scmp.ne.s32.totalorder %s28, %s31
      %p40 = scmp.eq.s32.totalorder %s23, 1
      %p41 = por %p39, %p40
      %p42 = scmp.ne.s32.totalorder %s31, %s32
      %p43 = scmp.eq.s32.totalorder %s23, 0
      %p44 = por %p42, %p43
      %p45 = scmp.ne.s32.totalorder %s31, %s32
      %p46 = scmp.eq.s32.totalorder %s24, 1
      %p47 = por %p45, %p46
      %p49 = scmp.ne.s32.totalorder %s32, %s48
      %p50 = scmp.eq.s32.totalorder %s24, 0
      %p51 = por %p49, %p50
      %s53 = sadd.s32 %s52, 1
      %p56 = scmp.eq.s32.totalorder %s18, 1
      %p57 = scmp.ne.s32.totalorder %s52, %s54
      %p58 = scmp.eq.s32.totalorder %s18, 0
      %p59 = por %p57, %p58
      %p60 = scmp.ne.s32.totalorder %s52, %s54
      %p61 = scmp.eq.s32.totalorder %s23, 1
      %p62 = por %p60, %p61
      %p63 = scmp.ne.s32.totalorder %s54, %s55
      %p64 = scmp.eq.s32.totalorder %s23, 0
      %p65 = por %p63, %p64
      %p66 = scmp.ne.s32.totalorder %s54, %s55
      %p67 = scmp.eq.s32.totalorder %s24, 1
      %p68 = por %p66, %p67
      %p70 = scmp.ne.s32.totalorder %s55, %s69
      %p71 = scmp.eq.s32.totalorder %s24, 0
      %p72 = por %p70, %p71
      %s74 = sadd.s32 %s73, 1
      %p77 = scmp.eq.s32.totalorder %s18, 1
      %p78 = scmp.ne.s32.totalorder %s73, %s75
      %p79 = scmp.eq.s32.totalorder %s18, 0
      %p80 = por %p78, %p79
      %p81 = scmp.ne.s32.totalorder %s73, %s75
      %p82 = scmp.eq.s32.totalorder %s23, 1
      %p83 = por %p81, %p82
      %p84 = scmp.ne.s32.totalorder %s75, %s76
      %p85 = scmp.eq.s32.totalorder %s23, 0
      %p86 = por %p84, %p85
      %p87 = scmp.ne.s32.totalorder %s75, %s76
      %p88 = scmp.eq.s32.totalorder %s24, 1
      %p89 = por %p87, %p88
      %p91 = scmp.ne.s32.totalorder %s76, %s90
      %p92 = scmp.eq.s32.totalorder %s24, 0
      %p93 = por %p91, %p92
      %s95 = sadd.s32 %s94, 1
      %p98 = scmp.eq.s32.totalorder %s18, 1
      %p99 = scmp.ne.s32.totalorder %s94, %s96
      %p100 = scmp.eq.s32.totalorder %s18, 0
      %p101 = por %p99, %p100
      %p102 = scmp.ne.s32.totalorder %s94, %s96
      %p103 = scmp.eq.s32.totalorder %s23, 1
      %p104 = por %p102, %p103
      %p105 = scmp.ne.s32.totalorder %s96, %s97
      %p106 = scmp.eq.s32.totalorder %s23, 0
      %p107 = por %p105, %p106
      %p108 = scmp.ne.s32.totalorder %s96, %s97
      %p109 = scmp.eq.s32.totalorder %s24, 1
      %p110 = por %p108, %p109
      %p112 = scmp.ne.s32.totalorder %s97, %s111
      %p113 = scmp.eq.s32.totalorder %s24, 0
      %p114 = por %p112, %p113
      %s116 = sadd.s32 %s115, 1
      %p119 = scmp.eq.s32.totalorder %s18, 1
      %p120 = scmp.ne.s32.totalorder %s115, %s117
      %p121 = scmp.eq.s32.totalorder %s18, 0
      %p122 = por %p120, %p121
      %p123 = scmp.ne.s32.totalorder %s115, %s117
      %p124 = scmp.eq.s32.totalorder %s23, 1
      %p125 = por %p123, %p124
      %p126 = scmp.ne.s32.totalorder %s117, %s118
      %p127 = scmp.eq.s32.totalorder %s23, 0
      %p128 = por %p126, %p127
      %p129 = scmp.ne.s32.totalorder %s117, %s118
      %p130 = scmp.eq.s32.totalorder %s24, 1
      %p131 = por %p129, %p130
      %p133 = scmp.ne.s32.totalorder %s118, %s132
      %p134 = scmp.eq.s32.totalorder %s24, 0
      %p135 = por %p133, %p134
      %s137 = sadd.s32 %s136, 1
      %p140 = scmp.eq.s32.totalorder %s18, 1
      %p141 = scmp.ne.s32.totalorder %s136, %s138
      %p142 = scmp.eq.s32.totalorder %s18, 0
      %p143 = por %p141, %p142
      %p144 = scmp.ne.s32.totalorder %s136, %s138
      %p145 = scmp.eq.s32.totalorder %s23, 1
      %p146 = por %p144, %p145
      %p147 = scmp.ne.s32.totalorder %s138, %s139
      %p148 = scmp.eq.s32.totalorder %s23, 0
      %p149 = por %p147, %p148
      %p150 = scmp.ne.s32.totalorder %s138, %s139
      %p151 = scmp.eq.s32.totalorder %s24, 1
      %p152 = por %p150, %p151
      %p154 = scmp.ne.s32.totalorder %s139, %s153
      %p155 = scmp.eq.s32.totalorder %s24, 0
      %p156 = por %p154, %p155
      %s158 = sadd.s32 %s157, 1
      %p161 = scmp.eq.s32.totalorder %s18, 1
      %p162 = scmp.ne.s32.totalorder %s157, %s159
      %p163 = scmp.eq.s32.totalorder %s18, 0
      %p164 = por %p162, %p163
      %p165 = scmp.ne.s32.totalorder %s157, %s159
      %p166 = scmp.eq.s32.totalorder %s23, 1
      %p167 = por %p165, %p166
      %p168 = scmp.ne.s32.totalorder %s159, %s160
      %p169 = scmp.eq.s32.totalorder %s23, 0
      %p170 = por %p168, %p169
      %p171 = scmp.ne.s32.totalorder %s159, %s160
      %p172 = scmp.eq.s32.totalorder %s24, 1
      %p173 = por %p171, %p172
      %p175 = scmp.ne.s32.totalorder %s160, %s174
      %p176 = scmp.eq.s32.totalorder %s24, 0
      %p177 = por %p175, %p176
      %s179 = sadd.s32 %s178, 1
      %p182 = scmp.eq.s32.totalorder %s18, 1
      %p183 = scmp.ne.s32.totalorder %s178, %s180
      %p184 = scmp.eq.s32.totalorder %s18, 0
      %p185 = por %p183, %p184
      %p186 = scmp.ne.s32.totalorder %s178, %s180
      %p187 = scmp.eq.s32.totalorder %s23, 1
      %p188 = por %p186, %p187
      %p189 = scmp.ne.s32.totalorder %s180, %s181
      %p190 = scmp.eq.s32.totalorder %s23, 0
      %p191 = por %p189, %p190
      %p192 = scmp.ne.s32.totalorder %s180, %s181
      %p193 = scmp.eq.s32.totalorder %s24, 1
      %p194 = por %p192, %p193
      %p196 = scmp.ne.s32.totalorder %s181, %s195
      %p197 = scmp.eq.s32.totalorder %s24, 0
      %p198 = por %p196, %p197
      %s199 = ssub.s32 %s18, %s25
      %p200 = scmp.eq.s32.totalorder %s199, 0
      %s202 = sadd.s32 %s201, 1
      %s203 = scalar_select %p200, %s201, %s202
      %p206 = pneg %p200
      %p207 = scmp.eq.s32.totalorder %s18, 1
      %p208 = por %p206, %p207
      %p209 = scmp.ne.s32.totalorder %s201, %s204
      %p210 = scmp.eq.s32.totalorder %s18, 0
      %p211 = por %p209, %p210
      %p212 = scmp.ne.s32.totalorder %s201, %s204
      %p213 = scmp.eq.s32.totalorder %s23, 1
      %p214 = por %p212, %p213
      %p215 = scmp.ne.s32.totalorder %s204, %s205
      %p216 = scmp.eq.s32.totalorder %s23, 0
      %p217 = por %p215, %p216
      %p218 = scmp.ne.s32.totalorder %s204, %s205
      %p219 = scmp.eq.s32.totalorder %s24, 1
      %p220 = por %p218, %p219
      %p222 = scmp.ne.s32.totalorder %s205, %s221
      %p223 = scmp.eq.s32.totalorder %s24, 0
      %p224 = por %p222, %p223
      %p225 = scmp.le.s32.totalorder 1, %s18
      %p226 = scmp.lt.s32.totalorder %s18, 3
      %p227 = pnand %p225, %p226
      %p228 = pneg %p227
      // Predicated region
      $region9: #{tpu_custom_call.1} parent=5 // pred_check
        _
      $region10: #{tpu_custom_call.1} parent=5 // pred_check_branch
        %230 = sbr.rel (%p227) target = $region12
      $region11: #{tpu_custom_call.1} parent=5 // pred_region
        %s231 = ssub.s32 %s18, 1
        // Predicated region
        $region13: #{tpu_custom_call.1} parent=11 // pred_check
          %p232 = pneg %p65
        $region14: #{tpu_custom_call.1} parent=11 // pred_check_branch
          %234 = sbr.rel (%p232) target = $region16
        $region15: #{tpu_custom_call.1} parent=11 // pred_region
          _
        $region16: #{tpu_custom_call.1} parent=11 // pred_fallthru
          _
        // Predicated region
        $region17: #{tpu_custom_call.1} parent=11 // pred_check
          %p235 = pneg %p86
        $region18: #{tpu_custom_call.1} parent=11 // pred_check_branch
          %237 = sbr.rel (%p235) target = $region20
        $region19: #{tpu_custom_call.1} parent=11 // pred_region
          _
        $region20: #{tpu_custom_call.1} parent=11 // pred_fallthru
          _
        // Predicated region
        $region21: #{tpu_custom_call.1} parent=11 // pred_check
          %p238 = pneg %p107
        $region22: #{tpu_custom_call.1} parent=11 // pred_check_branch
          %240 = sbr.rel (%p238) target = $region24
        $region23: #{tpu_custom_call.1} parent=11 // pred_region
          _
        $region24: #{tpu_custom_call.1} parent=11 // pred_fallthru
          _
        // Predicated region
        $region25: #{tpu_custom_call.1} parent=11 // pred_check
          %p241 = pneg %p128
        $region26: #{tpu_custom_call.1} parent=11 // pred_check_branch
          %243 = sbr.rel (%p241) target = $region28
        $region27: #{tpu_custom_call.1} parent=11 // pred_region
          _
        $region28: #{tpu_custom_call.1} parent=11 // pred_fallthru
          _
        // Predicated region
        $region29: #{tpu_custom_call.1} parent=11 // pred_check
          %p244 = pneg %p149
        $region30: #{tpu_custom_call.1} parent=11 // pred_check_branch
          %246 = sbr.rel (%p244) target = $region32
        $region31: #{tpu_custom_call.1} parent=11 // pred_region
          _
        $region32: #{tpu_custom_call.1} parent=11 // pred_fallthru
          _
        // Predicated region
        $region33: #{tpu_custom_call.1} parent=11 // pred_check
          %p247 = pneg %p170
        $region34: #{tpu_custom_call.1} parent=11 // pred_check_branch
          %249 = sbr.rel (%p247) target = $region36
        $region35: #{tpu_custom_call.1} parent=11 // pred_region
          _
        $region36: #{tpu_custom_call.1} parent=11 // pred_fallthru
          _
        // Predicated region
        $region37: #{tpu_custom_call.1} parent=11 // pred_check
          %p250 = pneg %p191
        $region38: #{tpu_custom_call.1} parent=11 // pred_check_branch
          %252 = sbr.rel (%p250) target = $region40
        $region39: #{tpu_custom_call.1} parent=11 // pred_region
          %s254 = ssub.s32 16, 16
          %255 = vsyncadd [#allocation4], %s254
          %s257 = sshll.u32 %s7, 4
          %s258 = int_to_ptr.vmem [resolvable:$true] %s257
          %260 = dma.vmem_to_smem %s258, 16, [#allocation2], [#allocation4]
        $region40: #{tpu_custom_call.1} parent=11 // pred_fallthru
          _
      $region12: #{tpu_custom_call.1} parent=5 // pred_fallthru
        _
      %p261 = scmp.lt.s32.totalorder %s18, 2
      // Predicated region
      $region41: #{tpu_custom_call.1} parent=5 // pred_check
        %p262 = pneg %p261
      $region42: #{tpu_custom_call.1} parent=5 // pred_check_branch
        %264 = sbr.rel (%p262) target = $region44
      $region43: #{tpu_custom_call.1} parent=5 // pred_region
        // Predicated region
        $region45: #{tpu_custom_call.1} parent=43 // pred_check
          %p265 = pneg %p38
        $region46: #{tpu_custom_call.1} parent=43 // pred_check_branch
          %267 = sbr.rel (%p265) target = $region48
        $region47: #{tpu_custom_call.1} parent=43 // pred_region
          %p268 = scmp.lt.s32.totalorder %s18, 1
          %s269 = scalar_select %p268, %s18, 1
          %s270 = smul.addr %s269, 8
          %s271 = smul.addr %s270, 8
          %s272 = scalar_lea.vmem %s0, %s271
        $region48: #{tpu_custom_call.1} parent=43 // pred_fallthru
          _
      $region44: #{tpu_custom_call.1} parent=5 // pred_fallthru
        _
      %p273 = scmp.le.s32.totalorder 1, %s18
      %p274 = scmp.lt.s32.totalorder %s18, 3
      %p275 = pnand %p273, %p274
      %p276 = pneg %p275
      // Predicated region
      $region49: #{tpu_custom_call.1} parent=5 // pred_check
        _
      $region50: #{tpu_custom_call.1} parent=5 // pred_check_branch
        %278 = sbr.rel (%p275) target = $region52
      $region51: #{tpu_custom_call.1} parent=5 // pred_region
        %s279 = ssub.s32 %s18, 1
        // Predicated region
        $region53: #{tpu_custom_call.1} parent=51 // pred_check
          %p280 = pneg %p191
        $region54: #{tpu_custom_call.1} parent=51 // pred_check_branch
          %282 = sbr.rel (%p280) target = $region56
        $region55: #{tpu_custom_call.1} parent=51 // pred_region
          %283 = dma.done [#allocation4], 16
        $region56: #{tpu_custom_call.1} parent=51 // pred_fallthru
          _
        %284 = sfence
        %p285 = scmp.lt.s32.totalorder %s23, 1
        %s286 = scalar_select %p285, %s23, 1
        %s287 = smul.addr %s286, 8
        %s288 = smul.addr %s287, 8
        %s289 = scalar_lea.vmem %s0, %s288
        %p290 = pneg %p44
        %p291 = pneg %p41
        %p292 = pneg %p65
        %p293 = pneg %p62
        %p294 = pneg %p86
        %p295 = pneg %p83
        %p296 = pneg %p107
        %p297 = pneg %p104
        %p298 = pneg %p128
        %p299 = pneg %p125
        %p300 = pneg %p149
        %p301 = pneg %p146
        %p302 = pneg %p170
        %p303 = pneg %p167
        %p304 = pneg %p191
        %p305 = pneg %p188
        %p306 = pneg %p217
        %p307 = pneg %p214
        %s308 = sand.u32 %s204, 1
        %s309 = scalar_lea.sflag [#allocation3], %s308
        %s310 = sand.u32 %s204, 1
        %s311 = smul.addr %s310, 128
        %s312 = scalar_lea.vmem [#allocation5], %s311
        %p313 = scmp.lt.s32.totalorder %s23, 1
        %s314 = scalar_select %p313, %s23, 1
        %s315 = smul.addr %s314, 8
        %s316 = smul.addr %s315, 8
        %s317 = scalar_lea.vmem %s0, %s316
        %v318 = vld [vmem:[%s317] sm:$0xff]
        %v319 = vld [vmem:[%s317 + $0x8] sm:$0xff]
        %v320 = vld [vmem:[%s317 + $0x10] sm:$0xff]
        %v321 = vld [vmem:[%s317 + $0x18] sm:$0xff]
        %v322 = vld [vmem:[%s317 + $0x20] sm:$0xff]
        %v323 = vld [vmem:[%s317 + $0x28] sm:$0xff]
        %v324 = vld [vmem:[%s317 + $0x30] sm:$0xff]
        %v325 = vld [vmem:[%s317 + $0x38] sm:$0xff]
        %v326 = vld [vmem:[%s1] sm:$0xff]
        %v327 = vld [vmem:[%s1 + $0x8] sm:$0xff]
        %v328 = vld [vmem:[%s1 + $0x10] sm:$0xff]
        %v329 = vld [vmem:[%s1 + $0x18] sm:$0xff]
        %v330 = vld [vmem:[%s1 + $0x20] sm:$0xff]
        %v331 = vld [vmem:[%s1 + $0x28] sm:$0xff]
        %v332 = vld [vmem:[%s1 + $0x30] sm:$0xff]
        %v333 = vld [vmem:[%s1 + $0x38] sm:$0xff]
        %v334 = vld [vmem:[%s1 + $0x40] sm:$0xff]
        %v335 = vld [vmem:[%s1 + $0x48] sm:$0xff]
        %v336 = vld [vmem:[%s1 + $0x50] sm:$0xff]
        %v337 = vld [vmem:[%s1 + $0x58] sm:$0xff]
        %v338 = vld [vmem:[%s1 + $0x60] sm:$0xff]
        %v339 = vld [vmem:[%s1 + $0x68] sm:$0xff]
        %v340 = vld [vmem:[%s1 + $0x70] sm:$0xff]
        %v341 = vld [vmem:[%s1 + $0x78] sm:$0xff]
        %v342 = vld [vmem:[%s2] sm:$0xff]
        %v343 = vld [vmem:[%s2 + $0x8] sm:$0xff]
        %v344 = vld [vmem:[%s2 + $0x10] sm:$0xff]
        %v345 = vld [vmem:[%s2 + $0x18] sm:$0xff]
        %v346 = vld [vmem:[%s2 + $0x20] sm:$0xff]
        %v347 = vld [vmem:[%s2 + $0x28] sm:$0xff]
        %v348 = vld [vmem:[%s2 + $0x30] sm:$0xff]
        %v349 = vld [vmem:[%s2 + $0x38] sm:$0xff]
        %v350 = vld [vmem:[%s2 + $0x40] sm:$0xff]
        %v351 = vld [vmem:[%s2 + $0x48] sm:$0xff]
        %v352 = vld [vmem:[%s2 + $0x50] sm:$0xff]
        %v353 = vld [vmem:[%s2 + $0x58] sm:$0xff]
        %v354 = vld [vmem:[%s2 + $0x60] sm:$0xff]
        %v355 = vld [vmem:[%s2 + $0x68] sm:$0xff]
        %v356 = vld [vmem:[%s2 + $0x70] sm:$0xff]
        %v357 = vld [vmem:[%s2 + $0x78] sm:$0xff]
        %359 = vset.pattern.permute.xlu0 0
        %360 = vperm.xlu0 %359, %v342
        %v361 = vpop.permute.xlu0 %360
        %364 = vset.pattern.permute.xlu0 0
        %365 = vperm.xlu0 %364, %v343
        %v366 = vpop.permute.xlu0 %365
        %369 = vset.pattern.permute.xlu0 0
        %370 = vperm.xlu0 %369, %v344
        %v371 = vpop.permute.xlu0 %370
        %374 = vset.pattern.permute.xlu0 0
        %375 = vperm.xlu0 %374, %v345
        %v376 = vpop.permute.xlu0 %375
        %379 = vset.pattern.permute.xlu0 0
        %380 = vperm.xlu0 %379, %v346
        %v381 = vpop.permute.xlu0 %380
        %384 = vset.pattern.permute.xlu0 0
        %385 = vperm.xlu0 %384, %v347
        %v386 = vpop.permute.xlu0 %385
        %389 = vset.pattern.permute.xlu0 0
        %390 = vperm.xlu0 %389, %v348
        %v391 = vpop.permute.xlu0 %390
        %394 = vset.pattern.permute.xlu0 0
        %395 = vperm.xlu0 %394, %v349
        %v396 = vpop.permute.xlu0 %395
        %399 = vset.pattern.permute.xlu0 0
        %400 = vperm.xlu0 %399, %v350
        %v401 = vpop.permute.xlu0 %400
        %404 = vset.pattern.permute.xlu0 0
        %405 = vperm.xlu0 %404, %v351
        %v406 = vpop.permute.xlu0 %405
        %409 = vset.pattern.permute.xlu0 0
        %410 = vperm.xlu0 %409, %v352
        %v411 = vpop.permute.xlu0 %410
        %414 = vset.pattern.permute.xlu0 0
        %415 = vperm.xlu0 %414, %v353
        %v416 = vpop.permute.xlu0 %415
        %419 = vset.pattern.permute.xlu0 0
        %420 = vperm.xlu0 %419, %v354
        %v421 = vpop.permute.xlu0 %420
        %424 = vset.pattern.permute.xlu0 0
        %425 = vperm.xlu0 %424, %v355
        %v426 = vpop.permute.xlu0 %425
        %429 = vset.pattern.permute.xlu0 0
        %430 = vperm.xlu0 %429, %v356
        %v431 = vpop.permute.xlu0 %430
        %434 = vset.pattern.permute.xlu0 0
        %435 = vperm.xlu0 %434, %v357
        %v436 = vpop.permute.xlu0 %435
        %vm438 = vcmask 261120
        %v440 = vsel %vm438, %v326, 0
        %v443 = vsel %vm438, %v327, 0
        %v446 = vsel %vm438, %v328, 0
        %v449 = vsel %vm438, %v329, 0
        %v452 = vsel %vm438, %v330, 0
        %v455 = vsel %vm438, %v331, 0
        %v458 = vsel %vm438, %v332, 0
        %v461 = vsel %vm438, %v333, 0
        %v464 = vsel %vm438, %v334, 0
        %v467 = vsel %vm438, %v335, 0
        %v470 = vsel %vm438, %v336, 0
        %v473 = vsel %vm438, %v337, 0
        %v476 = vsel %vm438, %v338, 0
        %v479 = vsel %vm438, %v339, 0
        %v482 = vsel %vm438, %v340, 0
        %v485 = vsel %vm438, %v341, 0
        %487 = vmatprep.subr.mxu0 %v319
        %488 = vmatpush1.msra.mxu0 %v318
        %489 = vmatprep.subr.mxu0 %v321
        %490 = vmatpush1.msra.mxu0 %v320
        %491 = vmatprep.subr.mxu0 %v323
        %492 = vmatpush1.msra.mxu0 %v322
        %493 = vmatprep.subr.mxu0 %v325
        %494 = vmatpush1.msra.mxu0 %v324
        %495 = vmatprep.subr.mxu0 0.0
        %496 = vmatpush1.msra.mxu0 0.0
        %497 = vmatprep.subr.mxu0 0.0
        %498 = vmatpush1.msra.mxu0 0.0
        %499 = vmatprep.subr.mxu0 0.0
        %500 = vmatpush1.msra.mxu0 0.0
        %501 = vmatprep.subr.mxu0 0.0
        %502 = vmatpush1.msra.mxu0 0.0
        %503 = vmatprep.subr.mxu0 0.0
        %504 = vmatpush1.msra.mxu0 0.0
        %505 = vmatprep.subr.mxu0 0.0
        %506 = vmatpush1.msra.mxu0 0.0
        %507 = vmatprep.subr.mxu0 0.0
        %508 = vmatpush1.msra.mxu0 0.0
        %509 = vmatprep.subr.mxu0 0.0
        %510 = vmatpush1.msra.mxu0 0.0
        %511 = vmatprep.subr.mxu0 0.0
        %512 = vmatpush1.msra.mxu0 0.0
        %513 = vmatprep.subr.mxu0 0.0
        %514 = vmatpush1.msra.mxu0 0.0
        %515 = vmatprep.subr.mxu0 0.0
        %516 = vmatpush1.msra.mxu0 0.0
        %517 = vmatprep.subr.mxu0 0.0
        %518 = vmatpush1.msra.mxu0 0.0
        %519 = vmatprep.subr.mxu0 0.0
        %520 = vmatpush1.msra.mxu0 0.0
        %521 = vmatprep.subr.mxu0 0.0
        %522 = vmatpush1.msra.mxu0 0.0
        %523 = vmatprep.subr.mxu0 0.0
        %524 = vmatpush1.msra.mxu0 0.0
        %525 = vmatprep.subr.mxu0 0.0
        %526 = vmatpush1.msra.mxu0 0.0
        %527 = vmatprep.subr.mxu0 0.0
        %528 = vmatpush1.msra.mxu0 0.0
        %529 = vmatprep.subr.mxu0 0.0
        %530 = vmatpush1.msra.mxu0 0.0
        %531 = vmatprep.subr.mxu0 0.0
        %532 = vmatpush1.msra.mxu0 0.0
        %533 = vmatprep.subr.mxu0 0.0
        %534 = vmatpush1.msra.mxu0 0.0
        %535 = vmatprep.subr.mxu0 0.0
        %536 = vmatpush1.msra.mxu0 0.0
        %537 = vmatprep.subr.mxu0 0.0
        %538 = vmatpush1.msra.mxu0 0.0
        %539 = vmatprep.subr.mxu0 0.0
        %540 = vmatpush1.msra.mxu0 0.0
        %541 = vmatprep.subr.mxu0 0.0
        %542 = vmatpush1.msra.mxu0 0.0
        %543 = vmatprep.subr.mxu0 0.0
        %544 = vmatpush1.msra.mxu0 0.0
        %545 = vmatprep.subr.mxu0 0.0
        %546 = vmatpush1.msra.mxu0 0.0
        %547 = vmatprep.subr.mxu0 0.0
        %548 = vmatpush1.msra.mxu0 0.0
        %549 = vmatprep.subr.mxu0 0.0
        %550 = vmatpush1.msra.mxu0 0.0
        %551 = vmatprep.mubr.f32.mxu0 0.0
        %552 = vmatmul.mubr.f32.gmra.mrb[0].mxu0 %v440
        %v553 = vpop.f32.mrb[0].mxu0
        %v554 = vadd.f32 %v361, %v553
        %v555 = vpop.f32.mrb[0].mxu0
        %v556 = vadd.f32 %v361, %v555
        %557 = vmatprep.mubr.f32.mxu0 0.0
        %558 = vmatmul.mubr.f32.gmra.mrb[0].mxu0 %v443
        %v559 = vpop.f32.mrb[0].mxu0
        %v560 = vadd.f32 %v366, %v559
        %v561 = vpop.f32.mrb[0].mxu0
        %v562 = vadd.f32 %v366, %v561
        %563 = vmatprep.mubr.f32.mxu0 0.0
        %564 = vmatmul.mubr.f32.gmra.mrb[0].mxu0 %v446
        %v565 = vpop.f32.mrb[0].mxu0
        %v566 = vadd.f32 %v371, %v565
        %v567 = vpop.f32.mrb[0].mxu0
        %v568 = vadd.f32 %v371, %v567
        %569 = vmatprep.mubr.f32.mxu0 0.0
        %570 = vmatmul.mubr.f32.gmra.mrb[0].mxu0 %v449
        %v571 = vpop.f32.mrb[0].mxu0
        %v572 = vadd.f32 %v376, %v571
        %v573 = vpop.f32.mrb[0].mxu0
        %v574 = vadd.f32 %v376, %v573
        %575 = vmatprep.mubr.f32.mxu0 0.0
        %576 = vmatmul.mubr.f32.gmra.mrb[0].mxu0 %v452
        %v577 = vpop.f32.mrb[0].mxu0
        %v578 = vadd.f32 %v381, %v577
        %v579 = vpop.f32.mrb[0].mxu0
        %v580 = vadd.f32 %v381, %v579
        %581 = vmatprep.mubr.f32.mxu0 0.0
        %582 = vmatmul.mubr.f32.gmra.mrb[0].mxu0 %v455
        %v583 = vpop.f32.mrb[0].mxu0
        %v584 = vadd.f32 %v386, %v583
        %v585 = vpop.f32.mrb[0].mxu0
        %v586 = vadd.f32 %v386, %v585
        %587 = vmatprep.mubr.f32.mxu0 0.0
        %588 = vmatmul.mubr.f32.gmra.mrb[0].mxu0 %v458
        %v589 = vpop.f32.mrb[0].mxu0
        %v590 = vadd.f32 %v391, %v589
        %v591 = vpop.f32.mrb[0].mxu0
        %v592 = vadd.f32 %v391, %v591
        %593 = vmatprep.mubr.f32.mxu0 0.0
        %594 = vmatmul.mubr.f32.gmra.mrb[0].mxu0 %v461
        %v595 = vpop.f32.mrb[0].mxu0
        %v596 = vadd.f32 %v396, %v595
        %v597 = vpop.f32.mrb[0].mxu0
        %v598 = vadd.f32 %v396, %v597
        %599 = vmatprep.mubr.f32.mxu0 0.0
        %600 = vmatmul.mubr.f32.gmra.mrb[0].mxu0 %v464
        %v601 = vpop.f32.mrb[0].mxu0
        %v602 = vadd.f32 %v401, %v601
        %v603 = vpop.f32.mrb[0].mxu0
        %v604 = vadd.f32 %v401, %v603
        %605 = vmatprep.mubr.f32.mxu0 0.0
        %606 = vmatmul.mubr.f32.gmra.mrb[0].mxu0 %v467
        %v607 = vpop.f32.mrb[0].mxu0
        %v608 = vadd.f32 %v406, %v607
        %v609 = vpop.f32.mrb[0].mxu0
        %v610 = vadd.f32 %v406, %v609
        %611 = vmatprep.mubr.f32.mxu0 0.0
        %612 = vmatmul.mubr.f32.gmra.mrb[0].mxu0 %v470
        %v613 = vpop.f32.mrb[0].mxu0
        %v614 = vadd.f32 %v411, %v613
        %v615 = vpop.f32.mrb[0].mxu0
        %v616 = vadd.f32 %v411, %v615
        %617 = vmatprep.mubr.f32.mxu0 0.0
        %618 = vmatmul.mubr.f32.gmra.mrb[0].mxu0 %v473
        %v619 = vpop.f32.mrb[0].mxu0
        %v620 = vadd.f32 %v416, %v619
        %v621 = vpop.f32.mrb[0].mxu0
        %v622 = vadd.f32 %v416, %v621
        %623 = vmatprep.mubr.f32.mxu0 0.0
        %624 = vmatmul.mubr.f32.gmra.mrb[0].mxu0 %v476
        %v625 = vpop.f32.mrb[0].mxu0
        %v626 = vadd.f32 %v421, %v625
        %v627 = vpop.f32.mrb[0].mxu0
        %v628 = vadd.f32 %v421, %v627
        %629 = vmatprep.mubr.f32.mxu0 0.0
        %630 = vmatmul.mubr.f32.gmra.mrb[0].mxu0 %v479
        %v631 = vpop.f32.mrb[0].mxu0
        %v632 = vadd.f32 %v426, %v631
        %v633 = vpop.f32.mrb[0].mxu0
        %v634 = vadd.f32 %v426, %v633
        %635 = vmatprep.mubr.f32.mxu0 0.0
        %636 = vmatmul.mubr.f32.gmra.mrb[0].mxu0 %v482
        %v637 = vpop.f32.mrb[0].mxu0
        %v638 = vadd.f32 %v431, %v637
        %v639 = vpop.f32.mrb[0].mxu0
        %v640 = vadd.f32 %v431, %v639
        %641 = vmatprep.mubr.f32.mxu0 0.0
        %642 = vmatmul.mubr.f32.gmra.mrb[0].mxu0 %v485
        %v643 = vpop.f32.mrb[0].mxu0
        %v644 = vadd.f32 %v436, %v643
        %v645 = vpop.f32.mrb[0].mxu0
        %v646 = vadd.f32 %v436, %v645
        %647 = vdwg.mxu0
        %v648 = vxor.u32 %v554, 2147483648
        %v649 = vxor.u32 %v556, 2147483648
        %v650 = vxor.u32 %v560, 2147483648
        %v651 = vxor.u32 %v562, 2147483648
        %v652 = vxor.u32 %v566, 2147483648
        %v653 = vxor.u32 %v568, 2147483648
        %v654 = vxor.u32 %v572, 2147483648
        %v655 = vxor.u32 %v574, 2147483648
        %v656 = vxor.u32 %v578, 2147483648
        %v657 = vxor.u32 %v580, 2147483648
        %v658 = vxor.u32 %v584, 2147483648
        %v659 = vxor.u32 %v586, 2147483648
        %v660 = vxor.u32 %v590, 2147483648
        %v661 = vxor.u32 %v592, 2147483648
        %v662 = vxor.u32 %v596, 2147483648
        %v663 = vxor.u32 %v598, 2147483648
        %v664 = vmul.f32 %v648, 1.442695
        %v665 = vpow.pop %v664
        %v666 = vmul.f32 %v649, 1.442695
        %v667 = vpow.pop %v666
        %v668 = vmul.f32 %v650, 1.442695
        %v669 = vpow.pop %v668
        %v670 = vmul.f32 %v651, 1.442695
        %v671 = vpow.pop %v670
        %v672 = vmul.f32 %v652, 1.442695
        %v673 = vpow.pop %v672
        %v674 = vmul.f32 %v653, 1.442695
        %v675 = vpow.pop %v674
        %v676 = vmul.f32 %v654, 1.442695
        %v677 = vpow.pop %v676
        %v678 = vmul.f32 %v655, 1.442695
        %v679 = vpow.pop %v678
        %v680 = vmul.f32 %v656, 1.442695
        %v681 = vpow.pop %v680
        %v682 = vmul.f32 %v657, 1.442695
        %v683 = vpow.pop %v682
        %v684 = vmul.f32 %v658, 1.442695
        %v685 = vpow.pop %v684
        %v686 = vmul.f32 %v659, 1.442695
        %v687 = vpow.pop %v686
        %v688 = vmul.f32 %v660, 1.442695
        %v689 = vpow.pop %v688
        %v690 = vmul.f32 %v661, 1.442695
        %v691 = vpow.pop %v690
        %v692 = vmul.f32 %v662, 1.442695
        %v693 = vpow.pop %v692
        %v694 = vmul.f32 %v663, 1.442695
        %v695 = vpow.pop %v694
        %v696 = vadd.f32 %v665, 1.0
        %v697 = vadd.f32 %v667, 1.0
        %v698 = vadd.f32 %v669, 1.0
        %v699 = vadd.f32 %v671, 1.0
        %v700 = vadd.f32 %v673, 1.0
        %v701 = vadd.f32 %v675, 1.0
        %v702 = vadd.f32 %v677, 1.0
        %v703 = vadd.f32 %v679, 1.0
        %v704 = vadd.f32 %v681, 1.0
        %v705 = vadd.f32 %v683, 1.0
        %v706 = vadd.f32 %v685, 1.0
        %v707 = vadd.f32 %v687, 1.0
        %v708 = vadd.f32 %v689, 1.0
        %v709 = vadd.f32 %v691, 1.0
        %v710 = vadd.f32 %v693, 1.0
        %v711 = vadd.f32 %v695, 1.0
        %v712 = vrcp.pop %v696
        %v713 = vmul.f32 1.0, %v712
        %v714 = vrcp.pop %v697
        %v715 = vmul.f32 1.0, %v714
        %v716 = vrcp.pop %v698
        %v717 = vmul.f32 1.0, %v716
        %v718 = vrcp.pop %v699
        %v719 = vmul.f32 1.0, %v718
        %v720 = vrcp.pop %v700
        %v721 = vmul.f32 1.0, %v720
        %v722 = vrcp.pop %v701
        %v723 = vmul.f32 1.0, %v722
        %v724 = vrcp.pop %v702
        %v725 = vmul.f32 1.0, %v724
        %v726 = vrcp.pop %v703
        %v727 = vmul.f32 1.0, %v726
        %v728 = vrcp.pop %v704
        %v729 = vmul.f32 1.0, %v728
        %v730 = vrcp.pop %v705
        %v731 = vmul.f32 1.0, %v730
        %v732 = vrcp.pop %v706
        %v733 = vmul.f32 1.0, %v732
        %v734 = vrcp.pop %v707
        %v735 = vmul.f32 1.0, %v734
        %v736 = vrcp.pop %v708
        %v737 = vmul.f32 1.0, %v736
        %v738 = vrcp.pop %v709
        %v739 = vmul.f32 1.0, %v738
        %v740 = vrcp.pop %v710
        %v741 = vmul.f32 1.0, %v740
        %v742 = vrcp.pop %v711
        %v743 = vmul.f32 1.0, %v742
        %v744 = vld [vmem:[%s3] sm:$0xff]
        %v745 = vld [vmem:[%s3 + $0x8] sm:$0xff]
        %v746 = vld [vmem:[%s3 + $0x10] sm:$0xff]
        %v747 = vld [vmem:[%s3 + $0x18] sm:$0xff]
        %v748 = vld [vmem:[%s3 + $0x20] sm:$0xff]
        %v749 = vld [vmem:[%s3 + $0x28] sm:$0xff]
        %v750 = vld [vmem:[%s3 + $0x30] sm:$0xff]
        %v751 = vld [vmem:[%s3 + $0x38] sm:$0xff]
        %v752 = vld [vmem:[%s4] sm:$0xff]
        %v753 = vld [vmem:[%s4 + $0x8] sm:$0xff]
        %v754 = vld [vmem:[%s4 + $0x10] sm:$0xff]
        %v755 = vld [vmem:[%s4 + $0x18] sm:$0xff]
        %v756 = vld [vmem:[%s4 + $0x20] sm:$0xff]
        %v757 = vld [vmem:[%s4 + $0x28] sm:$0xff]
        %v758 = vld [vmem:[%s4 + $0x30] sm:$0xff]
        %v759 = vld [vmem:[%s4 + $0x38] sm:$0xff]
        %761 = vset.pattern.permute.xlu0 0
        %762 = vperm.xlu0 %761, %v752
        %v763 = vpop.permute.xlu0 %762
        %766 = vset.pattern.permute.xlu0 0
        %767 = vperm.xlu0 %766, %v753
        %v768 = vpop.permute.xlu0 %767
        %771 = vset.pattern.permute.xlu0 0
        %772 = vperm.xlu0 %771, %v754
        %v773 = vpop.permute.xlu0 %772
        %776 = vset.pattern.permute.xlu0 0
        %777 = vperm.xlu0 %776, %v755
        %v778 = vpop.permute.xlu0 %777
        %781 = vset.pattern.permute.xlu0 0
        %782 = vperm.xlu0 %781, %v756
        %v783 = vpop.permute.xlu0 %782
        %786 = vset.pattern.permute.xlu0 0
        %787 = vperm.xlu0 %786, %v757
        %v788 = vpop.permute.xlu0 %787
        %791 = vset.pattern.permute.xlu0 0
        %792 = vperm.xlu0 %791, %v758
        %v793 = vpop.permute.xlu0 %792
        %796 = vset.pattern.permute.xlu0 0
        %797 = vperm.xlu0 %796, %v759
        %v798 = vpop.permute.xlu0 %797
        %vm800 = vcmask 523264
        %v802 = vsel %vm800, %v744, 0
        %v805 = vsel %vm800, %v745, 0
        %v808 = vsel %vm800, %v746, 0
        %v811 = vsel %vm800, %v747, 0
        %v814 = vsel %vm800, %v748, 0
        %v817 = vsel %vm800, %v749, 0
        %v820 = vsel %vm800, %v750, 0
        %v823 = vsel %vm800, %v751, 0
        %825 = vmatprep.subr.mxu0 %v715
        %826 = vmatpush1.msra.mxu0 %v713
        %827 = vmatprep.subr.mxu0 %v719
        %828 = vmatpush1.msra.mxu0 %v717
        %829 = vmatprep.subr.mxu0 %v723
        %830 = vmatpush1.msra.mxu0 %v721
        %831 = vmatprep.subr.mxu0 %v727
        %832 = vmatpush1.msra.mxu0 %v725
        %833 = vmatprep.subr.mxu0 %v731
        %834 = vmatpush1.msra.mxu0 %v729
        %835 = vmatprep.subr.mxu0 %v735
        %836 = vmatpush1.msra.mxu0 %v733
        %837 = vmatprep.subr.mxu0 %v739
        %838 = vmatpush1.msra.mxu0 %v737
        %839 = vmatprep.subr.mxu0 %v743
        %840 = vmatpush1.msra.mxu0 %v741
        %841 = vmatprep.subr.mxu0 0.0
        %842 = vmatpush1.msra.mxu0 0.0
        %843 = vmatprep.subr.mxu0 0.0
        %844 = vmatpush1.msra.mxu0 0.0
        %845 = vmatprep.subr.mxu0 0.0
        %846 = vmatpush1.msra.mxu0 0.0
        %847 = vmatprep.subr.mxu0 0.0
        %848 = vmatpush1.msra.mxu0 0.0
        %849 = vmatprep.subr.mxu0 0.0
        %850 = vmatpush1.msra.mxu0 0.0
        %851 = vmatprep.subr.mxu0 0.0
        %852 = vmatpush1.msra.mxu0 0.0
        %853 = vmatprep.subr.mxu0 0.0
        %854 = vmatpush1.msra.mxu0 0.0
        %855 = vmatprep.subr.mxu0 0.0
        %856 = vmatpush1.msra.mxu0 0.0
        %857 = vmatprep.subr.mxu0 0.0
        %858 = vmatpush1.msra.mxu0 0.0
        %859 = vmatprep.subr.mxu0 0.0
        %860 = vmatpush1.msra.mxu0 0.0
        %861 = vmatprep.subr.mxu0 0.0
        %862 = vmatpush1.msra.mxu0 0.0
        %863 = vmatprep.subr.mxu0 0.0
        %864 = vmatpush1.msra.mxu0 0.0
        %865 = vmatprep.subr.mxu0 0.0
        %866 = vmatpush1.msra.mxu0 0.0
        %867 = vmatprep.subr.mxu0 0.0
        %868 = vmatpush1.msra.mxu0 0.0
        %869 = vmatprep.subr.mxu0 0.0
        %870 = vmatpush1.msra.mxu0 0.0
        %871 = vmatprep.subr.mxu0 0.0
        %872 = vmatpush1.msra.mxu0 0.0
        %873 = vmatprep.subr.mxu0 0.0
        %874 = vmatpush1.msra.mxu0 0.0
        %875 = vmatprep.subr.mxu0 0.0
        %876 = vmatpush1.msra.mxu0 0.0
        %877 = vmatprep.subr.mxu0 0.0
        %878 = vmatpush1.msra.mxu0 0.0
        %879 = vmatprep.subr.mxu0 0.0
        %880 = vmatpush1.msra.mxu0 0.0
        %881 = vmatprep.subr.mxu0 0.0
        %882 = vmatpush1.msra.mxu0 0.0
        %883 = vmatprep.subr.mxu0 0.0
        %884 = vmatpush1.msra.mxu0 0.0
        %885 = vmatprep.subr.mxu0 0.0
        %886 = vmatpush1.msra.mxu0 0.0
        %887 = vmatprep.subr.mxu0 0.0
        %888 = vmatpush1.msra.mxu0 0.0
        %889 = vmatprep.mubr.f32.mxu0 0.0
        %890 = vmatmul.mubr.f32.gmra.mrb[0].mxu0 %v802
        %v891 = vpop.f32.mrb[0].mxu0
        %v892 = vadd.f32 %v763, %v891
        %v893 = vpop.f32.mrb[0].mxu0
        %v894 = vadd.f32 %v763, %v893
        %895 = vmatprep.mubr.f32.mxu0 0.0
        %896 = vmatmul.mubr.f32.gmra.mrb[0].mxu0 %v805
        %v897 = vpop.f32.mrb[0].mxu0
        %v898 = vadd.f32 %v768, %v897
        %v899 = vpop.f32.mrb[0].mxu0
        %v900 = vadd.f32 %v768, %v899
        %901 = vmatprep.mubr.f32.mxu0 0.0
        %902 = vmatmul.mubr.f32.gmra.mrb[0].mxu0 %v808
        %v903 = vpop.f32.mrb[0].mxu0
        %v904 = vadd.f32 %v773, %v903
        %v905 = vpop.f32.mrb[0].mxu0
        %v906 = vadd.f32 %v773, %v905
        %907 = vmatprep.mubr.f32.mxu0 0.0
        %908 = vmatmul.mubr.f32.gmra.mrb[0].mxu0 %v811
        %v909 = vpop.f32.mrb[0].mxu0
        %v910 = vadd.f32 %v778, %v909
        %v911 = vpop.f32.mrb[0].mxu0
        %v912 = vadd.f32 %v778, %v911
        %913 = vmatprep.mubr.f32.mxu0 0.0
        %914 = vmatmul.mubr.f32.gmra.mrb[0].mxu0 %v814
        %v915 = vpop.f32.mrb[0].mxu0
        %v916 = vadd.f32 %v783, %v915
        %v917 = vpop.f32.mrb[0].mxu0
        %v918 = vadd.f32 %v783, %v917
        %919 = vmatprep.mubr.f32.mxu0 0.0
        %920 = vmatmul.mubr.f32.gmra.mrb[0].mxu0 %v817
        %v921 = vpop.f32.mrb[0].mxu0
        %v922 = vadd.f32 %v788, %v921
        %v923 = vpop.f32.mrb[0].mxu0
        %v924 = vadd.f32 %v788, %v923
        %925 = vmatprep.mubr.f32.mxu0 0.0
        %926 = vmatmul.mubr.f32.gmra.mrb[0].mxu0 %v820
        %v927 = vpop.f32.mrb[0].mxu0
        %v928 = vadd.f32 %v793, %v927
        %v929 = vpop.f32.mrb[0].mxu0
        %v930 = vadd.f32 %v793, %v929
        %931 = vmatprep.mubr.f32.mxu0 0.0
        %932 = vmatmul.mubr.f32.gmra.mrb[0].mxu0 %v823
        %v933 = vpop.f32.mrb[0].mxu0
        %v934 = vadd.f32 %v798, %v933
        %v935 = vpop.f32.mrb[0].mxu0
        %v936 = vadd.f32 %v798, %v935
        %937 = vdwg.mxu0
        %v938 = vadd.f32 %v892, %v894
        %939 = vadd.xlane.f32.xlu0 %v938
        %v940 = vpop.xlane.xlu0 %939
        %v941 = vadd.f32 %v898, %v900
        %942 = vadd.xlane.f32.xlu0 %v941
        %v943 = vpop.xlane.xlu0 %942
        %v944 = vadd.f32 %v904, %v906
        %945 = vadd.xlane.f32.xlu0 %v944
        %v946 = vpop.xlane.xlu0 %945
        %v947 = vadd.f32 %v910, %v912
        %948 = vadd.xlane.f32.xlu0 %v947
        %v949 = vpop.xlane.xlu0 %948
        %v950 = vadd.f32 %v916, %v918
        %951 = vadd.xlane.f32.xlu0 %v950
        %v952 = vpop.xlane.xlu0 %951
        %v953 = vadd.f32 %v922, %v924
        %954 = vadd.xlane.f32.xlu0 %v953
        %v955 = vpop.xlane.xlu0 %954
        %v956 = vadd.f32 %v928, %v930
        %957 = vadd.xlane.f32.xlu0 %v956
        %v958 = vpop.xlane.xlu0 %957
        %v959 = vadd.f32 %v934, %v936
        %960 = vadd.xlane.f32.xlu0 %v959
        %v961 = vpop.xlane.xlu0 %960
        %v962 = vmul.f32 %v940, 0.00390625
        %v963 = vmul.f32 %v943, 0.00390625
        %v964 = vmul.f32 %v946, 0.00390625
        %v965 = vmul.f32 %v949, 0.00390625
        %v966 = vmul.f32 %v952, 0.00390625
        %v967 = vmul.f32 %v955, 0.00390625
        %v968 = vmul.f32 %v958, 0.00390625
        %v969 = vmul.f32 %v961, 0.00390625
        %v970 = vmax.f32 %v892, %v894
        %971 = vmax.xlane.f32.xlu0 %v970
        %v972 = vpop.xlane.xlu0 %971
        %v973 = vmax.f32 %v898, %v900
        %974 = vmax.xlane.f32.xlu0 %v973
        %v975 = vpop.xlane.xlu0 %974
        %v976 = vmax.f32 %v904, %v906
        %977 = vmax.xlane.f32.xlu0 %v976
        %v978 = vpop.xlane.xlu0 %977
        %v979 = vmax.f32 %v910, %v912
        %980 = vmax.xlane.f32.xlu0 %v979
        %v981 = vpop.xlane.xlu0 %980
        %v982 = vmax.f32 %v916, %v918
        %983 = vmax.xlane.f32.xlu0 %v982
        %v984 = vpop.xlane.xlu0 %983
        %v985 = vmax.f32 %v922, %v924
        %986 = vmax.xlane.f32.xlu0 %v985
        %v987 = vpop.xlane.xlu0 %986
        %v988 = vmax.f32 %v928, %v930
        %989 = vmax.xlane.f32.xlu0 %v988
        %v990 = vpop.xlane.xlu0 %989
        %v991 = vmax.f32 %v934, %v936
        %992 = vmax.xlane.f32.xlu0 %v991
        %v993 = vpop.xlane.xlu0 %992
        %vm994 = vcmask 7168
        %v995 = vsel %vm994, %v962, %v972
        %v996 = vsel %vm994, %v963, %v975
        %v997 = vsel %vm994, %v964, %v978
        %v998 = vsel %vm994, %v965, %v981
        %v999 = vsel %vm994, %v966, %v984
        %v1000 = vsel %vm994, %v967, %v987
        %v1001 = vsel %vm994, %v968, %v990
        %v1002 = vsel %vm994, %v969, %v993
        %v1003 = vld [vmem:[%s5] sm:$0xf]
        %v1005 = vsel %vm800, %v1003, 0
        %1007 = vmatprep.subr.mxu0 0.0
        %1008 = vmatpush1.msra.mxu0 %v995
        %1009 = vmatprep.subr.mxu0 0.0
        %1010 = vmatpush1.msra.mxu0 %v996
        %1011 = vmatprep.subr.mxu0 0.0
        %1012 = vmatpush1.msra.mxu0 %v997
        %1013 = vmatprep.subr.mxu0 0.0
        %1014 = vmatpush1.msra.mxu0 %v998
        %1015 = vmatprep.subr.mxu0 0.0
        %1016 = vmatpush1.msra.mxu0 %v999
        %1017 = vmatprep.subr.mxu0 0.0
        %1018 = vmatpush1.msra.mxu0 %v1000
        %1019 = vmatprep.subr.mxu0 0.0
        %1020 = vmatpush1.msra.mxu0 %v1001
        %1021 = vmatprep.subr.mxu0 0.0
        %1022 = vmatpush1.msra.mxu0 %v1002
        %1023 = vmatprep.subr.mxu0 0.0
        %1024 = vmatpush1.msra.mxu0 0.0
        %1025 = vmatprep.subr.mxu0 0.0
        %1026 = vmatpush1.msra.mxu0 0.0
        %1027 = vmatprep.subr.mxu0 0.0
        %1028 = vmatpush1.msra.mxu0 0.0
        %1029 = vmatprep.subr.mxu0 0.0
        %1030 = vmatpush1.msra.mxu0 0.0
        %1031 = vmatprep.subr.mxu0 0.0
        %1032 = vmatpush1.msra.mxu0 0.0
        %1033 = vmatprep.subr.mxu0 0.0
        %1034 = vmatpush1.msra.mxu0 0.0
        %1035 = vmatprep.subr.mxu0 0.0
        %1036 = vmatpush1.msra.mxu0 0.0
        %1037 = vmatprep.subr.mxu0 0.0
        %1038 = vmatpush1.msra.mxu0 0.0
        %1039 = vmatprep.subr.mxu0 0.0
        %1040 = vmatpush1.msra.mxu0 0.0
        %1041 = vmatprep.subr.mxu0 0.0
        %1042 = vmatpush1.msra.mxu0 0.0
        %1043 = vmatprep.subr.mxu0 0.0
        %1044 = vmatpush1.msra.mxu0 0.0
        %1045 = vmatprep.subr.mxu0 0.0
        %1046 = vmatpush1.msra.mxu0 0.0
        %1047 = vmatprep.subr.mxu0 0.0
        %1048 = vmatpush1.msra.mxu0 0.0
        %1049 = vmatprep.subr.mxu0 0.0
        %1050 = vmatpush1.msra.mxu0 0.0
        %1051 = vmatprep.subr.mxu0 0.0
        %1052 = vmatpush1.msra.mxu0 0.0
        %1053 = vmatprep.subr.mxu0 0.0
        %1054 = vmatpush1.msra.mxu0 0.0
        %1055 = vmatprep.subr.mxu0 0.0
        %1056 = vmatpush1.msra.mxu0 0.0
        %1057 = vmatprep.subr.mxu0 0.0
        %1058 = vmatpush1.msra.mxu0 0.0
        %1059 = vmatprep.subr.mxu0 0.0
        %1060 = vmatpush1.msra.mxu0 0.0
        %1061 = vmatprep.subr.mxu0 0.0
        %1062 = vmatpush1.msra.mxu0 0.0
        %1063 = vmatprep.subr.mxu0 0.0
        %1064 = vmatpush1.msra.mxu0 0.0
        %1065 = vmatprep.subr.mxu0 0.0
        %1066 = vmatpush1.msra.mxu0 0.0
        %1067 = vmatprep.subr.mxu0 0.0
        %1068 = vmatpush1.msra.mxu0 0.0
        %1069 = vmatprep.subr.mxu0 0.0
        %1070 = vmatpush1.msra.mxu0 0.0
        %1071 = vmatprep.mubr.f32.mxu0 0.0
        %1072 = vmatmul.mubr.f32.gmra.mrb[0].mxu0 %v1005
        %v1073 = vpop.f32.mrb[0].mxu0
        %v1074 = vadd.f32 0.0, %v1073
        %v1075 = vpop.f32.mrb[0].mxu0
        %1076 = vdwg.mxu0
        %v1077 = vmax.f32 %v1074, 0.0
        %v1078 = vld [vmem:[%s6] sm:$0xff]
        %v1079 = vld [vmem:[%s6 + $0x8] sm:$0xff]
        %v1080 = vld [vmem:[%s6 + $0x10] sm:$0xff]
        %v1081 = vld [vmem:[%s6 + $0x18] sm:$0xff]
        %v1082 = vld [vmem:[%s6 + $0x20] sm:$0xff]
        %v1083 = vld [vmem:[%s6 + $0x28] sm:$0xff]
        %v1084 = vld [vmem:[%s6 + $0x30] sm:$0xff]
        %v1085 = vld [vmem:[%s6 + $0x38] sm:$0xff]
        %vm1086 = vcmask 31744
        %v1088 = vsel %vm1086, %v1078, 0
        %v1091 = vsel %vm1086, %v1079, 0
        %v1094 = vsel %vm1086, %v1080, 0
        %v1097 = vsel %vm1086, %v1081, 0
        %v1100 = vsel %vm1086, %v1082, 0
        %v1103 = vsel %vm1086, %v1083, 0
        %v1106 = vsel %vm1086, %v1084, 0
        %v1109 = vsel %vm1086, %v1085, 0
        %vm1111 = vcmask 1043456
        %v1113 = vsel %vm1111, %v1077, 0
        %1115 = vmatprep.subr.mxu0 0.0
        %1116 = vmatpush1.msra.mxu0 %v1113
        %1117 = vmatprep.subr.mxu0 0.0
        %1118 = vmatpush1.msra.mxu0 0.0
        %1119 = vmatprep.subr.mxu0 0.0
        %1120 = vmatpush1.msra.mxu0 0.0
        %1121 = vmatprep.subr.mxu0 0.0
        %1122 = vmatpush1.msra.mxu0 0.0
        %1123 = vmatprep.subr.mxu0 0.0
        %1124 = vmatpush1.msra.mxu0 0.0
        %1125 = vmatprep.subr.mxu0 0.0
        %1126 = vmatpush1.msra.mxu0 0.0
        %1127 = vmatprep.subr.mxu0 0.0
        %1128 = vmatpush1.msra.mxu0 0.0
        %1129 = vmatprep.subr.mxu0 0.0
        %1130 = vmatpush1.msra.mxu0 0.0
        %1131 = vmatprep.subr.mxu0 0.0
        %1132 = vmatpush1.msra.mxu0 0.0
        %1133 = vmatprep.subr.mxu0 0.0
        %1134 = vmatpush1.msra.mxu0 0.0
        %1135 = vmatprep.subr.mxu0 0.0
        %1136 = vmatpush1.msra.mxu0 0.0
        %1137 = vmatprep.subr.mxu0 0.0
        %1138 = vmatpush1.msra.mxu0 0.0
        %1139 = vmatprep.subr.mxu0 0.0
        %1140 = vmatpush1.msra.mxu0 0.0
        %1141 = vmatprep.subr.mxu0 0.0
        %1142 = vmatpush1.msra.mxu0 0.0
        %1143 = vmatprep.subr.mxu0 0.0
        %1144 = vmatpush1.msra.mxu0 0.0
        %1145 = vmatprep.subr.mxu0 0.0
        %1146 = vmatpush1.msra.mxu0 0.0
        %1147 = vmatprep.subr.mxu0 0.0
        %1148 = vmatpush1.msra.mxu0 0.0
        %1149 = vmatprep.subr.mxu0 0.0
        %1150 = vmatpush1.msra.mxu0 0.0
        %1151 = vmatprep.subr.mxu0 0.0
        %1152 = vmatpush1.msra.mxu0 0.0
        %1153 = vmatprep.subr.mxu0 0.0
        %1154 = vmatpush1.msra.mxu0 0.0
        %1155 = vmatprep.subr.mxu0 0.0
        %1156 = vmatpush1.msra.mxu0 0.0
        %1157 = vmatprep.subr.mxu0 0.0
        %1158 = vmatpush1.msra.mxu0 0.0
        %1159 = vmatprep.subr.mxu0 0.0
        %1160 = vmatpush1.msra.mxu0 0.0
        %1161 = vmatprep.subr.mxu0 0.0
        %1162 = vmatpush1.msra.mxu0 0.0
        %1163 = vmatprep.subr.mxu0 0.0
        %1164 = vmatpush1.msra.mxu0 0.0
        %1165 = vmatprep.subr.mxu0 0.0
        %1166 = vmatpush1.msra.mxu0 0.0
        %1167 = vmatprep.subr.mxu0 0.0
        %1168 = vmatpush1.msra.mxu0 0.0
        %1169 = vmatprep.subr.mxu0 0.0
        %1170 = vmatpush1.msra.mxu0 0.0
        %1171 = vmatprep.subr.mxu0 0.0
        %1172 = vmatpush1.msra.mxu0 0.0
        %1173 = vmatprep.subr.mxu0 0.0
        %1174 = vmatpush1.msra.mxu0 0.0
        %1175 = vmatprep.subr.mxu0 0.0
        %1176 = vmatpush1.msra.mxu0 0.0
        %1177 = vmatprep.subr.mxu0 0.0
        %1178 = vmatpush1.msra.mxu0 0.0
        %1179 = vmatprep.mubr.f32.mxu0 0.0
        %1180 = vmatmul.mubr.f32.gmra.mrb[0].mxu0 %v1088
        %v1181 = vpop.f32.mrb[0].mxu0
        %v1182 = vadd.f32 0.0, %v1181
        %v1183 = vpop.f32.mrb[0].mxu0
        %1184 = vmatprep.mubr.f32.mxu0 0.0
        %1185 = vmatmul.mubr.f32.gmra.mrb[0].mxu0 %v1091
        %v1186 = vpop.f32.mrb[0].mxu0
        %v1187 = vadd.f32 0.0, %v1186
        %v1188 = vpop.f32.mrb[0].mxu0
        %1189 = vmatprep.mubr.f32.mxu0 0.0
        %1190 = vmatmul.mubr.f32.gmra.mrb[0].mxu0 %v1094
        %v1191 = vpop.f32.mrb[0].mxu0
        %v1192 = vadd.f32 0.0, %v1191
        %v1193 = vpop.f32.mrb[0].mxu0
        %1194 = vmatprep.mubr.f32.mxu0 0.0
        %1195 = vmatmul.mubr.f32.gmra.mrb[0].mxu0 %v1097
        %v1196 = vpop.f32.mrb[0].mxu0
        %v1197 = vadd.f32 0.0, %v1196
        %v1198 = vpop.f32.mrb[0].mxu0
        %1199 = vmatprep.mubr.f32.mxu0 0.0
        %1200 = vmatmul.mubr.f32.gmra.mrb[0].mxu0 %v1100
        %v1201 = vpop.f32.mrb[0].mxu0
        %v1202 = vadd.f32 0.0, %v1201
        %v1203 = vpop.f32.mrb[0].mxu0
        %1204 = vmatprep.mubr.f32.mxu0 0.0
        %1205 = vmatmul.mubr.f32.gmra.mrb[0].mxu0 %v1103
        %v1206 = vpop.f32.mrb[0].mxu0
        %v1207 = vadd.f32 0.0, %v1206
        %v1208 = vpop.f32.mrb[0].mxu0
        %1209 = vmatprep.mubr.f32.mxu0 0.0
        %1210 = vmatmul.mubr.f32.gmra.mrb[0].mxu0 %v1106
        %v1211 = vpop.f32.mrb[0].mxu0
        %v1212 = vadd.f32 0.0, %v1211
        %v1213 = vpop.f32.mrb[0].mxu0
        %1214 = vmatprep.mubr.f32.mxu0 0.0
        %1215 = vmatmul.mubr.f32.gmra.mrb[0].mxu0 %v1109
        %v1216 = vpop.f32.mrb[0].mxu0
        %v1217 = vadd.f32 0.0, %v1216
        %v1218 = vpop.f32.mrb[0].mxu0
        %1219 = vdwg.mxu0
        %1228 = vrot.lane.b32.xlu0 %v1182, 127
        %v1229 = vpop.permute.xlu0 %1228
        %1230 = vrot.lane.b32.xlu0 %v1187, 127
        %v1231 = vpop.permute.xlu0 %1230
        %1232 = vrot.lane.b32.xlu0 %v1192, 127
        %v1233 = vpop.permute.xlu0 %1232
        %1234 = vrot.lane.b32.xlu0 %v1197, 127
        %v1235 = vpop.permute.xlu0 %1234
        %1236 = vrot.lane.b32.xlu0 %v1202, 127
        %v1237 = vpop.permute.xlu0 %1236
        %1238 = vrot.lane.b32.xlu0 %v1207, 127
        %v1239 = vpop.permute.xlu0 %1238
        %1240 = vrot.lane.b32.xlu0 %v1212, 127
        %v1241 = vpop.permute.xlu0 %1240
        %1242 = vrot.lane.b32.xlu0 %v1217, 127
        %v1243 = vpop.permute.xlu0 %1242
        %v1252 = vadd.f32 %v1182, %v1229
        %v1253 = vadd.f32 %v1187, %v1231
        %v1254 = vadd.f32 %v1192, %v1233
        %v1255 = vadd.f32 %v1197, %v1235
        %v1256 = vadd.f32 %v1202, %v1237
        %v1257 = vadd.f32 %v1207, %v1239
        %v1258 = vadd.f32 %v1212, %v1241
        %v1259 = vadd.f32 %v1217, %v1243
        %v1260 = vxor.u32 %v1252, 2147483648
        %v1261 = vxor.u32 %v1253, 2147483648
        %v1262 = vxor.u32 %v1254, 2147483648
        %v1263 = vxor.u32 %v1255, 2147483648
        %v1264 = vxor.u32 %v1256, 2147483648
        %v1265 = vxor.u32 %v1257, 2147483648
        %v1266 = vxor.u32 %v1258, 2147483648
        %v1267 = vxor.u32 %v1259, 2147483648
        %v1268 = vmul.f32 %v1260, 1.442695
        %v1269 = vpow.pop %v1268
        %v1270 = vmul.f32 %v1261, 1.442695
        %v1271 = vpow.pop %v1270
        %v1272 = vmul.f32 %v1262, 1.442695
        %v1273 = vpow.pop %v1272
        %v1274 = vmul.f32 %v1263, 1.442695
        %v1275 = vpow.pop %v1274
        %v1276 = vmul.f32 %v1264, 1.442695
        %v1277 = vpow.pop %v1276
        %v1278 = vmul.f32 %v1265, 1.442695
        %v1279 = vpow.pop %v1278
        %v1280 = vmul.f32 %v1266, 1.442695
        %v1281 = vpow.pop %v1280
        %v1282 = vmul.f32 %v1267, 1.442695
        %v1283 = vpow.pop %v1282
        %v1284 = vadd.f32 %v1269, 1.0
        %v1285 = vadd.f32 %v1271, 1.0
        %v1286 = vadd.f32 %v1273, 1.0
        %v1287 = vadd.f32 %v1275, 1.0
        %v1288 = vadd.f32 %v1277, 1.0
        %v1289 = vadd.f32 %v1279, 1.0
        %v1290 = vadd.f32 %v1281, 1.0
        %v1291 = vadd.f32 %v1283, 1.0
        %v1292 = vrcp.pop %v1284
        %v1293 = vmul.f32 1.0, %v1292
        %v1294 = vrcp.pop %v1285
        %v1295 = vmul.f32 1.0, %v1294
        %v1296 = vrcp.pop %v1286
        %v1297 = vmul.f32 1.0, %v1296
        %v1298 = vrcp.pop %v1287
        %v1299 = vmul.f32 1.0, %v1298
        %v1300 = vrcp.pop %v1288
        %v1301 = vmul.f32 1.0, %v1300
        %v1302 = vrcp.pop %v1289
        %v1303 = vmul.f32 1.0, %v1302
        %v1304 = vrcp.pop %v1290
        %v1305 = vmul.f32 1.0, %v1304
        %v1306 = vrcp.pop %v1291
        %v1307 = vmul.f32 1.0, %v1306
        %1309 = vset.pattern.permute.xlu0 0
        %1310 = vperm.xlu0 %1309, %v1293
        %v1311 = vpop.permute.xlu0 %1310
        %1314 = vset.pattern.permute.xlu0 0
        %1315 = vperm.xlu0 %1314, %v1295
        %v1316 = vpop.permute.xlu0 %1315
        %1319 = vset.pattern.permute.xlu0 0
        %1320 = vperm.xlu0 %1319, %v1297
        %v1321 = vpop.permute.xlu0 %1320
        %1324 = vset.pattern.permute.xlu0 0
        %1325 = vperm.xlu0 %1324, %v1299
        %v1326 = vpop.permute.xlu0 %1325
        %1329 = vset.pattern.permute.xlu0 0
        %1330 = vperm.xlu0 %1329, %v1301
        %v1331 = vpop.permute.xlu0 %1330
        %1334 = vset.pattern.permute.xlu0 0
        %1335 = vperm.xlu0 %1334, %v1303
        %v1336 = vpop.permute.xlu0 %1335
        %1339 = vset.pattern.permute.xlu0 0
        %1340 = vperm.xlu0 %1339, %v1305
        %v1341 = vpop.permute.xlu0 %1340
        %1344 = vset.pattern.permute.xlu0 0
        %1345 = vperm.xlu0 %1344, %v1307
        %v1346 = vpop.permute.xlu0 %1345
        %v1348 = vmul.f32 %v892, %v1311
        %v1349 = vmul.f32 %v894, %v1311
        %v1350 = vmul.f32 %v898, %v1316
        %v1351 = vmul.f32 %v900, %v1316
        %v1352 = vmul.f32 %v904, %v1321
        %v1353 = vmul.f32 %v906, %v1321
        %v1354 = vmul.f32 %v910, %v1326
        %v1355 = vmul.f32 %v912, %v1326
        %v1356 = vmul.f32 %v916, %v1331
        %v1357 = vmul.f32 %v918, %v1331
        %v1358 = vmul.f32 %v922, %v1336
        %v1359 = vmul.f32 %v924, %v1336
        %v1360 = vmul.f32 %v928, %v1341
        %v1361 = vmul.f32 %v930, %v1341
        %v1362 = vmul.f32 %v934, %v1346
        %v1363 = vmul.f32 %v936, %v1346
        %v1364 = vadd.f32 %v1348, %v1350
        %v1365 = vadd.f32 %v1364, %v1352
        %v1366 = vadd.f32 %v1365, %v1354
        %v1367 = vadd.f32 %v1366, %v1356
        %v1368 = vadd.f32 %v1367, %v1358
        %v1369 = vadd.f32 %v1368, %v1360
        %v1370 = vadd.f32 %v1369, %v1362
        %v1371 = vrot.slane %v1370, 4
        %v1372 = vadd.f32 %v1370, %v1371
        %v1373 = vrot.slane %v1372, 2
        %v1374 = vadd.f32 %v1372, %v1373
        %v1375 = vrot.slane %v1374, 1
        %v1376 = vadd.f32 %v1374, %v1375
        %v1377 = vadd.f32 %v1349, %v1351
        %v1378 = vadd.f32 %v1377, %v1353
        %v1379 = vadd.f32 %v1378, %v1355
        %v1380 = vadd.f32 %v1379, %v1357
        %v1381 = vadd.f32 %v1380, %v1359
        %v1382 = vadd.f32 %v1381, %v1361
        %v1383 = vadd.f32 %v1382, %v1363
        %v1384 = vrot.slane %v1383, 4
        %v1385 = vadd.f32 %v1383, %v1384
        %v1386 = vrot.slane %v1385, 2
        %v1387 = vadd.f32 %v1385, %v1386
        %v1388 = vrot.slane %v1387, 1
        %v1389 = vadd.f32 %v1387, %v1388
        %v1390 = vmul.f32 %v1376, 0.015625
        %v1391 = vmul.f32 %v1389, 0.015625
        %v1392 = vmax.f32 %v1348, %v1352
        %v1393 = vmax.f32 %v1350, %v1354
        %v1394 = vmax.f32 %v1392, %v1356
        %v1395 = vmax.f32 %v1393, %v1358
        %v1396 = vmax.f32 %v1394, %v1360
        %v1397 = vmax.f32 %v1395, %v1362
        %v1398 = vmax.f32 %v1396, %v1397
        %v1399 = vrot.slane %v1398, 4
        %v1400 = vmax.f32 %v1398, %v1399
        %v1401 = vrot.slane %v1400, 2
        %v1402 = vmax.f32 %v1400, %v1401
        %v1403 = vrot.slane %v1402, 1
        %v1404 = vmax.f32 %v1402, %v1403
        %v1405 = vmax.f32 %v1349, %v1353
        %v1406 = vmax.f32 %v1351, %v1355
        %v1407 = vmax.f32 %v1405, %v1357
        %v1408 = vmax.f32 %v1406, %v1359
        %v1409 = vmax.f32 %v1407, %v1361
        %v1410 = vmax.f32 %v1408, %v1363
        %v1411 = vmax.f32 %v1409, %v1410
        %v1412 = vrot.slane %v1411, 4
        %v1413 = vmax.f32 %v1411, %v1412
        %v1414 = vrot.slane %v1413, 2
        %v1415 = vmax.f32 %v1413, %v1414
        %v1416 = vrot.slane %v1415, 1
        %v1417 = vmax.f32 %v1415, %v1416
        %v1418 = vlaneseq
        %v1419 = vand.u32 %v1418, 127
        %v1420 = vadd.s32 %v1419, 128
        %vm1421 = vcmp.lt.s32.totalorder %v1419, 0
        %v1422 = vsub.s32 0, %v1419
        %v1423 = vsel %vm1421, %v1422, %v1419
        %v1424 = vshrl.u32 %v1423, 4
        %v1425 = vand.u32 %v1423, 15
        %v1426 = vsub.s32 0, %v1425
        %v1427 = vsel %vm1421, %v1426, %v1425
        %vm1428 = vcmp.lt.s32.totalorder %v1420, 0
        %v1429 = vsub.s32 0, %v1420
        %v1430 = vsel %vm1428, %v1429, %v1420
        %v1431 = vshrl.u32 %v1430, 4
        %v1432 = vand.u32 %v1430, 15
        %v1433 = vsub.s32 0, %v1432
        %v1434 = vsel %vm1428, %v1433, %v1432
        %vm1435 = vcmp.ne.s32.totalorder %v1427, 0
        %vm1436 = vcmp.ne.s32.totalorder %v1434, 0
        %vm1437 = vcmp.lt.s32.totalorder %v1427, 0
        %vm1438 = vcmp.lt.s32.totalorder %v1434, 0
        %vm1439 = vmand %vm1437, %vm1435
        %vm1440 = vmand %vm1438, %vm1436
        %v1441 = vadd.s32 %v1427, 16
        %v1442 = vadd.s32 %v1434, 16
        %v1443 = vsel %vm1439, %v1441, %v1427
        %v1444 = vsel %vm1440, %v1442, %v1434
        %1447 = vrot.lane.b32.xlu0 %v1390, 3
        %v1448 = vpop.permute.xlu0 %1447
        %1449 = vrot.lane.b32.xlu0 %v1391, 3
        %v1450 = vpop.permute.xlu0 %1449
        %vm1451 = vcmask 23552
        %v1452 = vsel %vm1451, %v1448, %v1450
        %v1456 = vsel %vm1451, 0.0, %v1448
        %v1457 = vsel %vm1451, %v1450, 0.0
        %1460 = vrot.lane.b32.xlu0 %v1404, 3
        %v1461 = vpop.permute.xlu0 %1460
        %1462 = vrot.lane.b32.xlu0 %v1417, 3
        %v1463 = vpop.permute.xlu0 %1462
        %v1464 = vsel %vm1451, %v1461, %v1463
        %v1468 = vsel %vm1451, 0.0, %v1461
        %v1469 = vsel %vm1451, %v1463, 0.0
        %vm1470 = vcmp.ge.s32.totalorder %v1443, 3
        %vm1471 = vcmp.ge.s32.totalorder %v1444, 3
        %vm1472 = vcmp.lt.s32.totalorder %v1443, 19
        %vm1473 = vcmp.lt.s32.totalorder %v1444, 19
        %vm1474 = vmand %vm1470, %vm1472
        %vm1475 = vmand %vm1471, %vm1473
        %v1476 = vsel %vm1474, %v1456, 0.0
        %v1477 = vsel %vm1475, %v1452, 0.0
        %v1478 = vsel %vm1474, %v1468, 0.0
        %v1479 = vsel %vm1475, %v1464, 0.0
        %v1480 = vadd.s32 %v1443, 1
        %v1481 = vadd.s32 %v1444, 1
        %vm1482 = vcmp.ge.s32.totalorder %v1480, 3
        %vm1483 = vcmp.ge.s32.totalorder %v1481, 3
        %vm1484 = vcmp.lt.s32.totalorder %v1480, 19
        %vm1485 = vcmp.lt.s32.totalorder %v1481, 19
        %vm1486 = vmand %vm1482, %vm1484
        %vm1487 = vmand %vm1483, %vm1485
        %1490 = vrot.lane.b32.xlu0 %v1456, 127
        %v1491 = vpop.permute.xlu0 %1490
        %1492 = vrot.lane.b32.xlu0 %v1452, 127
        %v1493 = vpop.permute.xlu0 %1492
        %1494 = vrot.lane.b32.xlu0 %v1457, 127
        %v1495 = vpop.permute.xlu0 %1494
        %vm1496 = vcmask 1039360
        %v1497 = vsel %vm1496, %v1491, %v1493
        %v1498 = vsel %vm1496, %v1493, %v1495
        %v1501 = vsel %vm1486, %v1497, 0.0
        %v1502 = vsel %vm1487, %v1498, 0.0
        %1505 = vrot.lane.b32.xlu0 %v1468, 127
        %v1506 = vpop.permute.xlu0 %1505
        %1507 = vrot.lane.b32.xlu0 %v1464, 127
        %v1508 = vpop.permute.xlu0 %1507
        %1509 = vrot.lane.b32.xlu0 %v1469, 127
        %v1510 = vpop.permute.xlu0 %1509
        %v1511 = vsel %vm1496, %v1506, %v1508
        %v1512 = vsel %vm1496, %v1508, %v1510
        %v1515 = vsel %vm1486, %v1511, 0.0
        %v1516 = vsel %vm1487, %v1512, 0.0
        %v1517 = vadd.s32 %v1443, 2
        %v1518 = vadd.s32 %v1444, 2
        %vm1519 = vcmp.ge.s32.totalorder %v1517, 3
        %vm1520 = vcmp.ge.s32.totalorder %v1518, 3
        %vm1521 = vcmp.lt.s32.totalorder %v1517, 19
        %vm1522 = vcmp.lt.s32.totalorder %v1518, 19
        %vm1523 = vmand %vm1519, %vm1521
        %vm1524 = vmand %vm1520, %vm1522
        %1525 = vrot.lane.b32.xlu0 %v1456, 126
        %v1526 = vpop.permute.xlu0 %1525
        %1527 = vrot.lane.b32.xlu0 %v1452, 126
        %v1528 = vpop.permute.xlu0 %1527
        %1529 = vrot.lane.b32.xlu0 %v1457, 126
        %v1530 = vpop.permute.xlu0 %1529
        %vm1531 = vcmask 1031168
        %v1532 = vsel %vm1531, %v1526, %v1528
        %v1533 = vsel %vm1531, %v1528, %v1530
        %v1536 = vsel %vm1523, %v1532, 0.0
        %v1537 = vsel %vm1524, %v1533, 0.0
        %1538 = vrot.lane.b32.xlu0 %v1468, 126
        %v1539 = vpop.permute.xlu0 %1538
        %1540 = vrot.lane.b32.xlu0 %v1464, 126
        %v1541 = vpop.permute.xlu0 %1540
        %1542 = vrot.lane.b32.xlu0 %v1469, 126
        %v1543 = vpop.permute.xlu0 %1542
        %v1544 = vsel %vm1531, %v1539, %v1541
        %v1545 = vsel %vm1531, %v1541, %v1543
        %v1548 = vsel %vm1523, %v1544, 0.0
        %v1549 = vsel %vm1524, %v1545, 0.0
        %v1550 = vadd.s32 %v1443, 3
        %v1551 = vadd.s32 %v1444, 3
        %vm1552 = vcmp.ge.s32.totalorder %v1550, 3
        %vm1553 = vcmp.ge.s32.totalorder %v1551, 3
        %vm1554 = vcmp.lt.s32.totalorder %v1550, 19
        %vm1555 = vcmp.lt.s32.totalorder %v1551, 19
        %vm1556 = vmand %vm1552, %vm1554
        %vm1557 = vmand %vm1553, %vm1555
        %1558 = vrot.lane.b32.xlu0 %v1456, 125
        %v1559 = vpop.permute.xlu0 %1558
        %1560 = vrot.lane.b32.xlu0 %v1452, 125
        %v1561 = vpop.permute.xlu0 %1560
        %1562 = vrot.lane.b32.xlu0 %v1457, 125
        %v1563 = vpop.permute.xlu0 %1562
        %vm1564 = vcmask 1022976
        %v1565 = vsel %vm1564, %v1559, %v1561
        %v1566 = vsel %vm1564, %v1561, %v1563
        %v1569 = vsel %vm1556, %v1565, 0.0
        %v1570 = vsel %vm1557, %v1566, 0.0
        %1571 = vrot.lane.b32.xlu0 %v1468, 125
        %v1572 = vpop.permute.xlu0 %1571
        %1573 = vrot.lane.b32.xlu0 %v1464, 125
        %v1574 = vpop.permute.xlu0 %1573
        %1575 = vrot.lane.b32.xlu0 %v1469, 125
        %v1576 = vpop.permute.xlu0 %1575
        %v1577 = vsel %vm1564, %v1572, %v1574
        %v1578 = vsel %vm1564, %v1574, %v1576
        %v1581 = vsel %vm1556, %v1577, 0.0
        %v1582 = vsel %vm1557, %v1578, 0.0
        %v1583 = vadd.s32 %v1443, 4
        %v1584 = vadd.s32 %v1444, 4
        %vm1585 = vcmp.ge.s32.totalorder %v1583, 3
        %vm1586 = vcmp.ge.s32.totalorder %v1584, 3
        %vm1587 = vcmp.lt.s32.totalorder %v1583, 19
        %vm1588 = vcmp.lt.s32.totalorder %v1584, 19
        %vm1589 = vmand %vm1585, %vm1587
        %vm1590 = vmand %vm1586, %vm1588
        %1591 = vrot.lane.b32.xlu0 %v1456, 124
        %v1592 = vpop.permute.xlu0 %1591
        %1593 = vrot.lane.b32.xlu0 %v1452, 124
        %v1594 = vpop.permute.xlu0 %1593
        %1595 = vrot.lane.b32.xlu0 %v1457, 124
        %v1596 = vpop.permute.xlu0 %1595
        %vm1597 = vcmask 1014784
        %v1598 = vsel %vm1597, %v1592, %v1594
        %v1599 = vsel %vm1597, %v1594, %v1596
        %v1602 = vsel %vm1589, %v1598, 0.0
        %v1603 = vsel %vm1590, %v1599, 0.0
        %1604 = vrot.lane.b32.xlu0 %v1468, 124
        %v1605 = vpop.permute.xlu0 %1604
        %1606 = vrot.lane.b32.xlu0 %v1464, 124
        %v1607 = vpop.permute.xlu0 %1606
        %1608 = vrot.lane.b32.xlu0 %v1469, 124
        %v1609 = vpop.permute.xlu0 %1608
        %v1610 = vsel %vm1597, %v1605, %v1607
        %v1611 = vsel %vm1597, %v1607, %v1609
        %v1614 = vsel %vm1589, %v1610, 0.0
        %v1615 = vsel %vm1590, %v1611, 0.0
        %v1616 = vadd.s32 %v1443, 5
        %v1617 = vadd.s32 %v1444, 5
        %vm1618 = vcmp.ge.s32.totalorder %v1616, 3
        %vm1619 = vcmp.ge.s32.totalorder %v1617, 3
        %vm1620 = vcmp.lt.s32.totalorder %v1616, 19
        %vm1621 = vcmp.lt.s32.totalorder %v1617, 19
        %vm1622 = vmand %vm1618, %vm1620
        %vm1623 = vmand %vm1619, %vm1621
        %1624 = vrot.lane.b32.xlu0 %v1456, 123
        %v1625 = vpop.permute.xlu0 %1624
        %1626 = vrot.lane.b32.xlu0 %v1452, 123
        %v1627 = vpop.permute.xlu0 %1626
        %1628 = vrot.lane.b32.xlu0 %v1457, 123
        %v1629 = vpop.permute.xlu0 %1628
        %vm1630 = vcmask 1006592
        %v1631 = vsel %vm1630, %v1625, %v1627
        %v1632 = vsel %vm1630, %v1627, %v1629
        %v1635 = vsel %vm1622, %v1631, 0.0
        %v1636 = vsel %vm1623, %v1632, 0.0
        %1637 = vrot.lane.b32.xlu0 %v1468, 123
        %v1638 = vpop.permute.xlu0 %1637
        %1639 = vrot.lane.b32.xlu0 %v1464, 123
        %v1640 = vpop.permute.xlu0 %1639
        %1641 = vrot.lane.b32.xlu0 %v1469, 123
        %v1642 = vpop.permute.xlu0 %1641
        %v1643 = vsel %vm1630, %v1638, %v1640
        %v1644 = vsel %vm1630, %v1640, %v1642
        %v1647 = vsel %vm1622, %v1643, 0.0
        %v1648 = vsel %vm1623, %v1644, 0.0
        %v1649 = vadd.s32 %v1443, 6
        %v1650 = vadd.s32 %v1444, 6
        %vm1651 = vcmp.ge.s32.totalorder %v1649, 3
        %vm1652 = vcmp.ge.s32.totalorder %v1650, 3
        %vm1653 = vcmp.lt.s32.totalorder %v1649, 19
        %vm1654 = vcmp.lt.s32.totalorder %v1650, 19
        %vm1655 = vmand %vm1651, %vm1653
        %vm1656 = vmand %vm1652, %vm1654
        %1657 = vrot.lane.b32.xlu0 %v1456, 122
        %v1658 = vpop.permute.xlu0 %1657
        %1659 = vrot.lane.b32.xlu0 %v1452, 122
        %v1660 = vpop.permute.xlu0 %1659
        %1661 = vrot.lane.b32.xlu0 %v1457, 122
        %v1662 = vpop.permute.xlu0 %1661
        %vm1663 = vcmask 998400
        %v1664 = vsel %vm1663, %v1658, %v1660
        %v1665 = vsel %vm1663, %v1660, %v1662
        %v1668 = vsel %vm1655, %v1664, 0.0
        %v1669 = vsel %vm1656, %v1665, 0.0
        %1670 = vrot.lane.b32.xlu0 %v1468, 122
        %v1671 = vpop.permute.xlu0 %1670
        %1672 = vrot.lane.b32.xlu0 %v1464, 122
        %v1673 = vpop.permute.xlu0 %1672
        %1674 = vrot.lane.b32.xlu0 %v1469, 122
        %v1675 = vpop.permute.xlu0 %1674
        %v1676 = vsel %vm1663, %v1671, %v1673
        %v1677 = vsel %vm1663, %v1673, %v1675
        %v1680 = vsel %vm1655, %v1676, 0.0
        %v1681 = vsel %vm1656, %v1677, 0.0
        %s1682 = sld [smem:[#allocation2]]
        %v1683 = vstv %s1682
        %v1684 = vmul.f32 %v1683, %v1476
        %v1685 = vmul.f32 %v1683, %v1477
        %v1686 = vadd.f32 %v1684, 0.0
        %v1687 = vadd.f32 %v1685, 0.0
        %s1688 = sld [smem:[#allocation2 + $0x31]]
        %v1689 = vstv %s1688
        %v1690 = vmul.f32 %v1689, %v1478
        %v1691 = vmul.f32 %v1689, %v1479
        %v1692 = vadd.f32 %v1686, %v1690
        %v1693 = vadd.f32 %v1687, %v1691
        %s1694 = sld [smem:[#allocation2 + $0x1]]
        %v1695 = vstv %s1694
        %v1696 = vmul.f32 %v1695, %v1501
        %v1697 = vmul.f32 %v1695, %v1502
        %v1698 = vadd.f32 %v1692, %v1696
        %v1699 = vadd.f32 %v1693, %v1697
        %s1700 = sld [smem:[#allocation2 + $0x32]]
        %v1701 = vstv %s1700
        %v1702 = vmul.f32 %v1701, %v1515
        %v1703 = vmul.f32 %v1701, %v1516
        %v1704 = vadd.f32 %v1698, %v1702
        %v1705 = vadd.f32 %v1699, %v1703
        %s1706 = sld [smem:[#allocation2 + $0x2]]
        %v1707 = vstv %s1706
        %v1708 = vmul.f32 %v1707, %v1536
        %v1709 = vmul.f32 %v1707, %v1537
        %v1710 = vadd.f32 %v1704, %v1708
        %v1711 = vadd.f32 %v1705, %v1709
        %s1712 = sld [smem:[#allocation2 + $0x33]]
        %v1713 = vstv %s1712
        %v1714 = vmul.f32 %v1713, %v1548
        %v1715 = vmul.f32 %v1713, %v1549
        %v1716 = vadd.f32 %v1710, %v1714
        %v1717 = vadd.f32 %v1711, %v1715
        %s1718 = sld [smem:[#allocation2 + $0x3]]
        %v1719 = vstv %s1718
        %v1720 = vmul.f32 %v1719, %v1569
        %v1721 = vmul.f32 %v1719, %v1570
        %v1722 = vadd.f32 %v1716, %v1720
        %v1723 = vadd.f32 %v1717, %v1721
        %s1724 = sld [smem:[#allocation2 + $0x34]]
        %v1725 = vstv %s1724
        %v1726 = vmul.f32 %v1725, %v1581
        %v1727 = vmul.f32 %v1725, %v1582
        %v1728 = vadd.f32 %v1722, %v1726
        %v1729 = vadd.f32 %v1723, %v1727
        %s1730 = sld [smem:[#allocation2 + $0x4]]
        %v1731 = vstv %s1730
        %v1732 = vmul.f32 %v1731, %v1602
        %v1733 = vmul.f32 %v1731, %v1603
        %v1734 = vadd.f32 %v1728, %v1732
        %v1735 = vadd.f32 %v1729, %v1733
        %s1736 = sld [smem:[#allocation2 + $0x35]]
        %v1737 = vstv %s1736
        %v1738 = vmul.f32 %v1737, %v1614
        %v1739 = vmul.f32 %v1737, %v1615
        %v1740 = vadd.f32 %v1734, %v1738
        %v1741 = vadd.f32 %v1735, %v1739
        %s1742 = sld [smem:[#allocation2 + $0x5]]
        %v1743 = vstv %s1742
        %v1744 = vmul.f32 %v1743, %v1635
        %v1745 = vmul.f32 %v1743, %v1636
        %v1746 = vadd.f32 %v1740, %v1744
        %v1747 = vadd.f32 %v1741, %v1745
        %s1748 = sld [smem:[#allocation2 + $0x36]]
        %v1749 = vstv %s1748
        %v1750 = vmul.f32 %v1749, %v1647
        %v1751 = vmul.f32 %v1749, %v1648
        %v1752 = vadd.f32 %v1746, %v1750
        %v1753 = vadd.f32 %v1747, %v1751
        %s1754 = sld [smem:[#allocation2 + $0x6]]
        %v1755 = vstv %s1754
        %v1756 = vmul.f32 %v1755, %v1668
        %v1757 = vmul.f32 %v1755, %v1669
        %v1758 = vadd.f32 %v1752, %v1756
        %v1759 = vadd.f32 %v1753, %v1757
        %s1760 = sld [smem:[#allocation2 + $0x37]]
        %v1761 = vstv %s1760
        %v1762 = vmul.f32 %v1761, %v1680
        %v1763 = vmul.f32 %v1761, %v1681
        %v1764 = vadd.f32 %v1758, %v1762
        %v1765 = vadd.f32 %v1759, %v1763
        %1768 = vrot.lane.b32.xlu0 %v1764, 48
        %v1769 = vpop.permute.xlu0 %1768
        %1770 = vrot.lane.b32.xlu0 %v1765, 48
        %v1771 = vpop.permute.xlu0 %1770
        %vm1772 = vcmask 392192
        %v1773 = vsel %vm1772, %v1769, %v1771
        %v1776 = vsel %vm1772, 0.0, %v1769
        %v1777 = vadd.f32 %v1776, 0.0
        %v1778 = vadd.f32 %v1773, 0.0
        %s1779 = sld [smem:[#allocation2 + $0x7]]
        %v1780 = vstv %s1779
        %v1781 = vmul.f32 %v1780, %v1476
        %v1782 = vmul.f32 %v1780, %v1477
        %v1783 = vadd.f32 %v1781, 0.0
        %v1784 = vadd.f32 %v1782, 0.0
        %s1785 = sld [smem:[#allocation2 + $0x38]]
        %v1786 = vstv %s1785
        %v1787 = vmul.f32 %v1786, %v1478
        %v1788 = vmul.f32 %v1786, %v1479
        %v1789 = vadd.f32 %v1783, %v1787
        %v1790 = vadd.f32 %v1784, %v1788
        %s1791 = sld [smem:[#allocation2 + $0x8]]
        %v1792 = vstv %s1791
        %v1793 = vmul.f32 %v1792, %v1501
        %v1794 = vmul.f32 %v1792, %v1502
        %v1795 = vadd.f32 %v1789, %v1793
        %v1796 = vadd.f32 %v1790, %v1794
        %s1797 = sld [smem:[#allocation2 + $0x39]]
        %v1798 = vstv %s1797
        %v1799 = vmul.f32 %v1798, %v1515
        %v1800 = vmul.f32 %v1798, %v1516
        %v1801 = vadd.f32 %v1795, %v1799
        %v1802 = vadd.f32 %v1796, %v1800
        %s1803 = sld [smem:[#allocation2 + $0x9]]
        %v1804 = vstv %s1803
        %v1805 = vmul.f32 %v1804, %v1536
        %v1806 = vmul.f32 %v1804, %v1537
        %v1807 = vadd.f32 %v1801, %v1805
        %v1808 = vadd.f32 %v1802, %v1806
        %s1809 = sld [smem:[#allocation2 + $0x3a]]
        %v1810 = vstv %s1809
        %v1811 = vmul.f32 %v1810, %v1548
        %v1812 = vmul.f32 %v1810, %v1549
        %v1813 = vadd.f32 %v1807, %v1811
        %v1814 = vadd.f32 %v1808, %v1812
        %s1815 = sld [smem:[#allocation2 + $0xa]]
        %v1816 = vstv %s1815
        %v1817 = vmul.f32 %v1816, %v1569
        %v1818 = vmul.f32 %v1816, %v1570
        %v1819 = vadd.f32 %v1813, %v1817
        %v1820 = vadd.f32 %v1814, %v1818
        %s1821 = sld [smem:[#allocation2 + $0x3b]]
        %v1822 = vstv %s1821
        %v1823 = vmul.f32 %v1822, %v1581
        %v1824 = vmul.f32 %v1822, %v1582
        %v1825 = vadd.f32 %v1819, %v1823
        %v1826 = vadd.f32 %v1820, %v1824
        %s1827 = sld [smem:[#allocation2 + $0xb]]
        %v1828 = vstv %s1827
        %v1829 = vmul.f32 %v1828, %v1602
        %v1830 = vmul.f32 %v1828, %v1603
        %v1831 = vadd.f32 %v1825, %v1829
        %v1832 = vadd.f32 %v1826, %v1830
        %s1833 = sld [smem:[#allocation2 + $0x3c]]
        %v1834 = vstv %s1833
        %v1835 = vmul.f32 %v1834, %v1614
        %v1836 = vmul.f32 %v1834, %v1615
        %v1837 = vadd.f32 %v1831, %v1835
        %v1838 = vadd.f32 %v1832, %v1836
        %s1839 = sld [smem:[#allocation2 + $0xc]]
        %v1840 = vstv %s1839
        %v1841 = vmul.f32 %v1840, %v1635
        %v1842 = vmul.f32 %v1840, %v1636
        %v1843 = vadd.f32 %v1837, %v1841
        %v1844 = vadd.f32 %v1838, %v1842
        %s1845 = sld [smem:[#allocation2 + $0x3d]]
        %v1846 = vstv %s1845
        %v1847 = vmul.f32 %v1846, %v1647
        %v1848 = vmul.f32 %v1846, %v1648
        %v1849 = vadd.f32 %v1843, %v1847
        %v1850 = vadd.f32 %v1844, %v1848
        %s1851 = sld [smem:[#allocation2 + $0xd]]
        %v1852 = vstv %s1851
        %v1853 = vmul.f32 %v1852, %v1668
        %v1854 = vmul.f32 %v1852, %v1669
        %v1855 = vadd.f32 %v1849, %v1853
        %v1856 = vadd.f32 %v1850, %v1854
        %s1857 = sld [smem:[#allocation2 + $0x3e]]
        %v1858 = vstv %s1857
        %v1859 = vmul.f32 %v1858, %v1680
        %v1860 = vmul.f32 %v1858, %v1681
        %v1861 = vadd.f32 %v1855, %v1859
        %v1862 = vadd.f32 %v1856, %v1860
        %1865 = vrot.lane.b32.xlu0 %v1861, 48
        %v1866 = vpop.permute.xlu0 %1865
        %1867 = vrot.lane.b32.xlu0 %v1862, 48
        %v1868 = vpop.permute.xlu0 %1867
        %v1869 = vsel %vm1772, %v1866, %v1868
        %v1872 = vsel %vm1772, 0.0, %v1866
        %v1873 = vsel %vm1772, %v1868, 0.0
        %1876 = vrot.lane.b32.xlu0 %v1872, 112
        %v1877 = vpop.permute.xlu0 %1876
        %1878 = vrot.lane.b32.xlu0 %v1869, 112
        %v1879 = vpop.permute.xlu0 %1878
        %1880 = vrot.lane.b32.xlu0 %v1873, 112
        %v1881 = vpop.permute.xlu0 %1880
        %vm1882 = vcmask 916480
        %v1883 = vsel %vm1882, %v1877, %v1879
        %v1884 = vsel %vm1882, %v1879, %v1881
        %v1887 = vadd.f32 %v1777, %v1883
        %v1888 = vadd.f32 %v1778, %v1884
        %s1889 = sld [smem:[#allocation2 + $0xe]]
        %v1890 = vstv %s1889
        %v1891 = vmul.f32 %v1890, %v1476
        %v1892 = vmul.f32 %v1890, %v1477
        %v1893 = vadd.f32 %v1891, 0.0
        %v1894 = vadd.f32 %v1892, 0.0
        %s1895 = sld [smem:[#allocation2 + $0x3f]]
        %v1896 = vstv %s1895
        %v1897 = vmul.f32 %v1896, %v1478
        %v1898 = vmul.f32 %v1896, %v1479
        %v1899 = vadd.f32 %v1893, %v1897
        %v1900 = vadd.f32 %v1894, %v1898
        %s1901 = sld [smem:[#allocation2 + $0xf]]
        %v1902 = vstv %s1901
        %v1903 = vmul.f32 %v1902, %v1501
        %v1904 = vmul.f32 %v1902, %v1502
        %v1905 = vadd.f32 %v1899, %v1903
        %v1906 = vadd.f32 %v1900, %v1904
        %s1907 = sld [smem:[#allocation2 + $0x40]]
        %v1908 = vstv %s1907
        %v1909 = vmul.f32 %v1908, %v1515
        %v1910 = vmul.f32 %v1908, %v1516
        %v1911 = vadd.f32 %v1905, %v1909
        %v1912 = vadd.f32 %v1906, %v1910
        %s1913 = sld [smem:[#allocation2 + $0x10]]
        %v1914 = vstv %s1913
        %v1915 = vmul.f32 %v1914, %v1536
        %v1916 = vmul.f32 %v1914, %v1537
        %v1917 = vadd.f32 %v1911, %v1915
        %v1918 = vadd.f32 %v1912, %v1916
        %s1919 = sld [smem:[#allocation2 + $0x41]]
        %v1920 = vstv %s1919
        %v1921 = vmul.f32 %v1920, %v1548
        %v1922 = vmul.f32 %v1920, %v1549
        %v1923 = vadd.f32 %v1917, %v1921
        %v1924 = vadd.f32 %v1918, %v1922
        %s1925 = sld [smem:[#allocation2 + $0x11]]
        %v1926 = vstv %s1925
        %v1927 = vmul.f32 %v1926, %v1569
        %v1928 = vmul.f32 %v1926, %v1570
        %v1929 = vadd.f32 %v1923, %v1927
        %v1930 = vadd.f32 %v1924, %v1928
        %s1931 = sld [smem:[#allocation2 + $0x42]]
        %v1932 = vstv %s1931
        %v1933 = vmul.f32 %v1932, %v1581
        %v1934 = vmul.f32 %v1932, %v1582
        %v1935 = vadd.f32 %v1929, %v1933
        %v1936 = vadd.f32 %v1930, %v1934
        %s1937 = sld [smem:[#allocation2 + $0x12]]
        %v1938 = vstv %s1937
        %v1939 = vmul.f32 %v1938, %v1602
        %v1940 = vmul.f32 %v1938, %v1603
        %v1941 = vadd.f32 %v1935, %v1939
        %v1942 = vadd.f32 %v1936, %v1940
        %s1943 = sld [smem:[#allocation2 + $0x43]]
        %v1944 = vstv %s1943
        %v1945 = vmul.f32 %v1944, %v1614
        %v1946 = vmul.f32 %v1944, %v1615
        %v1947 = vadd.f32 %v1941, %v1945
        %v1948 = vadd.f32 %v1942, %v1946
        %s1949 = sld [smem:[#allocation2 + $0x13]]
        %v1950 = vstv %s1949
        %v1951 = vmul.f32 %v1950, %v1635
        %v1952 = vmul.f32 %v1950, %v1636
        %v1953 = vadd.f32 %v1947, %v1951
        %v1954 = vadd.f32 %v1948, %v1952
        %s1955 = sld [smem:[#allocation2 + $0x44]]
        %v1956 = vstv %s1955
        %v1957 = vmul.f32 %v1956, %v1647
        %v1958 = vmul.f32 %v1956, %v1648
        %v1959 = vadd.f32 %v1953, %v1957
        %v1960 = vadd.f32 %v1954, %v1958
        %s1961 = sld [smem:[#allocation2 + $0x14]]
        %v1962 = vstv %s1961
        %v1963 = vmul.f32 %v1962, %v1668
        %v1964 = vmul.f32 %v1962, %v1669
        %v1965 = vadd.f32 %v1959, %v1963
        %v1966 = vadd.f32 %v1960, %v1964
        %s1967 = sld [smem:[#allocation2 + $0x45]]
        %v1968 = vstv %s1967
        %v1969 = vmul.f32 %v1968, %v1680
        %v1970 = vmul.f32 %v1968, %v1681
        %v1971 = vadd.f32 %v1965, %v1969
        %v1972 = vadd.f32 %v1966, %v1970
        %1975 = vrot.lane.b32.xlu0 %v1971, 48
        %v1976 = vpop.permute.xlu0 %1975
        %1977 = vrot.lane.b32.xlu0 %v1972, 48
        %v1978 = vpop.permute.xlu0 %1977
        %v1979 = vsel %vm1772, %v1976, %v1978
        %v1982 = vsel %vm1772, 0.0, %v1976
        %v1983 = vsel %vm1772, %v1978, 0.0
        %1986 = vrot.lane.b32.xlu0 %v1982, 96
        %v1987 = vpop.permute.xlu0 %1986
        %1988 = vrot.lane.b32.xlu0 %v1979, 96
        %v1989 = vpop.permute.xlu0 %1988
        %1990 = vrot.lane.b32.xlu0 %v1983, 96
        %v1991 = vpop.permute.xlu0 %1990
        %vm1992 = vcmask 785408
        %v1993 = vsel %vm1992, %v1987, %v1989
        %v1994 = vsel %vm1992, %v1989, %v1991
        %v1997 = vadd.f32 %v1887, %v1993
        %v1998 = vadd.f32 %v1888, %v1994
        %s1999 = sld [smem:[#allocation2 + $0x15]]
        %v2000 = vstv %s1999
        %v2001 = vmul.f32 %v2000, %v1476
        %v2002 = vmul.f32 %v2000, %v1477
        %v2003 = vadd.f32 %v2001, 0.0
        %v2004 = vadd.f32 %v2002, 0.0
        %s2005 = sld [smem:[#allocation2 + $0x46]]
        %v2006 = vstv %s2005
        %v2007 = vmul.f32 %v2006, %v1478
        %v2008 = vmul.f32 %v2006, %v1479
        %v2009 = vadd.f32 %v2003, %v2007
        %v2010 = vadd.f32 %v2004, %v2008
        %s2011 = sld [smem:[#allocation2 + $0x16]]
        %v2012 = vstv %s2011
        %v2013 = vmul.f32 %v2012, %v1501
        %v2014 = vmul.f32 %v2012, %v1502
        %v2015 = vadd.f32 %v2009, %v2013
        %v2016 = vadd.f32 %v2010, %v2014
        %s2017 = sld [smem:[#allocation2 + $0x47]]
        %v2018 = vstv %s2017
        %v2019 = vmul.f32 %v2018, %v1515
        %v2020 = vmul.f32 %v2018, %v1516
        %v2021 = vadd.f32 %v2015, %v2019
        %v2022 = vadd.f32 %v2016, %v2020
        %s2023 = sld [smem:[#allocation2 + $0x17]]
        %v2024 = vstv %s2023
        %v2025 = vmul.f32 %v2024, %v1536
        %v2026 = vmul.f32 %v2024, %v1537
        %v2027 = vadd.f32 %v2021, %v2025
        %v2028 = vadd.f32 %v2022, %v2026
        %s2029 = sld [smem:[#allocation2 + $0x48]]
        %v2030 = vstv %s2029
        %v2031 = vmul.f32 %v2030, %v1548
        %v2032 = vmul.f32 %v2030, %v1549
        %v2033 = vadd.f32 %v2027, %v2031
        %v2034 = vadd.f32 %v2028, %v2032
        %s2035 = sld [smem:[#allocation2 + $0x18]]
        %v2036 = vstv %s2035
        %v2037 = vmul.f32 %v2036, %v1569
        %v2038 = vmul.f32 %v2036, %v1570
        %v2039 = vadd.f32 %v2033, %v2037
        %v2040 = vadd.f32 %v2034, %v2038
        %s2041 = sld [smem:[#allocation2 + $0x49]]
        %v2042 = vstv %s2041
        %v2043 = vmul.f32 %v2042, %v1581
        %v2044 = vmul.f32 %v2042, %v1582
        %v2045 = vadd.f32 %v2039, %v2043
        %v2046 = vadd.f32 %v2040, %v2044
        %s2047 = sld [smem:[#allocation2 + $0x19]]
        %v2048 = vstv %s2047
        %v2049 = vmul.f32 %v2048, %v1602
        %v2050 = vmul.f32 %v2048, %v1603
        %v2051 = vadd.f32 %v2045, %v2049
        %v2052 = vadd.f32 %v2046, %v2050
        %s2053 = sld [smem:[#allocation2 + $0x4a]]
        %v2054 = vstv %s2053
        %v2055 = vmul.f32 %v2054, %v1614
        %v2056 = vmul.f32 %v2054, %v1615
        %v2057 = vadd.f32 %v2051, %v2055
        %v2058 = vadd.f32 %v2052, %v2056
        %s2059 = sld [smem:[#allocation2 + $0x1a]]
        %v2060 = vstv %s2059
        %v2061 = vmul.f32 %v2060, %v1635
        %v2062 = vmul.f32 %v2060, %v1636
        %v2063 = vadd.f32 %v2057, %v2061
        %v2064 = vadd.f32 %v2058, %v2062
        %s2065 = sld [smem:[#allocation2 + $0x4b]]
        %v2066 = vstv %s2065
        %v2067 = vmul.f32 %v2066, %v1647
        %v2068 = vmul.f32 %v2066, %v1648
        %v2069 = vadd.f32 %v2063, %v2067
        %v2070 = vadd.f32 %v2064, %v2068
        %s2071 = sld [smem:[#allocation2 + $0x1b]]
        %v2072 = vstv %s2071
        %v2073 = vmul.f32 %v2072, %v1668
        %v2074 = vmul.f32 %v2072, %v1669
        %v2075 = vadd.f32 %v2069, %v2073
        %v2076 = vadd.f32 %v2070, %v2074
        %s2077 = sld [smem:[#allocation2 + $0x4c]]
        %v2078 = vstv %s2077
        %v2079 = vmul.f32 %v2078, %v1680
        %v2080 = vmul.f32 %v2078, %v1681
        %v2081 = vadd.f32 %v2075, %v2079
        %v2082 = vadd.f32 %v2076, %v2080
        %2085 = vrot.lane.b32.xlu0 %v2081, 48
        %v2086 = vpop.permute.xlu0 %2085
        %2087 = vrot.lane.b32.xlu0 %v2082, 48
        %v2088 = vpop.permute.xlu0 %2087
        %v2089 = vsel %vm1772, %v2086, %v2088
        %v2092 = vsel %vm1772, 0.0, %v2086
        %v2093 = vsel %vm1772, %v2088, 0.0
        %2096 = vrot.lane.b32.xlu0 %v2092, 80
        %v2097 = vpop.permute.xlu0 %2096
        %2098 = vrot.lane.b32.xlu0 %v2089, 80
        %v2099 = vpop.permute.xlu0 %2098
        %2100 = vrot.lane.b32.xlu0 %v2093, 80
        %v2101 = vpop.permute.xlu0 %2100
        %vm2102 = vcmask 654336
        %v2103 = vsel %vm2102, %v2097, %v2099
        %v2104 = vsel %vm2102, %v2099, %v2101
        %v2107 = vadd.f32 %v1997, %v2103
        %v2108 = vadd.f32 %v1998, %v2104
        %s2109 = sld [smem:[#allocation2 + $0x1c]]
        %v2110 = vstv %s2109
        %v2111 = vmul.f32 %v2110, %v1476
        %v2112 = vmul.f32 %v2110, %v1477
        %v2113 = vadd.f32 %v2111, 0.0
        %v2114 = vadd.f32 %v2112, 0.0
        %s2115 = sld [smem:[#allocation2 + $0x4d]]
        %v2116 = vstv %s2115
        %v2117 = vmul.f32 %v2116, %v1478
        %v2118 = vmul.f32 %v2116, %v1479
        %v2119 = vadd.f32 %v2113, %v2117
        %v2120 = vadd.f32 %v2114, %v2118
        %s2121 = sld [smem:[#allocation2 + $0x1d]]
        %v2122 = vstv %s2121
        %v2123 = vmul.f32 %v2122, %v1501
        %v2124 = vmul.f32 %v2122, %v1502
        %v2125 = vadd.f32 %v2119, %v2123
        %v2126 = vadd.f32 %v2120, %v2124
        %s2127 = sld [smem:[#allocation2 + $0x4e]]
        %v2128 = vstv %s2127
        %v2129 = vmul.f32 %v2128, %v1515
        %v2130 = vmul.f32 %v2128, %v1516
        %v2131 = vadd.f32 %v2125, %v2129
        %v2132 = vadd.f32 %v2126, %v2130
        %s2133 = sld [smem:[#allocation2 + $0x1e]]
        %v2134 = vstv %s2133
        %v2135 = vmul.f32 %v2134, %v1536
        %v2136 = vmul.f32 %v2134, %v1537
        %v2137 = vadd.f32 %v2131, %v2135
        %v2138 = vadd.f32 %v2132, %v2136
        %s2139 = sld [smem:[#allocation2 + $0x4f]]
        %v2140 = vstv %s2139
        %v2141 = vmul.f32 %v2140, %v1548
        %v2142 = vmul.f32 %v2140, %v1549
        %v2143 = vadd.f32 %v2137, %v2141
        %v2144 = vadd.f32 %v2138, %v2142
        %s2145 = sld [smem:[#allocation2 + $0x1f]]
        %v2146 = vstv %s2145
        %v2147 = vmul.f32 %v2146, %v1569
        %v2148 = vmul.f32 %v2146, %v1570
        %v2149 = vadd.f32 %v2143, %v2147
        %v2150 = vadd.f32 %v2144, %v2148
        %s2151 = sld [smem:[#allocation2 + $0x50]]
        %v2152 = vstv %s2151
        %v2153 = vmul.f32 %v2152, %v1581
        %v2154 = vmul.f32 %v2152, %v1582
        %v2155 = vadd.f32 %v2149, %v2153
        %v2156 = vadd.f32 %v2150, %v2154
        %s2157 = sld [smem:[#allocation2 + $0x20]]
        %v2158 = vstv %s2157
        %v2159 = vmul.f32 %v2158, %v1602
        %v2160 = vmul.f32 %v2158, %v1603
        %v2161 = vadd.f32 %v2155, %v2159
        %v2162 = vadd.f32 %v2156, %v2160
        %s2163 = sld [smem:[#allocation2 + $0x51]]
        %v2164 = vstv %s2163
        %v2165 = vmul.f32 %v2164, %v1614
        %v2166 = vmul.f32 %v2164, %v1615
        %v2167 = vadd.f32 %v2161, %v2165
        %v2168 = vadd.f32 %v2162, %v2166
        %s2169 = sld [smem:[#allocation2 + $0x21]]
        %v2170 = vstv %s2169
        %v2171 = vmul.f32 %v2170, %v1635
        %v2172 = vmul.f32 %v2170, %v1636
        %v2173 = vadd.f32 %v2167, %v2171
        %v2174 = vadd.f32 %v2168, %v2172
        %s2175 = sld [smem:[#allocation2 + $0x52]]
        %v2176 = vstv %s2175
        %v2177 = vmul.f32 %v2176, %v1647
        %v2178 = vmul.f32 %v2176, %v1648
        %v2179 = vadd.f32 %v2173, %v2177
        %v2180 = vadd.f32 %v2174, %v2178
        %s2181 = sld [smem:[#allocation2 + $0x22]]
        %v2182 = vstv %s2181
        %v2183 = vmul.f32 %v2182, %v1668
        %v2184 = vmul.f32 %v2182, %v1669
        %v2185 = vadd.f32 %v2179, %v2183
        %v2186 = vadd.f32 %v2180, %v2184
        %s2187 = sld [smem:[#allocation2 + $0x53]]
        %v2188 = vstv %s2187
        %v2189 = vmul.f32 %v2188, %v1680
        %v2190 = vmul.f32 %v2188, %v1681
        %v2191 = vadd.f32 %v2185, %v2189
        %v2192 = vadd.f32 %v2186, %v2190
        %2195 = vrot.lane.b32.xlu0 %v2191, 48
        %v2196 = vpop.permute.xlu0 %2195
        %2197 = vrot.lane.b32.xlu0 %v2192, 48
        %v2198 = vpop.permute.xlu0 %2197
        %v2199 = vsel %vm1772, %v2196, %v2198
        %v2202 = vsel %vm1772, 0.0, %v2196
        %v2203 = vsel %vm1772, %v2198, 0.0
        %2206 = vrot.lane.b32.xlu0 %v2202, 64
        %v2207 = vpop.permute.xlu0 %2206
        %2208 = vrot.lane.b32.xlu0 %v2199, 64
        %v2209 = vpop.permute.xlu0 %2208
        %2210 = vrot.lane.b32.xlu0 %v2203, 64
        %v2211 = vpop.permute.xlu0 %2210
        %v2212 = vsel %vm800, %v2207, %v2209
        %v2213 = vsel %vm800, %v2209, %v2211
        %v2216 = vadd.f32 %v2107, %v2212
        %v2217 = vadd.f32 %v2108, %v2213
        %s2218 = sld [smem:[#allocation2 + $0x23]]
        %v2219 = vstv %s2218
        %v2220 = vmul.f32 %v2219, %v1476
        %v2221 = vmul.f32 %v2219, %v1477
        %v2222 = vadd.f32 %v2220, 0.0
        %v2223 = vadd.f32 %v2221, 0.0
        %s2224 = sld [smem:[#allocation2 + $0x54]]
        %v2225 = vstv %s2224
        %v2226 = vmul.f32 %v2225, %v1478
        %v2227 = vmul.f32 %v2225, %v1479
        %v2228 = vadd.f32 %v2222, %v2226
        %v2229 = vadd.f32 %v2223, %v2227
        %s2230 = sld [smem:[#allocation2 + $0x24]]
        %v2231 = vstv %s2230
        %v2232 = vmul.f32 %v2231, %v1501
        %v2233 = vmul.f32 %v2231, %v1502
        %v2234 = vadd.f32 %v2228, %v2232
        %v2235 = vadd.f32 %v2229, %v2233
        %s2236 = sld [smem:[#allocation2 + $0x55]]
        %v2237 = vstv %s2236
        %v2238 = vmul.f32 %v2237, %v1515
        %v2239 = vmul.f32 %v2237, %v1516
        %v2240 = vadd.f32 %v2234, %v2238
        %v2241 = vadd.f32 %v2235, %v2239
        %s2242 = sld [smem:[#allocation2 + $0x25]]
        %v2243 = vstv %s2242
        %v2244 = vmul.f32 %v2243, %v1536
        %v2245 = vmul.f32 %v2243, %v1537
        %v2246 = vadd.f32 %v2240, %v2244
        %v2247 = vadd.f32 %v2241, %v2245
        %s2248 = sld [smem:[#allocation2 + $0x56]]
        %v2249 = vstv %s2248
        %v2250 = vmul.f32 %v2249, %v1548
        %v2251 = vmul.f32 %v2249, %v1549
        %v2252 = vadd.f32 %v2246, %v2250
        %v2253 = vadd.f32 %v2247, %v2251
        %s2254 = sld [smem:[#allocation2 + $0x26]]
        %v2255 = vstv %s2254
        %v2256 = vmul.f32 %v2255, %v1569
        %v2257 = vmul.f32 %v2255, %v1570
        %v2258 = vadd.f32 %v2252, %v2256
        %v2259 = vadd.f32 %v2253, %v2257
        %s2260 = sld [smem:[#allocation2 + $0x57]]
        %v2261 = vstv %s2260
        %v2262 = vmul.f32 %v2261, %v1581
        %v2263 = vmul.f32 %v2261, %v1582
        %v2264 = vadd.f32 %v2258, %v2262
        %v2265 = vadd.f32 %v2259, %v2263
        %s2266 = sld [smem:[#allocation2 + $0x27]]
        %v2267 = vstv %s2266
        %v2268 = vmul.f32 %v2267, %v1602
        %v2269 = vmul.f32 %v2267, %v1603
        %v2270 = vadd.f32 %v2264, %v2268
        %v2271 = vadd.f32 %v2265, %v2269
        %s2272 = sld [smem:[#allocation2 + $0x58]]
        %v2273 = vstv %s2272
        %v2274 = vmul.f32 %v2273, %v1614
        %v2275 = vmul.f32 %v2273, %v1615
        %v2276 = vadd.f32 %v2270, %v2274
        %v2277 = vadd.f32 %v2271, %v2275
        %s2278 = sld [smem:[#allocation2 + $0x28]]
        %v2279 = vstv %s2278
        %v2280 = vmul.f32 %v2279, %v1635
        %v2281 = vmul.f32 %v2279, %v1636
        %v2282 = vadd.f32 %v2276, %v2280
        %v2283 = vadd.f32 %v2277, %v2281
        %s2284 = sld [smem:[#allocation2 + $0x59]]
        %v2285 = vstv %s2284
        %v2286 = vmul.f32 %v2285, %v1647
        %v2287 = vmul.f32 %v2285, %v1648
        %v2288 = vadd.f32 %v2282, %v2286
        %v2289 = vadd.f32 %v2283, %v2287
        %s2290 = sld [smem:[#allocation2 + $0x29]]
        %v2291 = vstv %s2290
        %v2292 = vmul.f32 %v2291, %v1668
        %v2293 = vmul.f32 %v2291, %v1669
        %v2294 = vadd.f32 %v2288, %v2292
        %v2295 = vadd.f32 %v2289, %v2293
        %s2296 = sld [smem:[#allocation2 + $0x5a]]
        %v2297 = vstv %s2296
        %v2298 = vmul.f32 %v2297, %v1680
        %v2299 = vmul.f32 %v2297, %v1681
        %v2300 = vadd.f32 %v2294, %v2298
        %v2301 = vadd.f32 %v2295, %v2299
        %2304 = vrot.lane.b32.xlu0 %v2300, 48
        %v2305 = vpop.permute.xlu0 %2304
        %2306 = vrot.lane.b32.xlu0 %v2301, 48
        %v2307 = vpop.permute.xlu0 %2306
        %v2308 = vsel %vm1772, %v2305, %v2307
        %v2311 = vsel %vm1772, 0.0, %v2305
        %v2312 = vsel %vm1772, %v2307, 0.0
        %2315 = vrot.lane.b32.xlu0 %v2311, 48
        %v2316 = vpop.permute.xlu0 %2315
        %2317 = vrot.lane.b32.xlu0 %v2308, 48
        %v2318 = vpop.permute.xlu0 %2317
        %2319 = vrot.lane.b32.xlu0 %v2312, 48
        %v2320 = vpop.permute.xlu0 %2319
        %v2321 = vsel %vm1772, %v2316, %v2318
        %v2322 = vsel %vm1772, %v2318, %v2320
        %v2325 = vadd.f32 %v2216, %v2321
        %v2326 = vadd.f32 %v2217, %v2322
        %s2327 = sld [smem:[#allocation2 + $0x2a]]
        %v2328 = vstv %s2327
        %v2329 = vmul.f32 %v2328, %v1476
        %v2330 = vmul.f32 %v2328, %v1477
        %v2331 = vadd.f32 %v2329, 0.0
        %v2332 = vadd.f32 %v2330, 0.0
        %s2333 = sld [smem:[#allocation2 + $0x5b]]
        %v2334 = vstv %s2333
        %v2335 = vmul.f32 %v2334, %v1478
        %v2336 = vmul.f32 %v2334, %v1479
        %v2337 = vadd.f32 %v2331, %v2335
        %v2338 = vadd.f32 %v2332, %v2336
        %s2339 = sld [smem:[#allocation2 + $0x2b]]
        %v2340 = vstv %s2339
        %v2341 = vmul.f32 %v2340, %v1501
        %v2342 = vmul.f32 %v2340, %v1502
        %v2343 = vadd.f32 %v2337, %v2341
        %v2344 = vadd.f32 %v2338, %v2342
        %s2345 = sld [smem:[#allocation2 + $0x5c]]
        %v2346 = vstv %s2345
        %v2347 = vmul.f32 %v2346, %v1515
        %v2348 = vmul.f32 %v2346, %v1516
        %v2349 = vadd.f32 %v2343, %v2347
        %v2350 = vadd.f32 %v2344, %v2348
        %s2351 = sld [smem:[#allocation2 + $0x2c]]
        %v2352 = vstv %s2351
        %v2353 = vmul.f32 %v2352, %v1536
        %v2354 = vmul.f32 %v2352, %v1537
        %v2355 = vadd.f32 %v2349, %v2353
        %v2356 = vadd.f32 %v2350, %v2354
        %s2357 = sld [smem:[#allocation2 + $0x5d]]
        %v2358 = vstv %s2357
        %v2359 = vmul.f32 %v2358, %v1548
        %v2360 = vmul.f32 %v2358, %v1549
        %v2361 = vadd.f32 %v2355, %v2359
        %v2362 = vadd.f32 %v2356, %v2360
        %s2363 = sld [smem:[#allocation2 + $0x2d]]
        %v2364 = vstv %s2363
        %v2365 = vmul.f32 %v2364, %v1569
        %v2366 = vmul.f32 %v2364, %v1570
        %v2367 = vadd.f32 %v2361, %v2365
        %v2368 = vadd.f32 %v2362, %v2366
        %s2369 = sld [smem:[#allocation2 + $0x5e]]
        %v2370 = vstv %s2369
        %v2371 = vmul.f32 %v2370, %v1581
        %v2372 = vmul.f32 %v2370, %v1582
        %v2373 = vadd.f32 %v2367, %v2371
        %v2374 = vadd.f32 %v2368, %v2372
        %s2375 = sld [smem:[#allocation2 + $0x2e]]
        %v2376 = vstv %s2375
        %v2377 = vmul.f32 %v2376, %v1602
        %v2378 = vmul.f32 %v2376, %v1603
        %v2379 = vadd.f32 %v2373, %v2377
        %v2380 = vadd.f32 %v2374, %v2378
        %s2381 = sld [smem:[#allocation2 + $0x5f]]
        %v2382 = vstv %s2381
        %v2383 = vmul.f32 %v2382, %v1614
        %v2384 = vmul.f32 %v2382, %v1615
        %v2385 = vadd.f32 %v2379, %v2383
        %v2386 = vadd.f32 %v2380, %v2384
        %s2387 = sld [smem:[#allocation2 + $0x2f]]
        %v2388 = vstv %s2387
        %v2389 = vmul.f32 %v2388, %v1635
        %v2390 = vmul.f32 %v2388, %v1636
        %v2391 = vadd.f32 %v2385, %v2389
        %v2392 = vadd.f32 %v2386, %v2390
        %s2393 = sld [smem:[#allocation2 + $0x60]]
        %v2394 = vstv %s2393
        %v2395 = vmul.f32 %v2394, %v1647
        %v2396 = vmul.f32 %v2394, %v1648
        %v2397 = vadd.f32 %v2391, %v2395
        %v2398 = vadd.f32 %v2392, %v2396
        %s2399 = sld [smem:[#allocation2 + $0x30]]
        %v2400 = vstv %s2399
        %v2401 = vmul.f32 %v2400, %v1668
        %v2402 = vmul.f32 %v2400, %v1669
        %v2403 = vadd.f32 %v2397, %v2401
        %v2404 = vadd.f32 %v2398, %v2402
        %s2405 = sld [smem:[#allocation2 + $0x61]]
        %v2406 = vstv %s2405
        %v2407 = vmul.f32 %v2406, %v1680
        %v2408 = vmul.f32 %v2406, %v1681
        %v2409 = vadd.f32 %v2403, %v2407
        %v2410 = vadd.f32 %v2404, %v2408
        %2413 = vrot.lane.b32.xlu0 %v2409, 48
        %v2414 = vpop.permute.xlu0 %2413
        %2415 = vrot.lane.b32.xlu0 %v2410, 48
        %v2416 = vpop.permute.xlu0 %2415
        %v2417 = vsel %vm1772, %v2414, %v2416
        %v2420 = vsel %vm1772, 0.0, %v2414
        %v2421 = vsel %vm1772, %v2416, 0.0
        %2424 = vrot.lane.b32.xlu0 %v2420, 32
        %v2425 = vpop.permute.xlu0 %2424
        %2426 = vrot.lane.b32.xlu0 %v2417, 32
        %v2427 = vpop.permute.xlu0 %2426
        %2428 = vrot.lane.b32.xlu0 %v2421, 32
        %v2429 = vpop.permute.xlu0 %2428
        %v2430 = vsel %vm438, %v2425, %v2427
        %v2431 = vsel %vm438, %v2427, %v2429
        %v2434 = vadd.f32 %v2325, %v2430
        %v2435 = vadd.f32 %v2326, %v2431
        %v2436 = vxor.u32 %v2434, 2147483648
        %v2437 = vxor.u32 %v2435, 2147483648
        %v2438 = vmul.f32 %v2436, 1.442695
        %v2439 = vpow.pop %v2438
        %v2440 = vmul.f32 %v2437, 1.442695
        %v2441 = vpow.pop %v2440
        %v2442 = vadd.f32 %v2439, 1.0
        %v2443 = vadd.f32 %v2441, 1.0
        %v2444 = vrcp.pop %v2442
        %v2445 = vmul.f32 1.0, %v2444
        %v2446 = vrcp.pop %v2443
        %v2447 = vmul.f32 1.0, %v2446
        %v2448 = vlaneseq
        %v2449 = vshrl.u32 %v2448, 7
        %v2450 = vsub.s32 0, %v2449
        %v2451 = vrot.slane %v2445, %v2450
        %v2452 = vlaneseq
        %v2453 = vshrl.u32 %v2452, 7
        %v2454 = vsub.s32 0, %v2453
        %v2455 = vrot.slane %v2447, %v2454
        %v2456 = vmul.f32 %v2451, %v1348
        %v2457 = vmul.f32 %v2455, %v1349
        %v2458 = vmul.f32 %v2451, %v1350
        %v2459 = vmul.f32 %v2455, %v1351
        %v2460 = vmul.f32 %v2451, %v1352
        %v2461 = vmul.f32 %v2455, %v1353
        %v2462 = vmul.f32 %v2451, %v1354
        %v2463 = vmul.f32 %v2455, %v1355
        %v2464 = vmul.f32 %v2451, %v1356
        %v2465 = vmul.f32 %v2455, %v1357
        %v2466 = vmul.f32 %v2451, %v1358
        %v2467 = vmul.f32 %v2455, %v1359
        %v2468 = vmul.f32 %v2451, %v1360
        %v2469 = vmul.f32 %v2455, %v1361
        %v2470 = vmul.f32 %v2451, %v1362
        %v2471 = vmul.f32 %v2455, %v1363
        %v2472 = vadd.f32 %v2456, %v602
        %v2473 = vadd.f32 %v2457, %v604
        %v2474 = vadd.f32 %v2458, %v608
        %v2475 = vadd.f32 %v2459, %v610
        %v2476 = vadd.f32 %v2460, %v614
        %v2477 = vadd.f32 %v2461, %v616
        %v2478 = vadd.f32 %v2462, %v620
        %v2479 = vadd.f32 %v2463, %v622
        %v2480 = vadd.f32 %v2464, %v626
        %v2481 = vadd.f32 %v2465, %v628
        %v2482 = vadd.f32 %v2466, %v632
        %v2483 = vadd.f32 %v2467, %v634
        %v2484 = vadd.f32 %v2468, %v638
        %v2485 = vadd.f32 %v2469, %v640
        %v2486 = vadd.f32 %v2470, %v644
        %v2487 = vadd.f32 %v2471, %v646
        %v2488 = vxor.u32 %v2472, 2147483648
        %v2489 = vxor.u32 %v2473, 2147483648
        %v2490 = vxor.u32 %v2474, 2147483648
        %v2491 = vxor.u32 %v2475, 2147483648
        %v2492 = vxor.u32 %v2476, 2147483648
        %v2493 = vxor.u32 %v2477, 2147483648
        %v2494 = vxor.u32 %v2478, 2147483648
        %v2495 = vxor.u32 %v2479, 2147483648
        %v2496 = vxor.u32 %v2480, 2147483648
        %v2497 = vxor.u32 %v2481, 2147483648
        %v2498 = vxor.u32 %v2482, 2147483648
        %v2499 = vxor.u32 %v2483, 2147483648
        %v2500 = vxor.u32 %v2484, 2147483648
        %v2501 = vxor.u32 %v2485, 2147483648
        %v2502 = vxor.u32 %v2486, 2147483648
        %v2503 = vxor.u32 %v2487, 2147483648
        %v2504 = vmul.f32 %v2488, 1.442695
        %v2505 = vpow.pop %v2504
        %v2506 = vmul.f32 %v2489, 1.442695
        %v2507 = vpow.pop %v2506
        %v2508 = vmul.f32 %v2490, 1.442695
        %v2509 = vpow.pop %v2508
        %v2510 = vmul.f32 %v2491, 1.442695
        %v2511 = vpow.pop %v2510
        %v2512 = vmul.f32 %v2492, 1.442695
        %v2513 = vpow.pop %v2512
        %v2514 = vmul.f32 %v2493, 1.442695
        %v2515 = vpow.pop %v2514
        %v2516 = vmul.f32 %v2494, 1.442695
        %v2517 = vpow.pop %v2516
        %v2518 = vmul.f32 %v2495, 1.442695
        %v2519 = vpow.pop %v2518
        %v2520 = vmul.f32 %v2496, 1.442695
        %v2521 = vpow.pop %v2520
        %v2522 = vmul.f32 %v2497, 1.442695
        %v2523 = vpow.pop %v2522
        %v2524 = vmul.f32 %v2498, 1.442695
        %v2525 = vpow.pop %v2524
        %v2526 = vmul.f32 %v2499, 1.442695
        %v2527 = vpow.pop %v2526
        %v2528 = vmul.f32 %v2500, 1.442695
        %v2529 = vpow.pop %v2528
        %v2530 = vmul.f32 %v2501, 1.442695
        %v2531 = vpow.pop %v2530
        %v2532 = vmul.f32 %v2502, 1.442695
        %v2533 = vpow.pop %v2532
        %v2534 = vmul.f32 %v2503, 1.442695
        %v2535 = vpow.pop %v2534
        %v2536 = vadd.f32 %v2505, 1.0
        %v2537 = vadd.f32 %v2507, 1.0
        %v2538 = vadd.f32 %v2509, 1.0
        %v2539 = vadd.f32 %v2511, 1.0
        %v2540 = vadd.f32 %v2513, 1.0
        %v2541 = vadd.f32 %v2515, 1.0
        %v2542 = vadd.f32 %v2517, 1.0
        %v2543 = vadd.f32 %v2519, 1.0
        %v2544 = vadd.f32 %v2521, 1.0
        %v2545 = vadd.f32 %v2523, 1.0
        %v2546 = vadd.f32 %v2525, 1.0
        %v2547 = vadd.f32 %v2527, 1.0
        %v2548 = vadd.f32 %v2529, 1.0
        %v2549 = vadd.f32 %v2531, 1.0
        %v2550 = vadd.f32 %v2533, 1.0
        %v2551 = vadd.f32 %v2535, 1.0
        %v2552 = vrcp.pop %v2536
        %v2553 = vmul.f32 1.0, %v2552
        %v2554 = vrcp.pop %v2537
        %v2555 = vmul.f32 1.0, %v2554
        %v2556 = vrcp.pop %v2538
        %v2557 = vmul.f32 1.0, %v2556
        %v2558 = vrcp.pop %v2539
        %v2559 = vmul.f32 1.0, %v2558
        %v2560 = vrcp.pop %v2540
        %v2561 = vmul.f32 1.0, %v2560
        %v2562 = vrcp.pop %v2541
        %v2563 = vmul.f32 1.0, %v2562
        %v2564 = vrcp.pop %v2542
        %v2565 = vmul.f32 1.0, %v2564
        %v2566 = vrcp.pop %v2543
        %v2567 = vmul.f32 1.0, %v2566
        %v2568 = vrcp.pop %v2544
        %v2569 = vmul.f32 1.0, %v2568
        %v2570 = vrcp.pop %v2545
        %v2571 = vmul.f32 1.0, %v2570
        %v2572 = vrcp.pop %v2546
        %v2573 = vmul.f32 1.0, %v2572
        %v2574 = vrcp.pop %v2547
        %v2575 = vmul.f32 1.0, %v2574
        %v2576 = vrcp.pop %v2548
        %v2577 = vmul.f32 1.0, %v2576
        %v2578 = vrcp.pop %v2549
        %v2579 = vmul.f32 1.0, %v2578
        %v2580 = vrcp.pop %v2550
        %v2581 = vmul.f32 1.0, %v2580
        %v2582 = vrcp.pop %v2551
        %v2583 = vmul.f32 1.0, %v2582
        %2584 = vst [vmem:[%s312] sm:$0xff] %v2553
        %2585 = vst [vmem:[%s312 + $0x8] sm:$0xff] %v2555
        %2586 = vst [vmem:[%s312 + $0x10] sm:$0xff] %v2557
        %2587 = vst [vmem:[%s312 + $0x18] sm:$0xff] %v2559
        %2588 = vst [vmem:[%s312 + $0x20] sm:$0xff] %v2561
        %2589 = vst [vmem:[%s312 + $0x28] sm:$0xff] %v2563
        %2590 = vst [vmem:[%s312 + $0x30] sm:$0xff] %v2565
        %2591 = vst [vmem:[%s312 + $0x38] sm:$0xff] %v2567
        %2592 = vst [vmem:[%s312 + $0x40] sm:$0xff] %v2569
        %2593 = vst [vmem:[%s312 + $0x48] sm:$0xff] %v2571
        %2594 = vst [vmem:[%s312 + $0x50] sm:$0xff] %v2573
        %2595 = vst [vmem:[%s312 + $0x58] sm:$0xff] %v2575
        %2596 = vst [vmem:[%s312 + $0x60] sm:$0xff] %v2577
        %2597 = vst [vmem:[%s312 + $0x68] sm:$0xff] %v2579
        %2598 = vst [vmem:[%s312 + $0x70] sm:$0xff] %v2581
        %2599 = vst [vmem:[%s312 + $0x78] sm:$0xff] %v2583
        %s2600 = sand.u32 %s204, 1
        %s2601 = scalar_lea.sflag [#allocation3], %s2600
        %s2602 = sand.u32 %s204, 1
        %s2603 = smul.addr %s2602, 128
        %s2604 = scalar_lea.vmem [#allocation5], %s2603
        // Predicated region
        $region57: #{tpu_custom_call.1} parent=51 // pred_check
          %p2605 = pneg %p214
        $region58: #{tpu_custom_call.1} parent=51 // pred_check_branch
          %2607 = sbr.rel (%p2605) target = $region60
        $region59: #{tpu_custom_call.1} parent=51 // pred_region
          %s2609 = ssub.s32 2048, 2048
          %2610 = vsyncadd %s2601, %s2609
          %s2611 = smul.addr %s23, 16
          %s2612 = smul.addr %s2611, 128
          %s2613 = scalar_lea.hbm %s8, %s2612
          %s2614 = sshll.u32 %s2604, 4
          %s2615 = int_to_ptr.vmem [resolvable:$true] %s2614
          %2620 = dma.vmem_to_hbm [thread:$0]  %s2615, 2048, %s2613, %s2601, 256, 256, 16
        $region60: #{tpu_custom_call.1} parent=51 // pred_fallthru
          _
      $region52: #{tpu_custom_call.1} parent=5 // pred_fallthru
        _
      %p2621 = scmp.le.s32.totalorder 2, %s18
      // Predicated region
      $region61: #{tpu_custom_call.1} parent=5 // pred_check
        %p2622 = pneg %p2621
      $region62: #{tpu_custom_call.1} parent=5 // pred_check_branch
        %2624 = sbr.rel (%p2622) target = $region64
      $region63: #{tpu_custom_call.1} parent=5 // pred_region
        %s2625 = ssub.s32 %s18, 2
        // Predicated region
        $region65: #{tpu_custom_call.1} parent=63 // pred_check
          %p2626 = pneg %p220
        $region66: #{tpu_custom_call.1} parent=63 // pred_check_branch
          %2628 = sbr.rel (%p2626) target = $region68
        $region67: #{tpu_custom_call.1} parent=63 // pred_region
          %s2629 = sand.u32 %s205, 1
          %s2630 = scalar_lea.sflag [#allocation3], %s2629
          %s2631 = sand.u32 %s205, 1
          %s2632 = smul.addr %s2631, 128
          %s2633 = scalar_lea.vmem [#allocation5], %s2632
          %2634 = dma.done %s2630, 2048
        $region68: #{tpu_custom_call.1} parent=63 // pred_fallthru
          _
      $region64: #{tpu_custom_call.1} parent=5 // pred_fallthru
        _
    $region6: #{tpu_custom_call.1} parent=1 // loop_footer
      %s22 = sadd.s32 1, %s18
    $region7: #{tpu_custom_call.1} parent=1 // loop_footer_branch
      %17 = sbr.rel target = $region3
    $region8: #{tpu_custom_call.1} parent=1 // loop_exit
      _
    %2635 = vsyncpa [#allocation3], 1
    %s2636 = scalar_lea.sflag [#allocation3], 1
    %2637 = vsyncpa %s2636, 1
    %2638 = vsyncpa [#allocation4], 1
    %s2639 = scalar_lea.sflag [#allocation4], 1
    %2640 = vsyncpa %s2639, 1

</llo_original>
